<compile_context>
chip_gen: v5e
topology: v5e:2x2
jax: 0.10.0
libtpu: 0.0.40
codegen_flags: <defaults>
</compile_context>

<pallas_src>
import jax
import jax.numpy as jnp
from jax.experimental import pallas as pl
from jax.experimental.pallas import tpu as pltpu

BN_EPS = 1e-5
LRELU_SLOPE = 0.01

PHASES = ((0, 0), (0, 1), (1, 0), (1, 1))            # output (row, col) parity
SHIFTS4 = ((0, 0), (0, 1), (1, 0), (1, 1))           # input taps, stride-2 layers
SHIFTS9 = tuple((a, b) for a in range(3) for b in range(3))  # taps, stride-1 conv1

TM_CAP = 8192   # max lanes per M tile (keeps double-buffered blocks small)


def _pick_tm(m, cap=TM_CAP):
    """Largest multiple-of-128 tile dividing m (capped); prefer >=2 grid steps."""
    assert m % 128 == 0, m
    tm = min(m, cap)
    while m % tm:
        tm -= 128
    if tm == m and m > 128 and (m // 2) % 128 == 0:
        tm = m // 2        # guarantee at least two parallel steps (v7x megacore)
    return tm


# ----------------------------------------------------------------------------
# Pallas kernels
# ----------------------------------------------------------------------------
def linear_lane_dense(z, w_t, b, *, tn=896):
    """(N, K) @ (K, F) + b with the F (=6272) output axis lane-dense, tiled."""
    n, k = z.shape
    f = w_t.shape[1]
    assert f % tn == 0

    def kernel(z_ref, w_ref, b_ref, o_ref):
        acc = jnp.dot(z_ref[...], w_ref[...], preferred_element_type=jnp.float32)
        o_ref[...] = (acc + b_ref[...]).astype(o_ref.dtype)

    return pl.pallas_call(
        kernel,
        out_shape=jax.ShapeDtypeStruct((n, f), jnp.bfloat16),
        grid=(f // tn,),
        in_specs=[
            pl.BlockSpec((n, k), lambda i: (0, 0)),
            pl.BlockSpec((k, tn), lambda i: (0, i)),
            pl.BlockSpec((1, tn), lambda i: (0, i)),
        ],
        out_specs=pl.BlockSpec((n, tn), lambda i: (0, i)),
        compiler_params=pltpu.CompilerParams(dimension_semantics=("parallel",)),
    )(z.astype(jnp.bfloat16), w_t.astype(jnp.bfloat16),
      b.reshape(1, f).astype(jnp.float32))


def conv_gemm(x_taps, w_stack, bias, *, act="none", with_stats=True):
    """Phase-stacked GEMM of a (transposed) conv, lane-dense, M-tiled.

    x_taps : (K, M)  bf16, K = n_taps*Cin, M = N*H*W (lane axis, mult. of 128)
    w_stack: (R, K)  bf16, R = n_phases*Cout (all phases stacked on MXU rows)
    bias   : (R,)    per-row bias (per-channel bias replicated across phases)
    Returns y (R, M) bf16 [+ per-M-tile row sum / sum-of-squares (G, R, 1)
    f32 when with_stats=True, for the training-mode BatchNorm that follows].
    """
    k, m = x_taps.shape
    r, k2 = w_stack.shape
    assert k2 == k
    tm = _pick_tm(m)
    g = m // tm

    def kernel(x_ref, w_ref, b_ref, *out_refs):
        acc = jnp.dot(w_ref[...], x_ref[...], preferred_element_type=jnp.float32)
        acc = acc + b_ref[...]
        if act == "sigmoid":                      # fused epilogue (EUP exp)
            acc = 1.0 / (1.0 + jnp.exp(-acc))
        out_refs[0][...] = acc.astype(out_refs[0].dtype)
        if with_stats:                            # fused BN statistics (f32)
            out_refs[1][0] = jnp.sum(acc, axis=1, keepdims=True)
            out_refs[2][0] = jnp.sum(acc * acc, axis=1, keepdims=True)

    if with_stats:
        out_shape = (jax.ShapeDtypeStruct((r, m), jnp.bfloat16),
                     jax.ShapeDtypeStruct((g, r, 1), jnp.float32),
                     jax.ShapeDtypeStruct((g, r, 1), jnp.float32))
        out_specs = (pl.BlockSpec((r, tm), lambda i: (0, i)),
                     pl.BlockSpec((1, r, 1), lambda i: (i, 0, 0)),
                     pl.BlockSpec((1, r, 1), lambda i: (i, 0, 0)))
    else:
        out_shape = jax.ShapeDtypeStruct((r, m), jnp.bfloat16)
        out_specs = pl.BlockSpec((r, tm), lambda i: (0, i))

    return pl.pallas_call(
        kernel,
        out_shape=out_shape,
        grid=(g,),
        in_specs=[
            pl.BlockSpec((k, tm), lambda i: (0, i)),
            pl.BlockSpec((r, k), lambda i: (0, 0)),
            pl.BlockSpec((r, 1), lambda i: (0, 0)),
        ],
        out_specs=out_specs,
        compiler_params=pltpu.CompilerParams(dimension_semantics=("parallel",)),
    )(x_taps.astype(jnp.bfloat16), w_stack.astype(jnp.bfloat16),
      bias.reshape(r, 1).astype(jnp.float32))


# ----------------------------------------------------------------------------
# XLA glue (fused by XLA with the surrounding pad/slice/concat):
# BN statistics reduction, BN-apply + LeakyReLU, tap stacking, phase interleave
# ----------------------------------------------------------------------------
def bn_scale_shift(ssum, ssq, gamma, beta, *, p, co, count):
    """Training-mode BatchNorm2d scale/shift from fused per-tile statistics."""
    s1 = ssum.reshape(-1, p, co).sum(axis=(0, 1))
    s2 = ssq.reshape(-1, p, co).sum(axis=(0, 1))
    mean = s1 / count
    var = s2 / count - mean * mean                  # biased variance (PyTorch BN)
    scale = gamma * jax.lax.rsqrt(var + BN_EPS)
    shift = beta - mean * scale
    return scale, shift


def bn_lrelu_apply(y, scale, shift, *, p, co):
    """Per-channel scale/shift + LeakyReLU(0.01) on the (P*Co, M) conv output.

    Plain jnp so XLA fuses it into the interleave / tap-stack pass that feeds
    the next layer (no dedicated HBM round trip)."""
    sc = jnp.tile(scale, p).reshape(p * co, 1)      # row = phase*Co + c
    sh = jnp.tile(shift, p).reshape(p * co, 1)
    v = y.astype(jnp.float32) * sc + sh
    return jnp.where(v > 0, v, LRELU_SLOPE * v).astype(jnp.bfloat16)


def stack_taps(x, shifts):
    """x: (C, N, H, W) -> (T*C, N*H*W): shifted copies stacked along K.

    Each tap reads x[..., i+a, j+b] with zeros past the bottom/right edge
    (this is exactly the ConvTranspose output_padding semantics)."""
    c, n, h, w = x.shape
    amax = max(a for a, _ in shifts)
    bmax = max(b for _, b in shifts)
    xp = jnp.pad(x, ((0, 0), (0, 0), (0, amax), (0, bmax)))
    taps = [xp[:, :, a:a + h, b:b + w] for (a, b) in shifts]
    return jnp.concatenate(taps, axis=0).reshape(len(shifts) * c, n * h * w)


def interleave_phases(y, n, h, w):
    """(4, Co, N*H*W) phase-separated -> (Co, N, 2H, 2W) interleaved map."""
    _, co, _ = y.shape
    t = y.reshape(2, 2, co, n, h, w)
    t = jnp.transpose(t, (2, 3, 4, 0, 5, 1))        # (Co, N, H, 2, W, 2)
    return t.reshape(co, n, 2 * h, 2 * w)


# ----------------------------------------------------------------------------
# Parameters: PyTorch layout + kernel-ready pre-stacked layout
# ----------------------------------------------------------------------------
def init_params(key, z_dim):
    ks = jax.random.split(key, 16)

    def w_convT(k, cin, cout):
        return jax.random.normal(k, (cin, cout, 3, 3), jnp.float32) / float(cin * 9) ** 0.5

    def small(k, shape):
        return 0.1 * jax.random.normal(k, shape, jnp.float32)

    p = {}
    p["lin_w"] = jax.random.normal(ks[0], (6272, z_dim), jnp.float32) / float(z_dim) ** 0.5
    p["lin_b"] = small(ks[1], (6272,))
    p["conv1_w"] = w_convT(ks[2], 32, 16); p["conv1_b"] = small(ks[3], (16,))
    p["conv2_w"] = w_convT(ks[4], 16, 16); p["conv2_b"] = small(ks[5], (16,))
    p["conv3_w"] = w_convT(ks[6], 16, 8);  p["conv3_b"] = small(ks[7], (8,))
    p["conv4_w"] = w_convT(ks[8], 8, 1);   p["conv4_b"] = small(ks[9], (1,))
    p["bn1_g"] = 1.0 + small(ks[10], (16,)); p["bn1_b"] = small(ks[11], (16,))
    p["bn2_g"] = 1.0 + small(ks[12], (16,)); p["bn2_b"] = small(ks[13], (16,))
    p["bn3_g"] = 1.0 + small(ks[14], (8,));  p["bn3_b"] = small(ks[15], (8,))
    return p


def _stack_convt_s2_weights(w):
    """ConvTranspose2d (k3,s2,p1,op1) weight (Cin,Cout,3,3) -> (4*Cout, 4*Cin).

    Rows are ordered phase-major (row = phase*Cout + cout) so all 4 sub-pixel
    phases run in a single MXU GEMM."""
    cin, cout = w.shape[0], w.shape[1]
    ws = jnp.zeros((4, cout, 4 * cin), jnp.float32)
    for p, (r, s) in enumerate(PHASES):
        for t, (a, b) in enumerate(SHIFTS4):
            kh, kw = r + 1 - 2 * a, s + 1 - 2 * b
            if 0 <= kh < 3 and 0 <= kw < 3:
                ws = ws.at[p, :, t * cin:(t + 1) * cin].set(w[:, :, kh, kw].T)
    return ws.reshape(4 * cout, 4 * cin)


def _stack_convt_s1_weights(w):
    """ConvTranspose2d (k3,s1,p0) weight (Cin,Cout,3,3) -> (Cout, 9*Cin)."""
    cin, cout = w.shape[0], w.shape[1]
    ws = jnp.zeros((cout, 9 * cin), jnp.float32)
    for t, (a, b) in enumerate(SHIFTS9):
        ws = ws.at[:, t * cin:(t + 1) * cin].set(w[:, :, 2 - a, 2 - b].T)
    return ws


def prepare_params(p):
    """PyTorch-layout params -> kernel-ready (pre-transposed / stacked, bf16)."""
    return {
        "lin_w_t": p["lin_w"].T.astype(jnp.bfloat16),          # (z, 6272)
        "lin_b": p["lin_b"],
        "c1_w": _stack_convt_s1_weights(p["conv1_w"]).astype(jnp.bfloat16),  # (16, 288)
        "c1_b": p["conv1_b"],                                                # (16,)
        "c2_w": _stack_convt_s2_weights(p["conv2_w"]).astype(jnp.bfloat16),  # (64, 64)
        "c2_b": jnp.tile(p["conv2_b"], 4),                                   # (64,)
        "c3_w": _stack_convt_s2_weights(p["conv3_w"]).astype(jnp.bfloat16),  # (32, 64)
        "c3_b": jnp.tile(p["conv3_b"], 4),                                   # (32,)
        "c4_w": _stack_convt_s2_weights(p["conv4_w"]).astype(jnp.bfloat16),  # (4, 32)
        "c4_b": jnp.tile(p["conv4_b"], 4),                                   # (4,)
        "bn1_g": p["bn1_g"], "bn1_b": p["bn1_b"],
        "bn2_g": p["bn2_g"], "bn2_b": p["bn2_b"],
        "bn3_g": p["bn3_g"], "bn3_b": p["bn3_b"],
    }


# ----------------------------------------------------------------------------
# Decoder forward (Pallas)
# ----------------------------------------------------------------------------
@jax.jit
def decoder_forward(kp, z):
    """z: (N, z_dims) -> reconstruction (N, 1, 128, 128)."""
    n = z.shape[0]

    # Linear + UnflattenManual -> (N, 32, 14, 14)
    h = linear_lane_dense(z, kp["lin_w_t"], kp["lin_b"])           # (N, 6272) bf16
    x = h.reshape(n, 32, 14, 14).transpose(1, 0, 2, 3)             # (32, N, 14, 14)

    # ConvT(32->16, s1, p0): stride-1 9-tap conv on the input zero-padded by 2
    # at the top/left; output grid is 16x16.
    x = jnp.pad(x, ((0, 0), (0, 0), (2, 0), (2, 0)))               # (32, N, 16, 16)
    y, ss, sq = conv_gemm(stack_taps(x, SHIFTS9), kp["c1_w"], kp["c1_b"])
    sc, sh = bn_scale_shift(ss, sq, kp["bn1_g"], kp["bn1_b"],
                            p=1, co=16, count=1 * n * 256)
    a = bn_lrelu_apply(y, sc, sh, p=1, co=16)                      # (16, N*256)
    x = a.reshape(16, n, 16, 16)

    # ConvT(16->16, s2, p1, op1): 16x16 -> 32x32 in ONE phase-stacked GEMM
    y, ss, sq = conv_gemm(stack_taps(x, SHIFTS4), kp["c2_w"], kp["c2_b"])
    sc, sh = bn_scale_shift(ss, sq, kp["bn2_g"], kp["bn2_b"],
                            p=4, co=16, count=4 * n * 256)
    a = bn_lrelu_apply(y, sc, sh, p=4, co=16)                      # (64, N*256)
    x = interleave_phases(a.reshape(4, 16, n * 256), n, 16, 16)    # (16, N, 32, 32)

    # ConvT(16->8, s2, p1, op1): 32x32 -> 64x64
    y, ss, sq = conv_gemm(stack_taps(x, SHIFTS4), kp["c3_w"], kp["c3_b"])
    sc, sh = bn_scale_shift(ss, sq, kp["bn3_g"], kp["bn3_b"],
                            p=4, co=8, count=4 * n * 1024)
    a = bn_lrelu_apply(y, sc, sh, p=4, co=8)                       # (32, N*1024)
    x = interleave_phases(a.reshape(4, 8, n * 1024), n, 32, 32)    # (8, N, 64, 64)

    # ConvT(8->1, s2, p1, op1) + fused Sigmoid: 64x64 -> 128x128.
    # Only the 4 true phase channels are written, in bf16.
    y = conv_gemm(stack_taps(x, SHIFTS4), kp["c4_w"], kp["c4_b"],
                  act="sigmoid", with_stats=False)                 # (4, N*4096)
    out = interleave_phases(y.reshape(4, 1, n * 4096), n, 64, 64)  # (1, N, 128, 128)
    return out.transpose(1, 0, 2, 3).astype(jnp.float32)           # (N, 1, 128, 128)


# ----------------------------------------------------------------------------
# Pure-JAX f32 reference (PyTorch semantics) for correctness checking
# ----------------------------------------------------------------------------
def _ref_conv_transpose2d(x, w, b, stride, pad, out_pad):
    n, ci, hh, ww = x.shape
    _, co, kh, kw = w.shape
    hd, wd = (hh - 1) * stride + 1, (ww - 1) * stride + 1
    xd = jnp.zeros((n, ci, hd, wd), x.dtype).at[:, :, ::stride, ::stride].set(x)
    pe = kh - 1 - pad
    xdp = jnp.pad(xd, ((0, 0), (0, 0), (pe, pe + out_pad), (pe, pe + out_pad)))
    ho = (hh - 1) * stride - 2 * pad + kh + out_pad
    wo = (ww - 1) * stride - 2 * pad + kw + out_pad
    y = jnp.zeros((n, co, ho, wo), jnp.float32) + b.reshape(1, co, 1, 1)
    for i in range(kh):
        for j in range(kw):
            y = y + jnp.einsum("ncij,cd->ndij",
                               xdp[:, :, i:i + ho, j:j + wo],
                               w[:, :, kh - 1 - i, kw - 1 - j],
                               precision=jax.lax.Precision.HIGHEST)
    return y


def _ref_bn_lrelu(x, g, b):
    mean = x.mean(axis=(0, 2, 3), keepdims=True)
    var = ((x - mean) ** 2).mean(axis=(0, 2, 3), keepdims=True)
    y = (x - mean) * jax.lax.rsqrt(var + BN_EPS)
    y = y * g.reshape(1, -1, 1, 1) + b.reshape(1, -1, 1, 1)
    return jnp.where(y > 0, y, LRELU_SLOPE * y)


@jax.jit
def decoder_reference(p, z):
    x = (jnp.dot(z, p["lin_w"].T, precision=jax.lax.Precision.HIGHEST)
         + p["lin_b"]).reshape(z.shape[0], 32, 14, 14)
    x = _ref_bn_lrelu(_ref_conv_transpose2d(x, p["conv1_w"], p["conv1_b"], 1, 0, 0),
                      p["bn1_g"], p["bn1_b"])
    x = _ref_bn_lrelu(_ref_conv_transpose2d(x, p["conv2_w"], p["conv2_b"], 2, 1, 1),
                      p["bn2_g"], p["bn2_b"])
    x = _ref_bn_lrelu(_ref_conv_transpose2d(x, p["conv3_w"], p["conv3_b"], 2, 1, 1),
                      p["bn3_g"], p["bn3_b"])
    x = _ref_conv_transpose2d(x, p["conv4_w"], p["conv4_b"], 2, 1, 1)
    return jax.nn.sigmoid(x)


if __name__ == "__main__":
    z_dims = 16
    batch = 2
    key = jax.random.PRNGKey(0)
    k_z, k_p = jax.random.split(key)

    # Decoder forward input is the latent code (N, z_dims); output spatial size
    # 128x128 is fixed by the module's hard-coded 6272 = 32*14*14 unflatten.
    z = jax.random.normal(k_z, (batch, z_dims), jnp.float32)
    params = init_params(k_p, z_dims)
    kparams = prepare_params(params)      # kernel layouts built once, outside jit

    out = decoder_forward(kparams, z)
    out = jax.block_until_ready(out)

    assert out.shape == (batch, 1, 128, 128)
    assert bool(jnp.all(jnp.isfinite(out)))

    # Correctness vs. a pure-JAX f32 reference of the PyTorch module
    # (kernel path uses bf16 GEMM operands / activations -> small tolerance).
    ref = decoder_reference(params, z)
    max_err = float(jnp.max(jnp.abs(out - ref)))
    assert max_err < 5e-2, f"max abs error vs reference: {max_err}"

    print("KERNEL_OK")
</pallas_src>

<mosaic_0001>
module attributes {stable_mosaic.version = 11 : i64} {
  func.func @kernel(%arg0: i32, %arg1: memref<2x16xbf16, #tpu.memory_space<vmem>>, %arg2: memref<16x896xbf16, #tpu.memory_space<vmem>>, %arg3: memref<1x896xf32, #tpu.memory_space<vmem>>, %arg4: memref<2x896xbf16, #tpu.memory_space<vmem>>) attributes {dimension_semantics = [#tpu.dimension_semantics<parallel>], iteration_bounds = array<i64: 7>, scalar_prefetch = 0 : i64, scratch_operands = 0 : i64, tpu.core_type = #tpu.core_type<tc>, window_params = [{pipeline_mode = #tpu.pipeline_mode<synchronous>, transform_indices = @transform_0, window_bounds = array<i64: 2, 16>}, {transform_indices = @transform_1, window_bounds = array<i64: 16, 896>}, {transform_indices = @transform_2, window_bounds = array<i64: 1, 896>}, {transform_indices = @transform_3, window_bounds = array<i64: 2, 896>}]} {
    %c0 = arith.constant 0 : index
    %c0_0 = arith.constant 0 : index
    %0 = vector.load %arg1[%c0, %c0_0] : memref<2x16xbf16, #tpu.memory_space<vmem>>, vector<2x16xbf16>
    %c0_1 = arith.constant 0 : index
    %c0_2 = arith.constant 0 : index
    %1 = vector.load %arg2[%c0_1, %c0_2] : memref<16x896xbf16, #tpu.memory_space<vmem>>, vector<16x896xbf16>
    %cst = arith.constant dense<0.000000e+00> : vector<2x896xf32>
    %2 = tpu.matmul %0, %1, %cst {dimension_numbers = #tpu.dot_dimension_numbers<[1], [0], [0], [1], [0, 0, 1, 1], [], []>} : vector<2x16xbf16>, vector<16x896xbf16>, vector<2x896xf32> -> vector<2x896xf32>
    %c0_3 = arith.constant 0 : index
    %c0_4 = arith.constant 0 : index
    %3 = vector.load %arg3[%c0_3, %c0_4] : memref<1x896xf32, #tpu.memory_space<vmem>>, vector<1x896xf32>
    %4 = vector.broadcast %3 : vector<1x896xf32> to vector<2x896xf32>
    %5 = arith.addf %2, %4 : vector<2x896xf32>
    %6 = arith.truncf %5 : vector<2x896xf32> to vector<2x896xbf16>
    %c0_5 = arith.constant 0 : index
    %c0_6 = arith.constant 0 : index
    %7 = vector.load %arg4[%c0_5, %c0_6] : memref<2x896xbf16, #tpu.memory_space<vmem>>, vector<2x896xbf16>
    tpu.vector_store %arg4[%c0_5, %c0_6], %6 {strides = array<i32>} : memref<2x896xbf16, #tpu.memory_space<vmem>>, vector<2x896xbf16>,
    return
  }
  func.func @transform_0(%arg0: i32) -> (i32, i32) {
    %c0_i32 = arith.constant 0 : i32
    %c0_i32_0 = arith.constant 0 : i32
    %c0_i32_1 = arith.constant 0 : i32
    return %c0_i32, %c0_i32_0 : i32, i32
  }
  func.func @transform_1(%arg0: i32) -> (i32, i32) {
    %c0_i32 = arith.constant 0 : i32
    %c0_i32_0 = arith.constant 0 : i32
    return %c0_i32, %arg0 : i32, i32
  }
  func.func @transform_2(%arg0: i32) -> (i32, i32) {
    %c0_i32 = arith.constant 0 : i32
    %c0_i32_0 = arith.constant 0 : i32
    return %c0_i32, %arg0 : i32, i32
  }
  func.func @transform_3(%arg0: i32) -> (i32, i32) {
    %c0_i32 = arith.constant 0 : i32
    %c0_i32_0 = arith.constant 0 : i32
    return %c0_i32, %arg0 : i32, i32
  }
}

module attributes {stable_mosaic.version = 11 : i64} {
  func.func @kernel(%arg0: i32, %arg1: memref<288x256xbf16, #tpu.memory_space<vmem>>, %arg2: memref<16x288xbf16, #tpu.memory_space<vmem>>, %arg3: memref<16x1xf32, #tpu.memory_space<vmem>>, %arg4: memref<16x256xbf16, #tpu.memory_space<vmem>>, %arg5: memref<1x16x1xf32, #tpu.memory_space<vmem>>, %arg6: memref<1x16x1xf32, #tpu.memory_space<vmem>>) attributes {dimension_semantics = [#tpu.dimension_semantics<parallel>], iteration_bounds = array<i64: 2>, scalar_prefetch = 0 : i64, scratch_operands = 0 : i64, tpu.core_type = #tpu.core_type<tc>, window_params = [{transform_indices = @transform_0, window_bounds = array<i64: 288, 256>}, {pipeline_mode = #tpu.pipeline_mode<synchronous>, transform_indices = @transform_1, window_bounds = array<i64: 16, 288>}, {pipeline_mode = #tpu.pipeline_mode<synchronous>, transform_indices = @transform_2, window_bounds = array<i64: 16, 1>}, {transform_indices = @transform_3, window_bounds = array<i64: 16, 256>}, {transform_indices = @transform_4, window_bounds = array<i64: 1, 16, 1>}, {transform_indices = @transform_5, window_bounds = array<i64: 1, 16, 1>}]} {
    %c0 = arith.constant 0 : index
    %c0_0 = arith.constant 0 : index
    %0 = vector.load %arg2[%c0, %c0_0] : memref<16x288xbf16, #tpu.memory_space<vmem>>, vector<16x288xbf16>
    %c0_1 = arith.constant 0 : index
    %c0_2 = arith.constant 0 : index
    %1 = vector.load %arg1[%c0_1, %c0_2] : memref<288x256xbf16, #tpu.memory_space<vmem>>, vector<288x256xbf16>
    %cst = arith.constant dense<0.000000e+00> : vector<16x256xf32>
    %2 = tpu.matmul %0, %1, %cst {dimension_numbers = #tpu.dot_dimension_numbers<[1], [0], [0], [1], [0, 0, 1, 1], [], []>} : vector<16x288xbf16>, vector<288x256xbf16>, vector<16x256xf32> -> vector<16x256xf32>
    %c0_3 = arith.constant 0 : index
    %c0_4 = arith.constant 0 : index
    %3 = vector.load %arg3[%c0_3, %c0_4] : memref<16x1xf32, #tpu.memory_space<vmem>>, vector<16x1xf32>
    %4 = vector.broadcast %3 : vector<16x1xf32> to vector<16x256xf32>
    %5 = arith.addf %2, %4 : vector<16x256xf32>
    %6 = arith.truncf %5 : vector<16x256xf32> to vector<16x256xbf16>
    %c0_5 = arith.constant 0 : index
    %c0_6 = arith.constant 0 : index
    %7 = vector.load %arg4[%c0_5, %c0_6] : memref<16x256xbf16, #tpu.memory_space<vmem>>, vector<16x256xbf16>
    tpu.vector_store %arg4[%c0_5, %c0_6], %6 {strides = array<i32>} : memref<16x256xbf16, #tpu.memory_space<vmem>>, vector<16x256xbf16>,
    %cst_7 = arith.constant dense<0.000000e+00> : vector<16xf32>
    %8 = vector.multi_reduction <add>, %5, %cst_7 [1] : vector<16x256xf32> to vector<16xf32>
    %9 = vector.shape_cast %8 : vector<16xf32> to vector<16x1xf32>
    %c0_8 = arith.constant 0 : index
    %c0_9 = arith.constant 0 : index
    %c0_10 = arith.constant 0 : index
    %10 = vector.load %arg5[%c0_8, %c0_9, %c0_10] : memref<1x16x1xf32, #tpu.memory_space<vmem>>, vector<1x16x1xf32>
    %11 = vector.shape_cast %10 : vector<1x16x1xf32> to vector<16x1xf32>
    %12 = vector.shape_cast %9 : vector<16x1xf32> to vector<1x16x1xf32>
    tpu.vector_store %arg5[%c0_8, %c0_9, %c0_10], %12 {strides = array<i32>} : memref<1x16x1xf32, #tpu.memory_space<vmem>>, vector<1x16x1xf32>,
    %13 = arith.mulf %5, %5 : vector<16x256xf32>
    %cst_11 = arith.constant dense<0.000000e+00> : vector<16xf32>
    %14 = vector.multi_reduction <add>, %13, %cst_11 [1] : vector<16x256xf32> to vector<16xf32>
    %15 = vector.shape_cast %14 : vector<16xf32> to vector<16x1xf32>
    %c0_12 = arith.constant 0 : index
    %c0_13 = arith.constant 0 : index
    %c0_14 = arith.constant 0 : index
    %16 = vector.load %arg6[%c0_12, %c0_13, %c0_14] : memref<1x16x1xf32, #tpu.memory_space<vmem>>, vector<1x16x1xf32>
    %17 = vector.shape_cast %16 : vector<1x16x1xf32> to vector<16x1xf32>
    %18 = vector.shape_cast %15 : vector<16x1xf32> to vector<1x16x1xf32>
    tpu.vector_store %arg6[%c0_12, %c0_13, %c0_14], %18 {strides = array<i32>} : memref<1x16x1xf32, #tpu.memory_space<vmem>>, vector<1x16x1xf32>,
    return
  }
  func.func @transform_0(%arg0: i32) -> (i32, i32) {
    %c0_i32 = arith.constant 0 : i32
    %c0_i32_0 = arith.constant 0 : i32
    return %c0_i32, %arg0 : i32, i32
  }
  func.func @transform_1(%arg0: i32) -> (i32, i32) {
    %c0_i32 = arith.constant 0 : i32
    %c0_i32_0 = arith.constant 0 : i32
    %c0_i32_1 = arith.constant 0 : i32
    return %c0_i32, %c0_i32_0 : i32, i32
  }
  func.func @transform_2(%arg0: i32) -> (i32, i32) {
    %c0_i32 = arith.constant 0 : i32
    %c0_i32_0 = arith.constant 0 : i32
    %c0_i32_1 = arith.constant 0 : i32
    return %c0_i32, %c0_i32_0 : i32, i32
  }
  func.func @transform_3(%arg0: i32) -> (i32, i32) {
    %c0_i32 = arith.constant 0 : i32
    %c0_i32_0 = arith.constant 0 : i32
    return %c0_i32, %arg0 : i32, i32
  }
  func.func @transform_4(%arg0: i32) -> (i32, i32, i32) {
    %c0_i32 = arith.constant 0 : i32
    %c0_i32_0 = arith.constant 0 : i32
    %c0_i32_1 = arith.constant 0 : i32
    return %arg0, %c0_i32, %c0_i32_0 : i32, i32, i32
  }
  func.func @transform_5(%arg0: i32) -> (i32, i32, i32) {
    %c0_i32 = arith.constant 0 : i32
    %c0_i32_0 = arith.constant 0 : i32
    %c0_i32_1 = arith.constant 0 : i32
    return %arg0, %c0_i32, %c0_i32_0 : i32, i32, i32
  }
}

module attributes {stable_mosaic.version = 11 : i64} {
  func.func @kernel(%arg0: i32, %arg1: memref<64x256xbf16, #tpu.memory_space<vmem>>, %arg2: memref<64x64xbf16, #tpu.memory_space<vmem>>, %arg3: memref<64x1xf32, #tpu.memory_space<vmem>>, %arg4: memref<64x256xbf16, #tpu.memory_space<vmem>>, %arg5: memref<1x64x1xf32, #tpu.memory_space<vmem>>, %arg6: memref<1x64x1xf32, #tpu.memory_space<vmem>>) attributes {dimension_semantics = [#tpu.dimension_semantics<parallel>], iteration_bounds = array<i64: 2>, scalar_prefetch = 0 : i64, scratch_operands = 0 : i64, tpu.core_type = #tpu.core_type<tc>, window_params = [{transform_indices = @transform_0, window_bounds = array<i64: 64, 256>}, {pipeline_mode = #tpu.pipeline_mode<synchronous>, transform_indices = @transform_1, window_bounds = array<i64: 64, 64>}, {pipeline_mode = #tpu.pipeline_mode<synchronous>, transform_indices = @transform_2, window_bounds = array<i64: 64, 1>}, {transform_indices = @transform_3, window_bounds = array<i64: 64, 256>}, {transform_indices = @transform_4, window_bounds = array<i64: 1, 64, 1>}, {transform_indices = @transform_5, window_bounds = array<i64: 1, 64, 1>}]} {
    %c0 = arith.constant 0 : index
    %c0_0 = arith.constant 0 : index
    %0 = vector.load %arg2[%c0, %c0_0] : memref<64x64xbf16, #tpu.memory_space<vmem>>, vector<64x64xbf16>
    %c0_1 = arith.constant 0 : index
    %c0_2 = arith.constant 0 : index
    %1 = vector.load %arg1[%c0_1, %c0_2] : memref<64x256xbf16, #tpu.memory_space<vmem>>, vector<64x256xbf16>
    %cst = arith.constant dense<0.000000e+00> : vector<64x256xf32>
    %2 = tpu.matmul %0, %1, %cst {dimension_numbers = #tpu.dot_dimension_numbers<[1], [0], [0], [1], [0, 0, 1, 1], [], []>} : vector<64x64xbf16>, vector<64x256xbf16>, vector<64x256xf32> -> vector<64x256xf32>
    %c0_3 = arith.constant 0 : index
    %c0_4 = arith.constant 0 : index
    %3 = vector.load %arg3[%c0_3, %c0_4] : memref<64x1xf32, #tpu.memory_space<vmem>>, vector<64x1xf32>
    %4 = vector.broadcast %3 : vector<64x1xf32> to vector<64x256xf32>
    %5 = arith.addf %2, %4 : vector<64x256xf32>
    %6 = arith.truncf %5 : vector<64x256xf32> to vector<64x256xbf16>
    %c0_5 = arith.constant 0 : index
    %c0_6 = arith.constant 0 : index
    %7 = vector.load %arg4[%c0_5, %c0_6] : memref<64x256xbf16, #tpu.memory_space<vmem>>, vector<64x256xbf16>
    tpu.vector_store %arg4[%c0_5, %c0_6], %6 {strides = array<i32>} : memref<64x256xbf16, #tpu.memory_space<vmem>>, vector<64x256xbf16>,
    %cst_7 = arith.constant dense<0.000000e+00> : vector<64xf32>
    %8 = vector.multi_reduction <add>, %5, %cst_7 [1] : vector<64x256xf32> to vector<64xf32>
    %9 = vector.shape_cast %8 : vector<64xf32> to vector<64x1xf32>
    %c0_8 = arith.constant 0 : index
    %c0_9 = arith.constant 0 : index
    %c0_10 = arith.constant 0 : index
    %10 = vector.load %arg5[%c0_8, %c0_9, %c0_10] : memref<1x64x1xf32, #tpu.memory_space<vmem>>, vector<1x64x1xf32>
    %11 = vector.shape_cast %10 : vector<1x64x1xf32> to vector<64x1xf32>
    %12 = vector.shape_cast %9 : vector<64x1xf32> to vector<1x64x1xf32>
    tpu.vector_store %arg5[%c0_8, %c0_9, %c0_10], %12 {strides = array<i32>} : memref<1x64x1xf32, #tpu.memory_space<vmem>>, vector<1x64x1xf32>,
    %13 = arith.mulf %5, %5 : vector<64x256xf32>
    %cst_11 = arith.constant dense<0.000000e+00> : vector<64xf32>
    %14 = vector.multi_reduction <add>, %13, %cst_11 [1] : vector<64x256xf32> to vector<64xf32>
    %15 = vector.shape_cast %14 : vector<64xf32> to vector<64x1xf32>
    %c0_12 = arith.constant 0 : index
    %c0_13 = arith.constant 0 : index
    %c0_14 = arith.constant 0 : index
    %16 = vector.load %arg6[%c0_12, %c0_13, %c0_14] : memref<1x64x1xf32, #tpu.memory_space<vmem>>, vector<1x64x1xf32>
    %17 = vector.shape_cast %16 : vector<1x64x1xf32> to vector<64x1xf32>
    %18 = vector.shape_cast %15 : vector<64x1xf32> to vector<1x64x1xf32>
    tpu.vector_store %arg6[%c0_12, %c0_13, %c0_14], %18 {strides = array<i32>} : memref<1x64x1xf32, #tpu.memory_space<vmem>>, vector<1x64x1xf32>,
    return
  }
  func.func @transform_0(%arg0: i32) -> (i32, i32) {
    %c0_i32 = arith.constant 0 : i32
    %c0_i32_0 = arith.constant 0 : i32
    return %c0_i32, %arg0 : i32, i32
  }
  func.func @transform_1(%arg0: i32) -> (i32, i32) {
    %c0_i32 = arith.constant 0 : i32
    %c0_i32_0 = arith.constant 0 : i32
    %c0_i32_1 = arith.constant 0 : i32
    return %c0_i32, %c0_i32_0 : i32, i32
  }
  func.func @transform_2(%arg0: i32) -> (i32, i32) {
    %c0_i32 = arith.constant 0 : i32
    %c0_i32_0 = arith.constant 0 : i32
    %c0_i32_1 = arith.constant 0 : i32
    return %c0_i32, %c0_i32_0 : i32, i32
  }
  func.func @transform_3(%arg0: i32) -> (i32, i32) {
    %c0_i32 = arith.constant 0 : i32
    %c0_i32_0 = arith.constant 0 : i32
    return %c0_i32, %arg0 : i32, i32
  }
  func.func @transform_4(%arg0: i32) -> (i32, i32, i32) {
    %c0_i32 = arith.constant 0 : i32
    %c0_i32_0 = arith.constant 0 : i32
    %c0_i32_1 = arith.constant 0 : i32
    return %arg0, %c0_i32, %c0_i32_0 : i32, i32, i32
  }
  func.func @transform_5(%arg0: i32) -> (i32, i32, i32) {
    %c0_i32 = arith.constant 0 : i32
    %c0_i32_0 = arith.constant 0 : i32
    %c0_i32_1 = arith.constant 0 : i32
    return %arg0, %c0_i32, %c0_i32_0 : i32, i32, i32
  }
}

module attributes {stable_mosaic.version = 11 : i64} {
  func.func @kernel(%arg0: i32, %arg1: memref<64x1024xbf16, #tpu.memory_space<vmem>>, %arg2: memref<32x64xbf16, #tpu.memory_space<vmem>>, %arg3: memref<32x1xf32, #tpu.memory_space<vmem>>, %arg4: memref<32x1024xbf16, #tpu.memory_space<vmem>>, %arg5: memref<1x32x1xf32, #tpu.memory_space<vmem>>, %arg6: memref<1x32x1xf32, #tpu.memory_space<vmem>>) attributes {dimension_semantics = [#tpu.dimension_semantics<parallel>], iteration_bounds = array<i64: 2>, scalar_prefetch = 0 : i64, scratch_operands = 0 : i64, tpu.core_type = #tpu.core_type<tc>, window_params = [{transform_indices = @transform_0, window_bounds = array<i64: 64, 1024>}, {pipeline_mode = #tpu.pipeline_mode<synchronous>, transform_indices = @transform_1, window_bounds = array<i64: 32, 64>}, {pipeline_mode = #tpu.pipeline_mode<synchronous>, transform_indices = @transform_2, window_bounds = array<i64: 32, 1>}, {transform_indices = @transform_3, window_bounds = array<i64: 32, 1024>}, {transform_indices = @transform_4, window_bounds = array<i64: 1, 32, 1>}, {transform_indices = @transform_5, window_bounds = array<i64: 1, 32, 1>}]} {
    %c0 = arith.constant 0 : index
    %c0_0 = arith.constant 0 : index
    %0 = vector.load %arg2[%c0, %c0_0] : memref<32x64xbf16, #tpu.memory_space<vmem>>, vector<32x64xbf16>
    %c0_1 = arith.constant 0 : index
    %c0_2 = arith.constant 0 : index
    %1 = vector.load %arg1[%c0_1, %c0_2] : memref<64x1024xbf16, #tpu.memory_space<vmem>>, vector<64x1024xbf16>
    %cst = arith.constant dense<0.000000e+00> : vector<32x1024xf32>
    %2 = tpu.matmul %0, %1, %cst {dimension_numbers = #tpu.dot_dimension_numbers<[1], [0], [0], [1], [0, 0, 1, 1], [], []>} : vector<32x64xbf16>, vector<64x1024xbf16>, vector<32x1024xf32> -> vector<32x1024xf32>
    %c0_3 = arith.constant 0 : index
    %c0_4 = arith.constant 0 : index
    %3 = vector.load %arg3[%c0_3, %c0_4] : memref<32x1xf32, #tpu.memory_space<vmem>>, vector<32x1xf32>
    %4 = vector.broadcast %3 : vector<32x1xf32> to vector<32x1024xf32>
    %5 = arith.addf %2, %4 : vector<32x1024xf32>
    %6 = arith.truncf %5 : vector<32x1024xf32> to vector<32x1024xbf16>
    %c0_5 = arith.constant 0 : index
    %c0_6 = arith.constant 0 : index
    %7 = vector.load %arg4[%c0_5, %c0_6] : memref<32x1024xbf16, #tpu.memory_space<vmem>>, vector<32x1024xbf16>
    tpu.vector_store %arg4[%c0_5, %c0_6], %6 {strides = array<i32>} : memref<32x1024xbf16, #tpu.memory_space<vmem>>, vector<32x1024xbf16>,
    %cst_7 = arith.constant dense<0.000000e+00> : vector<32xf32>
    %8 = vector.multi_reduction <add>, %5, %cst_7 [1] : vector<32x1024xf32> to vector<32xf32>
    %9 = vector.shape_cast %8 : vector<32xf32> to vector<32x1xf32>
    %c0_8 = arith.constant 0 : index
    %c0_9 = arith.constant 0 : index
    %c0_10 = arith.constant 0 : index
    %10 = vector.load %arg5[%c0_8, %c0_9, %c0_10] : memref<1x32x1xf32, #tpu.memory_space<vmem>>, vector<1x32x1xf32>
    %11 = vector.shape_cast %10 : vector<1x32x1xf32> to vector<32x1xf32>
    %12 = vector.shape_cast %9 : vector<32x1xf32> to vector<1x32x1xf32>
    tpu.vector_store %arg5[%c0_8, %c0_9, %c0_10], %12 {strides = array<i32>} : memref<1x32x1xf32, #tpu.memory_space<vmem>>, vector<1x32x1xf32>,
    %13 = arith.mulf %5, %5 : vector<32x1024xf32>
    %cst_11 = arith.constant dense<0.000000e+00> : vector<32xf32>
    %14 = vector.multi_reduction <add>, %13, %cst_11 [1] : vector<32x1024xf32> to vector<32xf32>
    %15 = vector.shape_cast %14 : vector<32xf32> to vector<32x1xf32>
    %c0_12 = arith.constant 0 : index
    %c0_13 = arith.constant 0 : index
    %c0_14 = arith.constant 0 : index
    %16 = vector.load %arg6[%c0_12, %c0_13, %c0_14] : memref<1x32x1xf32, #tpu.memory_space<vmem>>, vector<1x32x1xf32>
    %17 = vector.shape_cast %16 : vector<1x32x1xf32> to vector<32x1xf32>
    %18 = vector.shape_cast %15 : vector<32x1xf32> to vector<1x32x1xf32>
    tpu.vector_store %arg6[%c0_12, %c0_13, %c0_14], %18 {strides = array<i32>} : memref<1x32x1xf32, #tpu.memory_space<vmem>>, vector<1x32x1xf32>,
    return
  }
  func.func @transform_0(%arg0: i32) -> (i32, i32) {
    %c0_i32 = arith.constant 0 : i32
    %c0_i32_0 = arith.constant 0 : i32
    return %c0_i32, %arg0 : i32, i32
  }
  func.func @transform_1(%arg0: i32) -> (i32, i32) {
    %c0_i32 = arith.constant 0 : i32
    %c0_i32_0 = arith.constant 0 : i32
    %c0_i32_1 = arith.constant 0 : i32
    return %c0_i32, %c0_i32_0 : i32, i32
  }
  func.func @transform_2(%arg0: i32) -> (i32, i32) {
    %c0_i32 = arith.constant 0 : i32
    %c0_i32_0 = arith.constant 0 : i32
    %c0_i32_1 = arith.constant 0 : i32
    return %c0_i32, %c0_i32_0 : i32, i32
  }
  func.func @transform_3(%arg0: i32) -> (i32, i32) {
    %c0_i32 = arith.constant 0 : i32
    %c0_i32_0 = arith.constant 0 : i32
    return %c0_i32, %arg0 : i32, i32
  }
  func.func @transform_4(%arg0: i32) -> (i32, i32, i32) {
    %c0_i32 = arith.constant 0 : i32
    %c0_i32_0 = arith.constant 0 : i32
    %c0_i32_1 = arith.constant 0 : i32
    return %arg0, %c0_i32, %c0_i32_0 : i32, i32, i32
  }
  func.func @transform_5(%arg0: i32) -> (i32, i32, i32) {
    %c0_i32 = arith.constant 0 : i32
    %c0_i32_0 = arith.constant 0 : i32
    %c0_i32_1 = arith.constant 0 : i32
    return %arg0, %c0_i32, %c0_i32_0 : i32, i32, i32
  }
}

module attributes {stable_mosaic.version = 11 : i64} {
  func.func @kernel(%arg0: i32, %arg1: memref<32x4096xbf16, #tpu.memory_space<vmem>>, %arg2: memref<4x32xbf16, #tpu.memory_space<vmem>>, %arg3: memref<4x1xf32, #tpu.memory_space<vmem>>, %arg4: memref<4x4096xbf16, #tpu.memory_space<vmem>>) attributes {dimension_semantics = [#tpu.dimension_semantics<parallel>], iteration_bounds = array<i64: 2>, scalar_prefetch = 0 : i64, scratch_operands = 0 : i64, tpu.core_type = #tpu.core_type<tc>, window_params = [{transform_indices = @transform_0, window_bounds = array<i64: 32, 4096>}, {pipeline_mode = #tpu.pipeline_mode<synchronous>, transform_indices = @transform_1, window_bounds = array<i64: 4, 32>}, {pipeline_mode = #tpu.pipeline_mode<synchronous>, transform_indices = @transform_2, window_bounds = array<i64: 4, 1>}, {transform_indices = @transform_3, window_bounds = array<i64: 4, 4096>}]} {
    %c0 = arith.constant 0 : index
    %c0_0 = arith.constant 0 : index
    %0 = vector.load %arg2[%c0, %c0_0] : memref<4x32xbf16, #tpu.memory_space<vmem>>, vector<4x32xbf16>
    %c0_1 = arith.constant 0 : index
    %c0_2 = arith.constant 0 : index
    %1 = vector.load %arg1[%c0_1, %c0_2] : memref<32x4096xbf16, #tpu.memory_space<vmem>>, vector<32x4096xbf16>
    %cst = arith.constant dense<0.000000e+00> : vector<4x4096xf32>
    %2 = tpu.matmul %0, %1, %cst {dimension_numbers = #tpu.dot_dimension_numbers<[1], [0], [0], [1], [0, 0, 1, 1], [], []>} : vector<4x32xbf16>, vector<32x4096xbf16>, vector<4x4096xf32> -> vector<4x4096xf32>
    %c0_3 = arith.constant 0 : index
    %c0_4 = arith.constant 0 : index
    %3 = vector.load %arg3[%c0_3, %c0_4] : memref<4x1xf32, #tpu.memory_space<vmem>>, vector<4x1xf32>
    %4 = vector.broadcast %3 : vector<4x1xf32> to vector<4x4096xf32>
    %5 = arith.addf %2, %4 : vector<4x4096xf32>
    %cst_5 = arith.constant 0.000000e+00 : f32
    %6 = vector.broadcast %cst_5 : f32 to vector<4x4096xf32>
    %7 = arith.subf %6, %5 : vector<4x4096xf32>
    %8 = math.exp %7 : vector<4x4096xf32>
    %cst_6 = arith.constant 1.000000e+00 : f32
    %9 = vector.broadcast %cst_6 : f32 to vector<4x4096xf32>
    %10 = arith.addf %9, %8 : vector<4x4096xf32>
    %cst_7 = arith.constant 1.000000e+00 : f32
    %11 = vector.broadcast %cst_7 : f32 to vector<4x4096xf32>
    %12 = arith.divf %11, %10 : vector<4x4096xf32>
    %13 = arith.truncf %12 : vector<4x4096xf32> to vector<4x4096xbf16>
    %c0_8 = arith.constant 0 : index
    %c0_9 = arith.constant 0 : index
    %14 = vector.load %arg4[%c0_8, %c0_9] : memref<4x4096xbf16, #tpu.memory_space<vmem>>, vector<4x4096xbf16>
    tpu.vector_store %arg4[%c0_8, %c0_9], %13 {strides = array<i32>} : memref<4x4096xbf16, #tpu.memory_space<vmem>>, vector<4x4096xbf16>,
    return
  }
  func.func @transform_0(%arg0: i32) -> (i32, i32) {
    %c0_i32 = arith.constant 0 : i32
    %c0_i32_0 = arith.constant 0 : i32
    return %c0_i32, %arg0 : i32, i32
  }
  func.func @transform_1(%arg0: i32) -> (i32, i32) {
    %c0_i32 = arith.constant 0 : i32
    %c0_i32_0 = arith.constant 0 : i32
    %c0_i32_1 = arith.constant 0 : i32
    return %c0_i32, %c0_i32_0 : i32, i32
  }
  func.func @transform_2(%arg0: i32) -> (i32, i32) {
    %c0_i32 = arith.constant 0 : i32
    %c0_i32_0 = arith.constant 0 : i32
    %c0_i32_1 = arith.constant 0 : i32
    return %c0_i32, %c0_i32_0 : i32, i32
  }
  func.func @transform_3(%arg0: i32) -> (i32, i32) {
    %c0_i32 = arith.constant 0 : i32
    %c0_i32_0 = arith.constant 0 : i32
    return %c0_i32, %arg0 : i32, i32
  }
}

</mosaic_0001>

<llo_original>
// kernel: decoder_forward.5
$region0: #{decoder_forward.5}
  #allocation0 [shape = 'u32[]', space=smem, size = 0x4, offset = 0x4, fixed_abs, tag = 'smem constant byte address 0x4 - core index']
  #allocation1 [shape = 'u32[72,128]{1,0:T(1,128)}', space=vmem, size = 0x9000, scoped, tag = 'internal scratch']
  %s0 = inlined_call_operand.vmem [shape: bf16[2,16], index: 0, kind: input, shape index: {}]
  %s1 = inlined_call_operand.hbm [shape: bf16[16,6272], index: 1, kind: input, shape index: {}]
  %s2 = inlined_call_operand.vmem [shape: f32[1,6272], index: 2, kind: input, shape index: {}]
  %s3 = inlined_call_operand.vmem [shape: bf16[2,6272], index: 3, kind: output, shape index: {}]
  %s4 = sld [smem:[#allocation0]]
  $region49: #{decoder_forward.5} parent=0
    _
  %s6 = ssub.s32 1, %s4
  %s7 = scalar_select 0, %s6, %s4
  $region1: #{decoder_forward.5} parent=0
    #allocation2 [shape = 'u8[57344]{0}', space=vmem, size = 0xe000, scoped, tag = 'input window, operand 1']
    #allocation3 [shape = 's32[2]{0}', space=sflag, size = 0x8, scoped, tag = 'scoped memory for decoder_forward.5']
    %8 = vsyncpa [#allocation3], 0
    %s9 = scalar_lea.sflag [#allocation3], 1
    %10 = vsyncpa %s9, 0
    loop: start=0, step=1, limit=9
    $region2: #{decoder_forward.5} parent=1 // loop_pre_header
      _
    $region3: #{decoder_forward.5} parent=1 // loop_header
      %s12 = sphi 0, %s16
      %p13 = scmp.ge.s32.totalorder %s12, 9
      %s20 = sphi 0, %s20
      %s22 = sphi 0, %s20
      %s23 = sphi 0, %s22
      %s37 = sphi 0, %s23
      %s43 = sphi 0, %s45
      %s46 = sphi 0, %s43
      %s47 = sphi 0, %s46
      %s63 = sphi 0, %s47
      %s69 = sphi 0, %s71
      %s72 = sphi 0, %s69
      %s73 = sphi 0, %s72
      %s89 = sphi 0, %s73
      %s95 = sphi 0, %s97
      %s98 = sphi 0, %s95
      %s99 = sphi 0, %s98
      %s115 = sphi 0, %s99
    $region4: #{decoder_forward.5} parent=1 // loop_header_branch
      %15 = sbr.rel (%p13) target = $region8
    $region5: #{decoder_forward.5} parent=1 // loop_body
      %s17 = ssub.s32 %s12, 1
      %s18 = ssub.s32 %s12, 2
      %s19 = sadd.s32 %s12, 1
      %s21 = sadd.s32 %s20, 1
      %p24 = scmp.eq.s32.totalorder %s12, 6
      %p25 = scmp.ne.s32.totalorder %s20, %s22
      %p26 = scmp.eq.s32.totalorder %s12, 0
      %p27 = por %p25, %p26
      %p28 = scmp.ne.s32.totalorder %s20, %s22
      %p29 = scmp.eq.s32.totalorder %s17, 6
      %p30 = por %p28, %p29
      %p31 = scmp.ne.s32.totalorder %s22, %s23
      %p32 = scmp.eq.s32.totalorder %s17, 0
      %p33 = por %p31, %p32
      %p34 = scmp.ne.s32.totalorder %s22, %s23
      %p35 = scmp.eq.s32.totalorder %s18, 6
      %p36 = por %p34, %p35
      %p38 = scmp.ne.s32.totalorder %s23, %s37
      %p39 = scmp.eq.s32.totalorder %s18, 0
      %p40 = por %p38, %p39
      %s41 = ssub.s32 %s12, %s19
      %p42 = scmp.eq.s32.totalorder %s41, 0
      %s44 = sadd.s32 %s43, 1
      %s45 = scalar_select %p42, %s43, %s44
      %p48 = pneg %p42
      %p49 = scmp.eq.s32.totalorder %s12, 6
      %p50 = por %p48, %p49
      %p51 = scmp.ne.s32.totalorder %s43, %s46
      %p52 = scmp.eq.s32.totalorder %s12, 0
      %p53 = por %p51, %p52
      %p54 = scmp.ne.s32.totalorder %s43, %s46
      %p55 = scmp.eq.s32.totalorder %s17, 6
      %p56 = por %p54, %p55
      %p57 = scmp.ne.s32.totalorder %s46, %s47
      %p58 = scmp.eq.s32.totalorder %s17, 0
      %p59 = por %p57, %p58
      %p60 = scmp.ne.s32.totalorder %s46, %s47
      %p61 = scmp.eq.s32.totalorder %s18, 6
      %p62 = por %p60, %p61
      %p64 = scmp.ne.s32.totalorder %s47, %s63
      %p65 = scmp.eq.s32.totalorder %s18, 0
      %p66 = por %p64, %p65
      %s67 = ssub.s32 %s12, %s19
      %p68 = scmp.eq.s32.totalorder %s67, 0
      %s70 = sadd.s32 %s69, 1
      %s71 = scalar_select %p68, %s69, %s70
      %p74 = pneg %p68
      %p75 = scmp.eq.s32.totalorder %s12, 6
      %p76 = por %p74, %p75
      %p77 = scmp.ne.s32.totalorder %s69, %s72
      %p78 = scmp.eq.s32.totalorder %s12, 0
      %p79 = por %p77, %p78
      %p80 = scmp.ne.s32.totalorder %s69, %s72
      %p81 = scmp.eq.s32.totalorder %s17, 6
      %p82 = por %p80, %p81
      %p83 = scmp.ne.s32.totalorder %s72, %s73
      %p84 = scmp.eq.s32.totalorder %s17, 0
      %p85 = por %p83, %p84
      %p86 = scmp.ne.s32.totalorder %s72, %s73
      %p87 = scmp.eq.s32.totalorder %s18, 6
      %p88 = por %p86, %p87
      %p90 = scmp.ne.s32.totalorder %s73, %s89
      %p91 = scmp.eq.s32.totalorder %s18, 0
      %p92 = por %p90, %p91
      %s93 = ssub.s32 %s12, %s19
      %p94 = scmp.eq.s32.totalorder %s93, 0
      %s96 = sadd.s32 %s95, 1
      %s97 = scalar_select %p94, %s95, %s96
      %p100 = pneg %p94
      %p101 = scmp.eq.s32.totalorder %s12, 6
      %p102 = por %p100, %p101
      %p103 = scmp.ne.s32.totalorder %s95, %s98
      %p104 = scmp.eq.s32.totalorder %s12, 0
      %p105 = por %p103, %p104
      %p106 = scmp.ne.s32.totalorder %s95, %s98
      %p107 = scmp.eq.s32.totalorder %s17, 6
      %p108 = por %p106, %p107
      %p109 = scmp.ne.s32.totalorder %s98, %s99
      %p110 = scmp.eq.s32.totalorder %s17, 0
      %p111 = por %p109, %p110
      %p112 = scmp.ne.s32.totalorder %s98, %s99
      %p113 = scmp.eq.s32.totalorder %s18, 6
      %p114 = por %p112, %p113
      %p116 = scmp.ne.s32.totalorder %s99, %s115
      %p117 = scmp.eq.s32.totalorder %s18, 0
      %p118 = por %p116, %p117
      %p119 = scmp.le.s32.totalorder 1, %s12
      %p120 = scmp.lt.s32.totalorder %s12, 8
      %p121 = pnand %p119, %p120
      %p122 = pneg %p121
      // Predicated region
      $region9: #{decoder_forward.5} parent=5 // pred_check
        _
      $region10: #{decoder_forward.5} parent=5 // pred_check_branch
        %124 = sbr.rel (%p121) target = $region12
      $region11: #{decoder_forward.5} parent=5 // pred_region
        %s125 = ssub.s32 %s12, 1
        // Predicated region
        $region13: #{decoder_forward.5} parent=11 // pred_check
          %p126 = pneg %p33
        $region14: #{decoder_forward.5} parent=11 // pred_check_branch
          %128 = sbr.rel (%p126) target = $region16
        $region15: #{decoder_forward.5} parent=11 // pred_region
          _
        $region16: #{decoder_forward.5} parent=11 // pred_fallthru
          _
      $region12: #{decoder_forward.5} parent=5 // pred_fallthru
        _
      %p129 = scmp.lt.s32.totalorder %s12, 7
      // Predicated region
      $region17: #{decoder_forward.5} parent=5 // pred_check
        %p130 = pneg %p129
      $region18: #{decoder_forward.5} parent=5 // pred_check_branch
        %132 = sbr.rel (%p130) target = $region20
      $region19: #{decoder_forward.5} parent=5 // pred_region
        // Predicated region
        $region21: #{decoder_forward.5} parent=19 // pred_check
          %p133 = pneg %p53
        $region22: #{decoder_forward.5} parent=19 // pred_check_branch
          %135 = sbr.rel (%p133) target = $region24
        $region23: #{decoder_forward.5} parent=19 // pred_region
          %s136 = sand.u32 %s43, 1
          %s137 = scalar_lea.sflag [#allocation3], %s136
          %s138 = sand.u32 %s43, 1
          %s139 = smul.addr %s138, 56
          %s140 = scalar_lea.vmem [#allocation2], %s139
          %s141 = smul.u32 7, %s12
          %143 = vsyncadd %s137, 0
          %s144 = smul.addr %s141, 4
          %s145 = scalar_lea.hbm %s1, %s144
          %s146 = sshll.u32 %s145, 4
          %s147 = int_to_ptr.hbm [resolvable:$true] %s146
          %s148 = sshll.u32 %s140, 4
          %s149 = int_to_ptr.vmem [resolvable:$true] %s148
          %154 = dma.hbm_to_vmem [thread:$0]  %s147, 896, %s149, %s137, 3136, 448, 28
        $region24: #{decoder_forward.5} parent=19 // pred_fallthru
          _
        // Predicated region
        $region25: #{decoder_forward.5} parent=19 // pred_check
          %p155 = pneg %p79
        $region26: #{decoder_forward.5} parent=19 // pred_check_branch
          %157 = sbr.rel (%p155) target = $region28
        $region27: #{decoder_forward.5} parent=19 // pred_region
          %s158 = smul.u32 7, %s12
          %p159 = scmp.lt.s32.totalorder %s158, 48
          %s160 = scalar_select %p159, %s158, 48
          %s161 = scalar_lea.vmem %s2, %s160
          %s162 = smul.u32 7, %s12
        $region28: #{decoder_forward.5} parent=19 // pred_fallthru
          _
      $region20: #{decoder_forward.5} parent=5 // pred_fallthru
        _
      %p163 = scmp.le.s32.totalorder 1, %s12
      %p164 = scmp.lt.s32.totalorder %s12, 8
      %p165 = pnand %p163, %p164
      %p166 = pneg %p165
      // Predicated region
      $region29: #{decoder_forward.5} parent=5 // pred_check
        _
      $region30: #{decoder_forward.5} parent=5 // pred_check_branch
        %168 = sbr.rel (%p165) target = $region32
      $region31: #{decoder_forward.5} parent=5 // pred_region
        %s169 = ssub.s32 %s12, 1
        %s170 = sand.u32 %s46, 1
        %s171 = scalar_lea.sflag [#allocation3], %s170
        %s172 = sand.u32 %s46, 1
        %s173 = smul.addr %s172, 56
        %s174 = scalar_lea.vmem [#allocation2], %s173
        // Predicated region
        $region33: #{decoder_forward.5} parent=31 // pred_check
          %p175 = pneg %p59
        $region34: #{decoder_forward.5} parent=31 // pred_check_branch
          %177 = sbr.rel (%p175) target = $region36
        $region35: #{decoder_forward.5} parent=31 // pred_region
          %179 = dma.done %s171, 896
        $region36: #{decoder_forward.5} parent=31 // pred_fallthru
          _
        %p180 = pneg %p33
        %p181 = pneg %p30
        %s182 = sand.u32 %s46, 1
        %s183 = scalar_lea.sflag [#allocation3], %s182
        %s184 = sand.u32 %s46, 1
        %s185 = smul.addr %s184, 56
        %s186 = scalar_lea.vmem [#allocation2], %s185
        %p187 = pneg %p59
        %p188 = pneg %p56
        %s189 = smul.u32 7, %s17
        %p190 = scmp.lt.s32.totalorder %s189, 48
        %s191 = scalar_select %p190, %s189, 48
        %s192 = scalar_lea.vmem %s2, %s191
        %p193 = pneg %p85
        %p194 = pneg %p82
        %p195 = pneg %p111
        %p196 = pneg %p108
        %s197 = smul.u32 7, %s17
        %p198 = scmp.lt.s32.totalorder %s197, 48
        %s199 = scalar_select %p198, %s197, 48
        %s200 = scalar_lea.vmem %s3, %s199
        %s201 = smul.u32 7, %s17
        %s202 = smul.u32 7, %s17
        %p203 = scmp.lt.s32.totalorder %s202, 48
        %s204 = scalar_select %p203, %s202, 48
        %s205 = scalar_lea.vmem %s2, %s204
        %s206 = smul.u32 7, %s17
        %s207 = smul.u32 7, %s17
        %p208 = scmp.lt.s32.totalorder %s207, 48
        %s209 = scalar_select %p208, %s207, 48
        %s210 = scalar_lea.vmem %s3, %s209
        %s211 = smul.u32 7, %s17
        %v213 = vld [vmem:[%s0] sm:$0x1]
        %v214 = vld [vmem:[%s174] sm:$0xff]
        %v215 = vld [vmem:[%s174 + $0x8] sm:$0xff]
        %v216 = vld [vmem:[%s174 + $0x10] sm:$0xff]
        %v217 = vld [vmem:[%s174 + $0x18] sm:$0xf]
        %v218 = vld [vmem:[%s174 + $0x1c] sm:$0xff]
        %v219 = vld [vmem:[%s174 + $0x24] sm:$0xff]
        %v220 = vld [vmem:[%s174 + $0x2c] sm:$0xff]
        %v221 = vld [vmem:[%s174 + $0x34] sm:$0xf]
        %v222 = vld [vmem:[%s205] sm:$0xff]
        %v224 = vperm.slane %v222, 0
        %v225 = vperm.slane %v222, 1
        %v226 = vperm.slane %v222, 2
        %v227 = vperm.slane %v222, 3
        %v228 = vperm.slane %v222, 4
        %v229 = vperm.slane %v222, 5
        %v230 = vperm.slane %v222, 6
        %v246 = vunpack.c.l.b16 %v214
        %v247 = vunpack.c.h.b16 %v214
        %v248 = vunpack.c.l.b16 %v215
        %v249 = vunpack.c.h.b16 %v215
        %v250 = vunpack.c.l.b16 %v216
        %v251 = vunpack.c.h.b16 %v216
        %v252 = vunpack.c.l.b16 %v217
        %v253 = vunpack.c.l.b16 %v218
        %v254 = vunpack.c.h.b16 %v218
        %v255 = vunpack.c.l.b16 %v219
        %v256 = vunpack.c.h.b16 %v219
        %v257 = vunpack.c.l.b16 %v220
        %v258 = vunpack.c.h.b16 %v220
        %v259 = vunpack.c.l.b16 %v221
        %v260 = vpack.c.b16 %v253, %v246
        %v261 = vpack.c.b16 %v254, %v247
        %v262 = vpack.c.b16 %v255, %v248
        %v263 = vpack.c.b16 %v256, %v249
        %v264 = vpack.c.b16 %v257, %v250
        %v265 = vpack.c.b16 %v258, %v251
        %v266 = vpack.c.b16 %v259, %v252
        %vm274 = vcmask 130048
        %v276 = vsel %vm274, %v213, 0
        %278 = vmatpush.bf16.msra.mxu0 0
        %279 = vmatpush.bf16.msra.mxu0 0
        %280 = vmatpush.bf16.msra.mxu0 0
        %281 = vmatpush.bf16.msra.mxu0 0
        %282 = vmatpush.bf16.msra.mxu0 0
        %283 = vmatpush.bf16.msra.mxu0 0
        %284 = vmatpush.bf16.msra.mxu0 0
        %285 = vmatpush.bf16.msra.mxu0 %v260
        %286 = vmatmul.bf16.gmra.mxu0 %v276
        %v287 = vpop.f32.mrf.mxu0
        %v288 = vadd.f32 %v224, %v287
        %v289 = vpop.f32.mrf.mxu0
        %290 = vdwg.mxu0
        %291 = vmatpush.bf16.msra.mxu0 0
        %292 = vmatpush.bf16.msra.mxu0 0
        %293 = vmatpush.bf16.msra.mxu0 0
        %294 = vmatpush.bf16.msra.mxu0 0
        %295 = vmatpush.bf16.msra.mxu0 0
        %296 = vmatpush.bf16.msra.mxu0 0
        %297 = vmatpush.bf16.msra.mxu0 0
        %298 = vmatpush.bf16.msra.mxu0 %v261
        %299 = vmatmul.bf16.gmra.mxu0 %v276
        %v300 = vpop.f32.mrf.mxu0
        %v301 = vadd.f32 %v225, %v300
        %v302 = vpop.f32.mrf.mxu0
        %303 = vdwg.mxu0
        %304 = vmatpush.bf16.msra.mxu0 0
        %305 = vmatpush.bf16.msra.mxu0 0
        %306 = vmatpush.bf16.msra.mxu0 0
        %307 = vmatpush.bf16.msra.mxu0 0
        %308 = vmatpush.bf16.msra.mxu0 0
        %309 = vmatpush.bf16.msra.mxu0 0
        %310 = vmatpush.bf16.msra.mxu0 0
        %311 = vmatpush.bf16.msra.mxu0 %v262
        %312 = vmatmul.bf16.gmra.mxu0 %v276
        %v313 = vpop.f32.mrf.mxu0
        %v314 = vadd.f32 %v226, %v313
        %v315 = vpop.f32.mrf.mxu0
        %316 = vdwg.mxu0
        %317 = vmatpush.bf16.msra.mxu0 0
        %318 = vmatpush.bf16.msra.mxu0 0
        %319 = vmatpush.bf16.msra.mxu0 0
        %320 = vmatpush.bf16.msra.mxu0 0
        %321 = vmatpush.bf16.msra.mxu0 0
        %322 = vmatpush.bf16.msra.mxu0 0
        %323 = vmatpush.bf16.msra.mxu0 0
        %324 = vmatpush.bf16.msra.mxu0 %v263
        %325 = vmatmul.bf16.gmra.mxu0 %v276
        %v326 = vpop.f32.mrf.mxu0
        %v327 = vadd.f32 %v227, %v326
        %v328 = vpop.f32.mrf.mxu0
        %329 = vdwg.mxu0
        %330 = vmatpush.bf16.msra.mxu0 0
        %331 = vmatpush.bf16.msra.mxu0 0
        %332 = vmatpush.bf16.msra.mxu0 0
        %333 = vmatpush.bf16.msra.mxu0 0
        %334 = vmatpush.bf16.msra.mxu0 0
        %335 = vmatpush.bf16.msra.mxu0 0
        %336 = vmatpush.bf16.msra.mxu0 0
        %337 = vmatpush.bf16.msra.mxu0 %v264
        %338 = vmatmul.bf16.gmra.mxu0 %v276
        %v339 = vpop.f32.mrf.mxu0
        %v340 = vadd.f32 %v228, %v339
        %v341 = vpop.f32.mrf.mxu0
        %342 = vdwg.mxu0
        %343 = vmatpush.bf16.msra.mxu0 0
        %344 = vmatpush.bf16.msra.mxu0 0
        %345 = vmatpush.bf16.msra.mxu0 0
        %346 = vmatpush.bf16.msra.mxu0 0
        %347 = vmatpush.bf16.msra.mxu0 0
        %348 = vmatpush.bf16.msra.mxu0 0
        %349 = vmatpush.bf16.msra.mxu0 0
        %350 = vmatpush.bf16.msra.mxu0 %v265
        %351 = vmatmul.bf16.gmra.mxu0 %v276
        %v352 = vpop.f32.mrf.mxu0
        %v353 = vadd.f32 %v229, %v352
        %v354 = vpop.f32.mrf.mxu0
        %355 = vdwg.mxu0
        %356 = vmatpush.bf16.msra.mxu0 0
        %357 = vmatpush.bf16.msra.mxu0 0
        %358 = vmatpush.bf16.msra.mxu0 0
        %359 = vmatpush.bf16.msra.mxu0 0
        %360 = vmatpush.bf16.msra.mxu0 0
        %361 = vmatpush.bf16.msra.mxu0 0
        %362 = vmatpush.bf16.msra.mxu0 0
        %363 = vmatpush.bf16.msra.mxu0 %v266
        %364 = vmatmul.bf16.gmra.mxu0 %v276
        %v365 = vpop.f32.mrf.mxu0
        %v366 = vadd.f32 %v230, %v365
        %v367 = vpop.f32.mrf.mxu0
        %368 = vdwg.mxu0
        %v369 = vpack.c.bf16 %v301, %v288
        %v370 = vpack.c.bf16 %v327, %v314
        %v371 = vpack.c.bf16 %v353, %v340
        %v372 = vpack.c.bf16 %v366, %v366
        %v377 = vrot.slane %v369, 3
        %v378 = vrot.slane %v370, 6
        %v379 = vrot.slane %v370, 1
        %v380 = vrot.slane %v371, 4
        %v381 = vrot.slane %v371, 7
        %v382 = vrot.slane %v372, 2
        %v383 = vrot.slane %v372, 5
        %vm384 = vcmask 1040384
        %v387 = vsel %vm384, %v369, %v377
        %vm388 = vcmask 1042434
        %v391 = vsel %vm388, %v378, %v379
        %vm392 = vcmask 1041408
        %v393 = vsel %vm392, %v387, %v391
        %vm394 = vcmask 1044484
        %v397 = vsel %vm394, %v380, %v381
        %vm398 = vcmask 1046534
        %v401 = vsel %vm398, %v382, %v383
        %vm402 = vcmask 1045508
        %v403 = vsel %vm402, %v397, %v401
        %vm404 = vcmask 1043456
        %v405 = vsel %vm404, %v393, %v403
        %407 = vst [vmem:[%s210] sm:$0x7f] %v405
        %s408 = smul.u32 7, %s17
        %p409 = scmp.lt.s32.totalorder %s408, 48
        %s410 = scalar_select %p409, %s408, 48
        %s411 = scalar_lea.vmem %s3, %s410
        // Predicated region
        $region37: #{decoder_forward.5} parent=31 // pred_check
          %p412 = pneg %p108
        $region38: #{decoder_forward.5} parent=31 // pred_check_branch
          %414 = sbr.rel (%p412) target = $region40
        $region39: #{decoder_forward.5} parent=31 // pred_region
          %s415 = smul.u32 7, %s17
        $region40: #{decoder_forward.5} parent=31 // pred_fallthru
          _
      $region32: #{decoder_forward.5} parent=5 // pred_fallthru
        _
      %p416 = scmp.le.s32.totalorder 2, %s12
      // Predicated region
      $region41: #{decoder_forward.5} parent=5 // pred_check
        %p417 = pneg %p416
      $region42: #{decoder_forward.5} parent=5 // pred_check_branch
        %419 = sbr.rel (%p417) target = $region44
      $region43: #{decoder_forward.5} parent=5 // pred_region
        %s420 = ssub.s32 %s12, 2
        // Predicated region
        $region45: #{decoder_forward.5} parent=43 // pred_check
          %p421 = pneg %p114
        $region46: #{decoder_forward.5} parent=43 // pred_check_branch
          %423 = sbr.rel (%p421) target = $region48
        $region47: #{decoder_forward.5} parent=43 // pred_region
          %s424 = smul.u32 7, %s18
          %p425 = scmp.lt.s32.totalorder %s424, 48
          %s426 = scalar_select %p425, %s424, 48
          %s427 = scalar_lea.vmem %s3, %s426
        $region48: #{decoder_forward.5} parent=43 // pred_fallthru
          _
      $region44: #{decoder_forward.5} parent=5 // pred_fallthru
        _
    $region6: #{decoder_forward.5} parent=1 // loop_footer
      %s16 = sadd.s32 1, %s12
    $region7: #{decoder_forward.5} parent=1 // loop_footer_branch
      %11 = sbr.rel target = $region3
    $region8: #{decoder_forward.5} parent=1 // loop_exit
      _
    %428 = vsyncpa [#allocation3], 1
    %s429 = scalar_lea.sflag [#allocation3], 1
    %430 = vsyncpa %s429, 1

// kernel: decoder_forward.6
$region0: #{decoder_forward.6}
  #allocation0 [shape = 'u32[]', space=smem, size = 0x4, offset = 0x4, fixed_abs, tag = 'smem constant byte address 0x4 - core index']
  #allocation1 [shape = 'u32[72,128]{1,0:T(1,128)}', space=vmem, size = 0x9000, scoped, tag = 'internal scratch']
  %s0 = inlined_call_operand.vmem [shape: bf16[288,512], index: 0, kind: input, shape index: {}]
  %s1 = inlined_call_operand.vmem [shape: bf16[16,288], index: 1, kind: input, shape index: {}]
  %s2 = inlined_call_operand.vmem [shape: f32[16,1], index: 2, kind: input, shape index: {}]
  %s3 = inlined_call_operand.vmem [shape: bf16[16,512], index: 3, kind: output, shape index: {0}]
  %s4 = inlined_call_operand.vmem [shape: f32[2,16,1], index: 4, kind: output, shape index: {1}]
  %s5 = inlined_call_operand.vmem [shape: f32[2,16,1], index: 5, kind: output, shape index: {2}]
  %6 = xla_tuple %s3, %s4, %s5
  %s7 = sld [smem:[#allocation0]]
  $region133: #{decoder_forward.6} parent=0
    _
  %s9 = ssub.s32 1, %s7
  %s10 = scalar_select 0, %s9, %s7
  $region1: #{decoder_forward.6} parent=0
    #allocation2 [shape = 'u8[294912]{0}', space=vmem, size = 0x48000, scoped, tag = 'input window, operand 0']
    #allocation3 [shape = 'u8[16384]{0}', space=vmem, size = 0x4000, scoped, tag = 'output window, operand 0']
    loop: start=0, step=1, limit=4
    $region2: #{decoder_forward.6} parent=1 // loop_pre_header
      _
    $region3: #{decoder_forward.6} parent=1 // loop_header
      %s12 = sphi 0, %s16
      %p13 = scmp.ge.s32.totalorder %s12, 4
      %s22 = sphi 0, %s24
      %s25 = sphi 0, %s22
      %s26 = sphi 0, %s25
      %s42 = sphi 0, %s26
      %s46 = sphi 0, %s46
      %s48 = sphi 0, %s46
      %s49 = sphi 0, %s48
      %s63 = sphi 0, %s49
      %s67 = sphi 0, %s67
      %s69 = sphi 0, %s67
      %s70 = sphi 0, %s69
      %s84 = sphi 0, %s70
      %s90 = sphi 0, %s92
      %s93 = sphi 0, %s90
      %s94 = sphi 0, %s93
      %s110 = sphi 0, %s94
      %s116 = sphi 0, %s118
      %s119 = sphi 0, %s116
      %s120 = sphi 0, %s119
      %s136 = sphi 0, %s120
      %s142 = sphi 0, %s144
      %s145 = sphi 0, %s142
      %s146 = sphi 0, %s145
      %s162 = sphi 0, %s146
    $region4: #{decoder_forward.6} parent=1 // loop_header_branch
      %15 = sbr.rel (%p13) target = $region8
    $region5: #{decoder_forward.6} parent=1 // loop_body
      %s17 = ssub.s32 %s12, 1
      %s18 = ssub.s32 %s12, 2
      %s19 = sadd.s32 %s12, 1
      %s20 = ssub.s32 %s12, %s19
      %p21 = scmp.eq.s32.totalorder %s20, 0
      %s23 = sadd.s32 %s22, 1
      %s24 = scalar_select %p21, %s22, %s23
      %p27 = pneg %p21
      %p28 = scmp.eq.s32.totalorder %s12, 1
      %p29 = por %p27, %p28
      %p30 = scmp.ne.s32.totalorder %s22, %s25
      %p31 = scmp.eq.s32.totalorder %s12, 0
      %p32 = por %p30, %p31
      %p33 = scmp.ne.s32.totalorder %s22, %s25
      %p34 = scmp.eq.s32.totalorder %s17, 1
      %p35 = por %p33, %p34
      %p36 = scmp.ne.s32.totalorder %s25, %s26
      %p37 = scmp.eq.s32.totalorder %s17, 0
      %p38 = por %p36, %p37
      %p39 = scmp.ne.s32.totalorder %s25, %s26
      %p40 = scmp.eq.s32.totalorder %s18, 1
      %p41 = por %p39, %p40
      %p43 = scmp.ne.s32.totalorder %s26, %s42
      %p44 = scmp.eq.s32.totalorder %s18, 0
      %p45 = por %p43, %p44
      %s47 = sadd.s32 %s46, 1
      %p50 = scmp.eq.s32.totalorder %s12, 1
      %p51 = scmp.ne.s32.totalorder %s46, %s48
      %p52 = scmp.eq.s32.totalorder %s12, 0
      %p53 = por %p51, %p52
      %p54 = scmp.ne.s32.totalorder %s46, %s48
      %p55 = scmp.eq.s32.totalorder %s17, 1
      %p56 = por %p54, %p55
      %p57 = scmp.ne.s32.totalorder %s48, %s49
      %p58 = scmp.eq.s32.totalorder %s17, 0
      %p59 = por %p57, %p58
      %p60 = scmp.ne.s32.totalorder %s48, %s49
      %p61 = scmp.eq.s32.totalorder %s18, 1
      %p62 = por %p60, %p61
      %p64 = scmp.ne.s32.totalorder %s49, %s63
      %p65 = scmp.eq.s32.totalorder %s18, 0
      %p66 = por %p64, %p65
      %s68 = sadd.s32 %s67, 1
      %p71 = scmp.eq.s32.totalorder %s12, 1
      %p72 = scmp.ne.s32.totalorder %s67, %s69
      %p73 = scmp.eq.s32.totalorder %s12, 0
      %p74 = por %p72, %p73
      %p75 = scmp.ne.s32.totalorder %s67, %s69
      %p76 = scmp.eq.s32.totalorder %s17, 1
      %p77 = por %p75, %p76
      %p78 = scmp.ne.s32.totalorder %s69, %s70
      %p79 = scmp.eq.s32.totalorder %s17, 0
      %p80 = por %p78, %p79
      %p81 = scmp.ne.s32.totalorder %s69, %s70
      %p82 = scmp.eq.s32.totalorder %s18, 1
      %p83 = por %p81, %p82
      %p85 = scmp.ne.s32.totalorder %s70, %s84
      %p86 = scmp.eq.s32.totalorder %s18, 0
      %p87 = por %p85, %p86
      %s88 = ssub.s32 %s12, %s19
      %p89 = scmp.eq.s32.totalorder %s88, 0
      %s91 = sadd.s32 %s90, 1
      %s92 = scalar_select %p89, %s90, %s91
      %p95 = pneg %p89
      %p96 = scmp.eq.s32.totalorder %s12, 1
      %p97 = por %p95, %p96
      %p98 = scmp.ne.s32.totalorder %s90, %s93
      %p99 = scmp.eq.s32.totalorder %s12, 0
      %p100 = por %p98, %p99
      %p101 = scmp.ne.s32.totalorder %s90, %s93
      %p102 = scmp.eq.s32.totalorder %s17, 1
      %p103 = por %p101, %p102
      %p104 = scmp.ne.s32.totalorder %s93, %s94
      %p105 = scmp.eq.s32.totalorder %s17, 0
      %p106 = por %p104, %p105
      %p107 = scmp.ne.s32.totalorder %s93, %s94
      %p108 = scmp.eq.s32.totalorder %s18, 1
      %p109 = por %p107, %p108
      %p111 = scmp.ne.s32.totalorder %s94, %s110
      %p112 = scmp.eq.s32.totalorder %s18, 0
      %p113 = por %p111, %p112
      %s114 = ssub.s32 %s12, %s19
      %p115 = scmp.eq.s32.totalorder %s114, 0
      %s117 = sadd.s32 %s116, 1
      %s118 = scalar_select %p115, %s116, %s117
      %p121 = pneg %p115
      %p122 = scmp.eq.s32.totalorder %s12, 1
      %p123 = por %p121, %p122
      %p124 = scmp.ne.s32.totalorder %s116, %s119
      %p125 = scmp.eq.s32.totalorder %s12, 0
      %p126 = por %p124, %p125
      %p127 = scmp.ne.s32.totalorder %s116, %s119
      %p128 = scmp.eq.s32.totalorder %s17, 1
      %p129 = por %p127, %p128
      %p130 = scmp.ne.s32.totalorder %s119, %s120
      %p131 = scmp.eq.s32.totalorder %s17, 0
      %p132 = por %p130, %p131
      %p133 = scmp.ne.s32.totalorder %s119, %s120
      %p134 = scmp.eq.s32.totalorder %s18, 1
      %p135 = por %p133, %p134
      %p137 = scmp.ne.s32.totalorder %s120, %s136
      %p138 = scmp.eq.s32.totalorder %s18, 0
      %p139 = por %p137, %p138
      %s140 = ssub.s32 %s12, %s19
      %p141 = scmp.eq.s32.totalorder %s140, 0
      %s143 = sadd.s32 %s142, 1
      %s144 = scalar_select %p141, %s142, %s143
      %p147 = pneg %p141
      %p148 = scmp.eq.s32.totalorder %s12, 1
      %p149 = por %p147, %p148
      %p150 = scmp.ne.s32.totalorder %s142, %s145
      %p151 = scmp.eq.s32.totalorder %s12, 0
      %p152 = por %p150, %p151
      %p153 = scmp.ne.s32.totalorder %s142, %s145
      %p154 = scmp.eq.s32.totalorder %s17, 1
      %p155 = por %p153, %p154
      %p156 = scmp.ne.s32.totalorder %s145, %s146
      %p157 = scmp.eq.s32.totalorder %s17, 0
      %p158 = por %p156, %p157
      %p159 = scmp.ne.s32.totalorder %s145, %s146
      %p160 = scmp.eq.s32.totalorder %s18, 1
      %p161 = por %p159, %p160
      %p163 = scmp.ne.s32.totalorder %s146, %s162
      %p164 = scmp.eq.s32.totalorder %s18, 0
      %p165 = por %p163, %p164
      %p166 = scmp.le.s32.totalorder 1, %s12
      %p167 = scmp.lt.s32.totalorder %s12, 3
      %p168 = pnand %p166, %p167
      %p169 = pneg %p168
      // Predicated region
      $region9: #{decoder_forward.6} parent=5 // pred_check
        _
      $region10: #{decoder_forward.6} parent=5 // pred_check_branch
        %171 = sbr.rel (%p168) target = $region12
      $region11: #{decoder_forward.6} parent=5 // pred_region
        %s172 = ssub.s32 %s12, 1
        // Predicated region
        $region13: #{decoder_forward.6} parent=11 // pred_check
          %p173 = pneg %p59
        $region14: #{decoder_forward.6} parent=11 // pred_check_branch
          %175 = sbr.rel (%p173) target = $region16
        $region15: #{decoder_forward.6} parent=11 // pred_region
          _
        $region16: #{decoder_forward.6} parent=11 // pred_fallthru
          _
        // Predicated region
        $region17: #{decoder_forward.6} parent=11 // pred_check
          %p176 = pneg %p80
        $region18: #{decoder_forward.6} parent=11 // pred_check_branch
          %178 = sbr.rel (%p176) target = $region20
        $region19: #{decoder_forward.6} parent=11 // pred_region
          _
        $region20: #{decoder_forward.6} parent=11 // pred_fallthru
          _
      $region12: #{decoder_forward.6} parent=5 // pred_fallthru
        _
      %p179 = scmp.lt.s32.totalorder %s12, 2
      // Predicated region
      $region21: #{decoder_forward.6} parent=5 // pred_check
        %p180 = pneg %p179
      $region22: #{decoder_forward.6} parent=5 // pred_check_branch
        %182 = sbr.rel (%p180) target = $region24
      $region23: #{decoder_forward.6} parent=5 // pred_region
        // Predicated region
        $region25: #{decoder_forward.6} parent=23 // pred_check
          %p183 = pneg %p32
        $region26: #{decoder_forward.6} parent=23 // pred_check_branch
          %185 = sbr.rel (%p183) target = $region28
        $region27: #{decoder_forward.6} parent=23 // pred_region
          %s186 = sand.u32 %s22, 1
          %s187 = sand.u32 %s22, 1
          %s188 = smul.addr %s187, 288
          %s189 = scalar_lea.vmem [#allocation2], %s188
          %s190 = smul.u32 2, %s12
          %s191 = smul.addr %s190, 4
          %s192 = scalar_lea.vmem %s0, %s191
          // Predicated region
          $region29: #{decoder_forward.6} parent=27 // pred_check
            _
          $region30: #{decoder_forward.6} parent=27 // pred_check_branch
            %194 = sbr.rel (0) target = $region32
          $region31: #{decoder_forward.6} parent=27 // pred_region
            // Predicated region
            $region33: #{decoder_forward.6} parent=31 // pred_check
              _
            $region34: #{decoder_forward.6} parent=31 // pred_check_branch
              %196 = sbr.rel (0) target = $region36
            $region35: #{decoder_forward.6} parent=31 // pred_region
              // Predicated region
              $region48: #{decoder_forward.6} parent=35 // pred_check
                _
              $region49: #{decoder_forward.6} parent=35 // pred_check_branch
                %282 = sbr.rel (0) target = $region51
              $region50: #{decoder_forward.6} parent=35 // pred_region
                loop: start=0, step=1, limit=1
                $region52: #{decoder_forward.6} parent=50 // loop_pre_header
                  _
                $region53: #{decoder_forward.6} parent=50 // loop_header
                  %s284 = sphi 0, %s288
                  %p285 = scmp.ge.s32.totalorder %s284, 1
                  %s289 = sphi %s192, %s192
                  %s290 = sphi %s189, %s189
                $region54: #{decoder_forward.6} parent=50 // loop_header_branch
                  %287 = sbr.rel (%p285) target = $region58
                $region55: #{decoder_forward.6} parent=50 // loop_body
                  %v291 = vld [vmem:[%s289] sm:$0xff]
                  %292 = vst [vmem:[%s290] sm:$0xff] %v291
                  %v293 = vld [vmem:[%s289 + $0x10] sm:$0xff]
                  %294 = vst [vmem:[%s290 + $0x8] sm:$0xff] %v293
                  %v295 = vld [vmem:[%s289 + $0x20] sm:$0xff]
                  %296 = vst [vmem:[%s290 + $0x10] sm:$0xff] %v295
                  %v297 = vld [vmem:[%s289 + $0x30] sm:$0xff]
                  %298 = vst [vmem:[%s290 + $0x18] sm:$0xff] %v297
                  %v299 = vld [vmem:[%s289 + $0x40] sm:$0xff]
                  %300 = vst [vmem:[%s290 + $0x20] sm:$0xff] %v299
                  %v301 = vld [vmem:[%s289 + $0x50] sm:$0xff]
                  %302 = vst [vmem:[%s290 + $0x28] sm:$0xff] %v301
                  %v303 = vld [vmem:[%s289 + $0x60] sm:$0xff]
                  %304 = vst [vmem:[%s290 + $0x30] sm:$0xff] %v303
                  %v305 = vld [vmem:[%s289 + $0x70] sm:$0xff]
                  %306 = vst [vmem:[%s290 + $0x38] sm:$0xff] %v305
                  %v307 = vld [vmem:[%s289 + $0x80] sm:$0xff]
                  %308 = vst [vmem:[%s290 + $0x40] sm:$0xff] %v307
                  %v309 = vld [vmem:[%s289 + $0x90] sm:$0xff]
                  %310 = vst [vmem:[%s290 + $0x48] sm:$0xff] %v309
                  %v311 = vld [vmem:[%s289 + $0xa0] sm:$0xff]
                  %312 = vst [vmem:[%s290 + $0x50] sm:$0xff] %v311
                  %v313 = vld [vmem:[%s289 + $0xb0] sm:$0xff]
                  %314 = vst [vmem:[%s290 + $0x58] sm:$0xff] %v313
                  %v315 = vld [vmem:[%s289 + $0xc0] sm:$0xff]
                  %316 = vst [vmem:[%s290 + $0x60] sm:$0xff] %v315
                  %v317 = vld [vmem:[%s289 + $0xd0] sm:$0xff]
                  %318 = vst [vmem:[%s290 + $0x68] sm:$0xff] %v317
                  %v319 = vld [vmem:[%s289 + $0xe0] sm:$0xff]
                  %320 = vst [vmem:[%s290 + $0x70] sm:$0xff] %v319
                  %v321 = vld [vmem:[%s289 + $0xf0] sm:$0xff]
                  %322 = vst [vmem:[%s290 + $0x78] sm:$0xff] %v321
                  %v323 = vld [vmem:[%s289 + $0x100] sm:$0xff]
                  %324 = vst [vmem:[%s290 + $0x80] sm:$0xff] %v323
                  %v325 = vld [vmem:[%s289 + $0x110] sm:$0xff]
                  %326 = vst [vmem:[%s290 + $0x88] sm:$0xff] %v325
                  %v327 = vld [vmem:[%s289 + $0x120] sm:$0xff]
                  %328 = vst [vmem:[%s290 + $0x90] sm:$0xff] %v327
                  %v329 = vld [vmem:[%s289 + $0x130] sm:$0xff]
                  %330 = vst [vmem:[%s290 + $0x98] sm:$0xff] %v329
                  %v331 = vld [vmem:[%s289 + $0x140] sm:$0xff]
                  %332 = vst [vmem:[%s290 + $0xa0] sm:$0xff] %v331
                  %v333 = vld [vmem:[%s289 + $0x150] sm:$0xff]
                  %334 = vst [vmem:[%s290 + $0xa8] sm:$0xff] %v333
                  %v335 = vld [vmem:[%s289 + $0x160] sm:$0xff]
                  %336 = vst [vmem:[%s290 + $0xb0] sm:$0xff] %v335
                  %v337 = vld [vmem:[%s289 + $0x170] sm:$0xff]
                  %338 = vst [vmem:[%s290 + $0xb8] sm:$0xff] %v337
                  %v339 = vld [vmem:[%s289 + $0x180] sm:$0xff]
                  %340 = vst [vmem:[%s290 + $0xc0] sm:$0xff] %v339
                  %v341 = vld [vmem:[%s289 + $0x190] sm:$0xff]
                  %342 = vst [vmem:[%s290 + $0xc8] sm:$0xff] %v341
                  %v343 = vld [vmem:[%s289 + $0x1a0] sm:$0xff]
                  %344 = vst [vmem:[%s290 + $0xd0] sm:$0xff] %v343
                  %v345 = vld [vmem:[%s289 + $0x1b0] sm:$0xff]
                  %346 = vst [vmem:[%s290 + $0xd8] sm:$0xff] %v345
                  %v347 = vld [vmem:[%s289 + $0x1c0] sm:$0xff]
                  %348 = vst [vmem:[%s290 + $0xe0] sm:$0xff] %v347
                  %v349 = vld [vmem:[%s289 + $0x1d0] sm:$0xff]
                  %350 = vst [vmem:[%s290 + $0xe8] sm:$0xff] %v349
                  %v351 = vld [vmem:[%s289 + $0x1e0] sm:$0xff]
                  %352 = vst [vmem:[%s290 + $0xf0] sm:$0xff] %v351
                  %v353 = vld [vmem:[%s289 + $0x1f0] sm:$0xff]
                  %354 = vst [vmem:[%s290 + $0xf8] sm:$0xff] %v353
                  %v355 = vld [vmem:[%s289 + $0x200] sm:$0xff]
                  %356 = vst [vmem:[%s290 + $0x100] sm:$0xff] %v355
                  %v357 = vld [vmem:[%s289 + $0x210] sm:$0xff]
                  %358 = vst [vmem:[%s290 + $0x108] sm:$0xff] %v357
                  %v359 = vld [vmem:[%s289 + $0x220] sm:$0xff]
                  %360 = vst [vmem:[%s290 + $0x110] sm:$0xff] %v359
                  %v361 = vld [vmem:[%s289 + $0x230] sm:$0xff]
                  %362 = vst [vmem:[%s290 + $0x118] sm:$0xff] %v361
                $region56: #{decoder_forward.6} parent=50 // loop_footer
                  %s288 = sadd.s32 1, %s284
                $region57: #{decoder_forward.6} parent=50 // loop_footer_branch
                  %283 = sbr.rel target = $region53
                $region58: #{decoder_forward.6} parent=50 // loop_exit
                  _
              $region51: #{decoder_forward.6} parent=35 // pred_fallthru
                _
              // Predicated region
              $region59: #{decoder_forward.6} parent=35 // pred_check
                _
              $region60: #{decoder_forward.6} parent=35 // pred_check_branch
                %364 = sbr.rel target = $region62
              $region61: #{decoder_forward.6} parent=35 // pred_region
                _
              $region62: #{decoder_forward.6} parent=35 // pred_fallthru
                _
            $region36: #{decoder_forward.6} parent=31 // pred_fallthru
              _
            // Predicated region
            $region37: #{decoder_forward.6} parent=31 // pred_check
              _
            $region38: #{decoder_forward.6} parent=31 // pred_check_branch
              %198 = sbr.rel target = $region40
            $region39: #{decoder_forward.6} parent=31 // pred_region
              %s200 = ssub.s32 256, 1
              loop: start=0, step=1, limit=1
              $region41: #{decoder_forward.6} parent=39 // loop_pre_header
                _
              $region42: #{decoder_forward.6} parent=39 // loop_header
                %s202 = sphi 0, %s206
                %p203 = scmp.ge.s32.totalorder %s202, 1
                %s207 = sphi %s192, %s192
                %s208 = sphi %s189, %s189
              $region43: #{decoder_forward.6} parent=39 // loop_header_branch
                %205 = sbr.rel (%p203) target = $region47
              $region44: #{decoder_forward.6} parent=39 // loop_body
                %v209 = vld [vmem:[%s207] sm:%s200]
                %210 = vst [vmem:[%s208] sm:%s200] %v209
                %v211 = vld [vmem:[%s207 + $0x10] sm:%s200]
                %212 = vst [vmem:[%s208 + $0x8] sm:%s200] %v211
                %v213 = vld [vmem:[%s207 + $0x20] sm:%s200]
                %214 = vst [vmem:[%s208 + $0x10] sm:%s200] %v213
                %v215 = vld [vmem:[%s207 + $0x30] sm:%s200]
                %216 = vst [vmem:[%s208 + $0x18] sm:%s200] %v215
                %v217 = vld [vmem:[%s207 + $0x40] sm:%s200]
                %218 = vst [vmem:[%s208 + $0x20] sm:%s200] %v217
                %v219 = vld [vmem:[%s207 + $0x50] sm:%s200]
                %220 = vst [vmem:[%s208 + $0x28] sm:%s200] %v219
                %v221 = vld [vmem:[%s207 + $0x60] sm:%s200]
                %222 = vst [vmem:[%s208 + $0x30] sm:%s200] %v221
                %v223 = vld [vmem:[%s207 + $0x70] sm:%s200]
                %224 = vst [vmem:[%s208 + $0x38] sm:%s200] %v223
                %v225 = vld [vmem:[%s207 + $0x80] sm:%s200]
                %226 = vst [vmem:[%s208 + $0x40] sm:%s200] %v225
                %v227 = vld [vmem:[%s207 + $0x90] sm:%s200]
                %228 = vst [vmem:[%s208 + $0x48] sm:%s200] %v227
                %v229 = vld [vmem:[%s207 + $0xa0] sm:%s200]
                %230 = vst [vmem:[%s208 + $0x50] sm:%s200] %v229
                %v231 = vld [vmem:[%s207 + $0xb0] sm:%s200]
                %232 = vst [vmem:[%s208 + $0x58] sm:%s200] %v231
                %v233 = vld [vmem:[%s207 + $0xc0] sm:%s200]
                %234 = vst [vmem:[%s208 + $0x60] sm:%s200] %v233
                %v235 = vld [vmem:[%s207 + $0xd0] sm:%s200]
                %236 = vst [vmem:[%s208 + $0x68] sm:%s200] %v235
                %v237 = vld [vmem:[%s207 + $0xe0] sm:%s200]
                %238 = vst [vmem:[%s208 + $0x70] sm:%s200] %v237
                %v239 = vld [vmem:[%s207 + $0xf0] sm:%s200]
                %240 = vst [vmem:[%s208 + $0x78] sm:%s200] %v239
                %v241 = vld [vmem:[%s207 + $0x100] sm:%s200]
                %242 = vst [vmem:[%s208 + $0x80] sm:%s200] %v241
                %v243 = vld [vmem:[%s207 + $0x110] sm:%s200]
                %244 = vst [vmem:[%s208 + $0x88] sm:%s200] %v243
                %v245 = vld [vmem:[%s207 + $0x120] sm:%s200]
                %246 = vst [vmem:[%s208 + $0x90] sm:%s200] %v245
                %v247 = vld [vmem:[%s207 + $0x130] sm:%s200]
                %248 = vst [vmem:[%s208 + $0x98] sm:%s200] %v247
                %v249 = vld [vmem:[%s207 + $0x140] sm:%s200]
                %250 = vst [vmem:[%s208 + $0xa0] sm:%s200] %v249
                %v251 = vld [vmem:[%s207 + $0x150] sm:%s200]
                %252 = vst [vmem:[%s208 + $0xa8] sm:%s200] %v251
                %v253 = vld [vmem:[%s207 + $0x160] sm:%s200]
                %254 = vst [vmem:[%s208 + $0xb0] sm:%s200] %v253
                %v255 = vld [vmem:[%s207 + $0x170] sm:%s200]
                %256 = vst [vmem:[%s208 + $0xb8] sm:%s200] %v255
                %v257 = vld [vmem:[%s207 + $0x180] sm:%s200]
                %258 = vst [vmem:[%s208 + $0xc0] sm:%s200] %v257
                %v259 = vld [vmem:[%s207 + $0x190] sm:%s200]
                %260 = vst [vmem:[%s208 + $0xc8] sm:%s200] %v259
                %v261 = vld [vmem:[%s207 + $0x1a0] sm:%s200]
                %262 = vst [vmem:[%s208 + $0xd0] sm:%s200] %v261
                %v263 = vld [vmem:[%s207 + $0x1b0] sm:%s200]
                %264 = vst [vmem:[%s208 + $0xd8] sm:%s200] %v263
                %v265 = vld [vmem:[%s207 + $0x1c0] sm:%s200]
                %266 = vst [vmem:[%s208 + $0xe0] sm:%s200] %v265
                %v267 = vld [vmem:[%s207 + $0x1d0] sm:%s200]
                %268 = vst [vmem:[%s208 + $0xe8] sm:%s200] %v267
                %v269 = vld [vmem:[%s207 + $0x1e0] sm:%s200]
                %270 = vst [vmem:[%s208 + $0xf0] sm:%s200] %v269
                %v271 = vld [vmem:[%s207 + $0x1f0] sm:%s200]
                %272 = vst [vmem:[%s208 + $0xf8] sm:%s200] %v271
                %v273 = vld [vmem:[%s207 + $0x200] sm:%s200]
                %274 = vst [vmem:[%s208 + $0x100] sm:%s200] %v273
                %v275 = vld [vmem:[%s207 + $0x210] sm:%s200]
                %276 = vst [vmem:[%s208 + $0x108] sm:%s200] %v275
                %v277 = vld [vmem:[%s207 + $0x220] sm:%s200]
                %278 = vst [vmem:[%s208 + $0x110] sm:%s200] %v277
                %v279 = vld [vmem:[%s207 + $0x230] sm:%s200]
                %280 = vst [vmem:[%s208 + $0x118] sm:%s200] %v279
              $region45: #{decoder_forward.6} parent=39 // loop_footer
                %s206 = sadd.s32 1, %s202
              $region46: #{decoder_forward.6} parent=39 // loop_footer_branch
                %201 = sbr.rel target = $region42
              $region47: #{decoder_forward.6} parent=39 // loop_exit
                _
            $region40: #{decoder_forward.6} parent=31 // pred_fallthru
              _
          $region32: #{decoder_forward.6} parent=27 // pred_fallthru
            _
          %365 = vnop
        $region28: #{decoder_forward.6} parent=23 // pred_fallthru
          _
      $region24: #{decoder_forward.6} parent=5 // pred_fallthru
        _
      %p366 = scmp.le.s32.totalorder 1, %s12
      %p367 = scmp.lt.s32.totalorder %s12, 3
      %p368 = pnand %p366, %p367
      %p369 = pneg %p368
      // Predicated region
      $region63: #{decoder_forward.6} parent=5 // pred_check
        _
      $region64: #{decoder_forward.6} parent=5 // pred_check_branch
        %371 = sbr.rel (%p368) target = $region66
      $region65: #{decoder_forward.6} parent=5 // pred_region
        %s372 = ssub.s32 %s12, 1
        %s373 = sand.u32 %s25, 1
        %s374 = sand.u32 %s25, 1
        %s375 = smul.addr %s374, 288
        %s376 = scalar_lea.vmem [#allocation2], %s375
        // Predicated region
        $region67: #{decoder_forward.6} parent=65 // pred_check
          %p377 = pneg %p38
        $region68: #{decoder_forward.6} parent=65 // pred_check_branch
          %379 = sbr.rel (%p377) target = $region70
        $region69: #{decoder_forward.6} parent=65 // pred_region
          _
        $region70: #{decoder_forward.6} parent=65 // pred_fallthru
          _
        %s380 = sand.u32 %s25, 1
        %s381 = sand.u32 %s25, 1
        %s382 = smul.addr %s381, 288
        %s383 = scalar_lea.vmem [#allocation2], %s382
        %p384 = pneg %p38
        %p385 = pneg %p35
        %p386 = pneg %p59
        %p387 = pneg %p56
        %p388 = pneg %p80
        %p389 = pneg %p77
        %p390 = pneg %p106
        %p391 = pneg %p103
        %s392 = sand.u32 %s93, 1
        %s393 = sand.u32 %s93, 1
        %s394 = smul.addr %s393, 16
        %s395 = scalar_lea.vmem [#allocation3], %s394
        %p396 = pneg %p132
        %p397 = pneg %p129
        %p398 = scmp.lt.s32.totalorder %s17, 1
        %s399 = scalar_select %p398, %s17, 1
        %s400 = smul.addr %s399, 2
        %s401 = smul.addr %s400, 8
        %s402 = scalar_lea.vmem %s4, %s401
        %p403 = pneg %p158
        %p404 = pneg %p155
        %p405 = scmp.lt.s32.totalorder %s17, 1
        %s406 = scalar_select %p405, %s17, 1
        %s407 = smul.addr %s406, 2
        %s408 = smul.addr %s407, 8
        %s409 = scalar_lea.vmem %s5, %s408
        %s410 = smul.u32 2, %s17
        %s411 = smul.u32 2, %s17
        %p412 = scmp.lt.s32.totalorder %s17, 1
        %s413 = scalar_select %p412, %s17, 1
        %s414 = smul.addr %s413, 2
        %s415 = smul.addr %s414, 8
        %s416 = scalar_lea.vmem %s4, %s415
        %p417 = scmp.lt.s32.totalorder %s17, 1
        %s418 = scalar_select %p417, %s17, 1
        %s419 = smul.addr %s418, 2
        %s420 = smul.addr %s419, 8
        %s421 = scalar_lea.vmem %s5, %s420
        %v423 = vld [vmem:[%s1] sm:$0xff]
        %v424 = vld [vmem:[%s1 + $0x8] sm:$0xf]
        %v425 = vld [vmem:[%s1 + $0xc] sm:$0xff]
        %v426 = vld [vmem:[%s1 + $0x14] sm:$0xf]
        %v427 = vld [vmem:[%s376] sm:$0xff]
        %v428 = vld [vmem:[%s376 + $0x8] sm:$0xff]
        %v429 = vld [vmem:[%s376 + $0x10] sm:$0xff]
        %v430 = vld [vmem:[%s376 + $0x18] sm:$0xff]
        %v431 = vld [vmem:[%s376 + $0x20] sm:$0xff]
        %v432 = vld [vmem:[%s376 + $0x28] sm:$0xff]
        %v433 = vld [vmem:[%s376 + $0x30] sm:$0xff]
        %v434 = vld [vmem:[%s376 + $0x38] sm:$0xff]
        %v435 = vld [vmem:[%s376 + $0x40] sm:$0xff]
        %v436 = vld [vmem:[%s376 + $0x48] sm:$0xff]
        %v437 = vld [vmem:[%s376 + $0x50] sm:$0xff]
        %v438 = vld [vmem:[%s376 + $0x58] sm:$0xff]
        %v439 = vld [vmem:[%s376 + $0x60] sm:$0xff]
        %v440 = vld [vmem:[%s376 + $0x68] sm:$0xff]
        %v441 = vld [vmem:[%s376 + $0x70] sm:$0xff]
        %v442 = vld [vmem:[%s376 + $0x78] sm:$0xff]
        %v443 = vld [vmem:[%s376 + $0x80] sm:$0xff]
        %v444 = vld [vmem:[%s376 + $0x88] sm:$0xff]
        %v445 = vld [vmem:[%s376 + $0x90] sm:$0xff]
        %v446 = vld [vmem:[%s376 + $0x98] sm:$0xff]
        %v447 = vld [vmem:[%s376 + $0xa0] sm:$0xff]
        %v448 = vld [vmem:[%s376 + $0xa8] sm:$0xff]
        %v449 = vld [vmem:[%s376 + $0xb0] sm:$0xff]
        %v450 = vld [vmem:[%s376 + $0xb8] sm:$0xff]
        %v451 = vld [vmem:[%s376 + $0xc0] sm:$0xff]
        %v452 = vld [vmem:[%s376 + $0xc8] sm:$0xff]
        %v453 = vld [vmem:[%s376 + $0xd0] sm:$0xff]
        %v454 = vld [vmem:[%s376 + $0xd8] sm:$0xff]
        %v455 = vld [vmem:[%s376 + $0xe0] sm:$0xff]
        %v456 = vld [vmem:[%s376 + $0xe8] sm:$0xff]
        %v457 = vld [vmem:[%s376 + $0xf0] sm:$0xff]
        %v458 = vld [vmem:[%s376 + $0xf8] sm:$0xff]
        %v459 = vld [vmem:[%s376 + $0x100] sm:$0xff]
        %v460 = vld [vmem:[%s376 + $0x108] sm:$0xff]
        %v461 = vld [vmem:[%s376 + $0x110] sm:$0xff]
        %v462 = vld [vmem:[%s376 + $0x118] sm:$0xff]
        %v463 = vld [vmem:[%s2] sm:$0xff]
        %v464 = vld [vmem:[%s2 + $0x8] sm:$0xff]
        %466 = vset.pattern.permute.xlu0 0
        %467 = vperm.xlu0 %466, %v463
        %v468 = vpop.permute.xlu0 %467
        %471 = vset.pattern.permute.xlu0 0
        %472 = vperm.xlu0 %471, %v464
        %v473 = vpop.permute.xlu0 %472
        %v479 = vunpack.c.l.b16 %v423
        %v480 = vunpack.c.h.b16 %v423
        %v481 = vunpack.c.l.b16 %v424
        %v482 = vunpack.c.l.b16 %v425
        %v483 = vunpack.c.h.b16 %v425
        %v484 = vunpack.c.l.b16 %v426
        %v485 = vpack.c.b16 %v482, %v479
        %v486 = vpack.c.b16 %v483, %v480
        %v487 = vpack.c.b16 %v484, %v481
        %v526 = vunpack.c.l.b16 %v427
        %v527 = vunpack.c.h.b16 %v427
        %v528 = vunpack.c.l.b16 %v428
        %v529 = vunpack.c.h.b16 %v428
        %v530 = vunpack.c.l.b16 %v429
        %v531 = vunpack.c.h.b16 %v429
        %v532 = vunpack.c.l.b16 %v430
        %v533 = vunpack.c.h.b16 %v430
        %v534 = vunpack.c.l.b16 %v431
        %v535 = vunpack.c.h.b16 %v431
        %v536 = vunpack.c.l.b16 %v432
        %v537 = vunpack.c.h.b16 %v432
        %v538 = vunpack.c.l.b16 %v433
        %v539 = vunpack.c.h.b16 %v433
        %v540 = vunpack.c.l.b16 %v434
        %v541 = vunpack.c.h.b16 %v434
        %v542 = vunpack.c.l.b16 %v435
        %v543 = vunpack.c.h.b16 %v435
        %v544 = vunpack.c.l.b16 %v436
        %v545 = vunpack.c.h.b16 %v436
        %v546 = vunpack.c.l.b16 %v437
        %v547 = vunpack.c.h.b16 %v437
        %v548 = vunpack.c.l.b16 %v438
        %v549 = vunpack.c.h.b16 %v438
        %v550 = vunpack.c.l.b16 %v439
        %v551 = vunpack.c.h.b16 %v439
        %v552 = vunpack.c.l.b16 %v440
        %v553 = vunpack.c.h.b16 %v440
        %v554 = vunpack.c.l.b16 %v441
        %v555 = vunpack.c.h.b16 %v441
        %v556 = vunpack.c.l.b16 %v442
        %v557 = vunpack.c.h.b16 %v442
        %v558 = vunpack.c.l.b16 %v443
        %v559 = vunpack.c.h.b16 %v443
        %v560 = vunpack.c.l.b16 %v444
        %v561 = vunpack.c.h.b16 %v444
        %v562 = vunpack.c.l.b16 %v445
        %v563 = vunpack.c.h.b16 %v445
        %v564 = vunpack.c.l.b16 %v446
        %v565 = vunpack.c.h.b16 %v446
        %v566 = vunpack.c.l.b16 %v447
        %v567 = vunpack.c.h.b16 %v447
        %v568 = vunpack.c.l.b16 %v448
        %v569 = vunpack.c.h.b16 %v448
        %v570 = vunpack.c.l.b16 %v449
        %v571 = vunpack.c.h.b16 %v449
        %v572 = vunpack.c.l.b16 %v450
        %v573 = vunpack.c.h.b16 %v450
        %v574 = vunpack.c.l.b16 %v451
        %v575 = vunpack.c.h.b16 %v451
        %v576 = vunpack.c.l.b16 %v452
        %v577 = vunpack.c.h.b16 %v452
        %v578 = vunpack.c.l.b16 %v453
        %v579 = vunpack.c.h.b16 %v453
        %v580 = vunpack.c.l.b16 %v454
        %v581 = vunpack.c.h.b16 %v454
        %v582 = vunpack.c.l.b16 %v455
        %v583 = vunpack.c.h.b16 %v455
        %v584 = vunpack.c.l.b16 %v456
        %v585 = vunpack.c.h.b16 %v456
        %v586 = vunpack.c.l.b16 %v457
        %v587 = vunpack.c.h.b16 %v457
        %v588 = vunpack.c.l.b16 %v458
        %v589 = vunpack.c.h.b16 %v458
        %v590 = vunpack.c.l.b16 %v459
        %v591 = vunpack.c.h.b16 %v459
        %v592 = vunpack.c.l.b16 %v460
        %v593 = vunpack.c.h.b16 %v460
        %v594 = vunpack.c.l.b16 %v461
        %v595 = vunpack.c.h.b16 %v461
        %v596 = vunpack.c.l.b16 %v462
        %v597 = vunpack.c.h.b16 %v462
        %v598 = vpack.c.b16 %v528, %v526
        %v599 = vpack.c.b16 %v529, %v527
        %v600 = vpack.c.b16 %v532, %v530
        %v601 = vpack.c.b16 %v533, %v531
        %v602 = vpack.c.b16 %v536, %v534
        %v603 = vpack.c.b16 %v537, %v535
        %v604 = vpack.c.b16 %v540, %v538
        %v605 = vpack.c.b16 %v541, %v539
        %v606 = vpack.c.b16 %v544, %v542
        %v607 = vpack.c.b16 %v545, %v543
        %v608 = vpack.c.b16 %v548, %v546
        %v609 = vpack.c.b16 %v549, %v547
        %v610 = vpack.c.b16 %v552, %v550
        %v611 = vpack.c.b16 %v553, %v551
        %v612 = vpack.c.b16 %v556, %v554
        %v613 = vpack.c.b16 %v557, %v555
        %v614 = vpack.c.b16 %v560, %v558
        %v615 = vpack.c.b16 %v561, %v559
        %v616 = vpack.c.b16 %v564, %v562
        %v617 = vpack.c.b16 %v565, %v563
        %v618 = vpack.c.b16 %v568, %v566
        %v619 = vpack.c.b16 %v569, %v567
        %v620 = vpack.c.b16 %v572, %v570
        %v621 = vpack.c.b16 %v573, %v571
        %v622 = vpack.c.b16 %v576, %v574
        %v623 = vpack.c.b16 %v577, %v575
        %v624 = vpack.c.b16 %v580, %v578
        %v625 = vpack.c.b16 %v581, %v579
        %v626 = vpack.c.b16 %v584, %v582
        %v627 = vpack.c.b16 %v585, %v583
        %v628 = vpack.c.b16 %v588, %v586
        %v629 = vpack.c.b16 %v589, %v587
        %v630 = vpack.c.b16 %v592, %v590
        %v631 = vpack.c.b16 %v593, %v591
        %v632 = vpack.c.b16 %v596, %v594
        %v633 = vpack.c.b16 %v597, %v595
        %vm670 = vcmask 261120
        %v672 = vsel %vm670, %v487, 0
        %674 = vmatpush.bf16.msra.mxu0 %v612
        %675 = vmatpush.bf16.msra.mxu0 %v610
        %676 = vmatpush.bf16.msra.mxu0 %v608
        %677 = vmatpush.bf16.msra.mxu0 %v606
        %678 = vmatpush.bf16.msra.mxu0 %v604
        %679 = vmatpush.bf16.msra.mxu0 %v602
        %680 = vmatpush.bf16.msra.mxu0 %v600
        %681 = vmatpush.bf16.msra.mxu0 %v598
        %682 = vmatmul.bf16.gmra.mxu0 %v485
        %v683 = vpop.f32.mrf.mxu0
        %v684 = vadd.f32 %v468, %v683
        %v685 = vpop.f32.mrf.mxu0
        %v686 = vadd.f32 %v473, %v685
        %687 = vdwg.mxu0
        %688 = vmatpush.bf16.msra.mxu0 %v628
        %689 = vmatpush.bf16.msra.mxu0 %v626
        %690 = vmatpush.bf16.msra.mxu0 %v624
        %691 = vmatpush.bf16.msra.mxu0 %v622
        %692 = vmatpush.bf16.msra.mxu0 %v620
        %693 = vmatpush.bf16.msra.mxu0 %v618
        %694 = vmatpush.bf16.msra.mxu0 %v616
        %695 = vmatpush.bf16.msra.mxu0 %v614
        %696 = vmatmul.bf16.gmra.mxu0 %v486
        %v697 = vpop.f32.mrf.mxu0
        %v698 = vadd.f32 %v684, %v697
        %v699 = vpop.f32.mrf.mxu0
        %v700 = vadd.f32 %v686, %v699
        %701 = vdwg.mxu0
        %702 = vmatpush.bf16.msra.mxu0 0
        %703 = vmatpush.bf16.msra.mxu0 0
        %704 = vmatpush.bf16.msra.mxu0 0
        %705 = vmatpush.bf16.msra.mxu0 0
        %706 = vmatpush.bf16.msra.mxu0 0
        %707 = vmatpush.bf16.msra.mxu0 0
        %708 = vmatpush.bf16.msra.mxu0 %v632
        %709 = vmatpush.bf16.msra.mxu0 %v630
        %710 = vmatmul.bf16.gmra.mxu0 %v672
        %v711 = vpop.f32.mrf.mxu0
        %v712 = vadd.f32 %v698, %v711
        %v713 = vpop.f32.mrf.mxu0
        %v714 = vadd.f32 %v700, %v713
        %715 = vdwg.mxu0
        %716 = vmatpush.bf16.msra.mxu0 %v613
        %717 = vmatpush.bf16.msra.mxu0 %v611
        %718 = vmatpush.bf16.msra.mxu0 %v609
        %719 = vmatpush.bf16.msra.mxu0 %v607
        %720 = vmatpush.bf16.msra.mxu0 %v605
        %721 = vmatpush.bf16.msra.mxu0 %v603
        %722 = vmatpush.bf16.msra.mxu0 %v601
        %723 = vmatpush.bf16.msra.mxu0 %v599
        %724 = vmatmul.bf16.gmra.mxu0 %v485
        %v725 = vpop.f32.mrf.mxu0
        %v726 = vadd.f32 %v468, %v725
        %v727 = vpop.f32.mrf.mxu0
        %v728 = vadd.f32 %v473, %v727
        %729 = vdwg.mxu0
        %730 = vmatpush.bf16.msra.mxu0 %v629
        %731 = vmatpush.bf16.msra.mxu0 %v627
        %732 = vmatpush.bf16.msra.mxu0 %v625
        %733 = vmatpush.bf16.msra.mxu0 %v623
        %734 = vmatpush.bf16.msra.mxu0 %v621
        %735 = vmatpush.bf16.msra.mxu0 %v619
        %736 = vmatpush.bf16.msra.mxu0 %v617
        %737 = vmatpush.bf16.msra.mxu0 %v615
        %738 = vmatmul.bf16.gmra.mxu0 %v486
        %v739 = vpop.f32.mrf.mxu0
        %v740 = vadd.f32 %v726, %v739
        %v741 = vpop.f32.mrf.mxu0
        %v742 = vadd.f32 %v728, %v741
        %743 = vdwg.mxu0
        %744 = vmatpush.bf16.msra.mxu0 0
        %745 = vmatpush.bf16.msra.mxu0 0
        %746 = vmatpush.bf16.msra.mxu0 0
        %747 = vmatpush.bf16.msra.mxu0 0
        %748 = vmatpush.bf16.msra.mxu0 0
        %749 = vmatpush.bf16.msra.mxu0 0
        %750 = vmatpush.bf16.msra.mxu0 %v633
        %751 = vmatpush.bf16.msra.mxu0 %v631
        %752 = vmatmul.bf16.gmra.mxu0 %v672
        %v753 = vpop.f32.mrf.mxu0
        %v754 = vadd.f32 %v740, %v753
        %v755 = vpop.f32.mrf.mxu0
        %v756 = vadd.f32 %v742, %v755
        %757 = vdwg.mxu0
        %v758 = vpack.c.bf16 %v754, %v712
        %v759 = vpack.c.bf16 %v756, %v714
        %760 = vst [vmem:[%s395] sm:$0xff] %v758
        %761 = vst [vmem:[%s395 + $0x8] sm:$0xff] %v759
        %v762 = vadd.f32 %v712, %v754
        %763 = vadd.xlane.f32.xlu0 %v762
        %v764 = vpop.xlane.xlu0 %763
        %v765 = vadd.f32 %v714, %v756
        %766 = vadd.xlane.f32.xlu0 %v765
        %v767 = vpop.xlane.xlu0 %766
        %vm768 = vcmask 7168
        %769 = vst.msk [vmem:[%s416] sm:$0xff] %vm768, %v764
        %770 = vst.msk [vmem:[%s416 + $0x8] sm:$0xff] %vm768, %v767
        %v771 = vmul.f32 %v712, %v712
        %v772 = vmul.f32 %v754, %v754
        %v773 = vmul.f32 %v714, %v714
        %v774 = vmul.f32 %v756, %v756
        %v775 = vadd.f32 %v771, %v772
        %776 = vadd.xlane.f32.xlu0 %v775
        %v777 = vpop.xlane.xlu0 %776
        %v778 = vadd.f32 %v773, %v774
        %779 = vadd.xlane.f32.xlu0 %v778
        %v780 = vpop.xlane.xlu0 %779
        %781 = vst.msk [vmem:[%s421] sm:$0xff] %vm768, %v777
        %782 = vst.msk [vmem:[%s421 + $0x8] sm:$0xff] %vm768, %v780
        %s783 = sand.u32 %s93, 1
        %s784 = sand.u32 %s93, 1
        %s785 = smul.addr %s784, 16
        %s786 = scalar_lea.vmem [#allocation3], %s785
        %p787 = scmp.lt.s32.totalorder %s17, 1
        %s788 = scalar_select %p787, %s17, 1
        %s789 = smul.addr %s788, 2
        %s790 = smul.addr %s789, 8
        %s791 = scalar_lea.vmem %s4, %s790
        %p792 = scmp.lt.s32.totalorder %s17, 1
        %s793 = scalar_select %p792, %s17, 1
        %s794 = smul.addr %s793, 2
        %s795 = smul.addr %s794, 8
        %s796 = scalar_lea.vmem %s5, %s795
        // Predicated region
        $region71: #{decoder_forward.6} parent=65 // pred_check
          %p797 = pneg %p103
        $region72: #{decoder_forward.6} parent=65 // pred_check_branch
          %799 = sbr.rel (%p797) target = $region74
        $region73: #{decoder_forward.6} parent=65 // pred_region
          %s800 = smul.u32 2, %s17
          %s801 = smul.addr %s800, 4
          %s802 = scalar_lea.vmem %s3, %s801
          // Predicated region
          $region75: #{decoder_forward.6} parent=73 // pred_check
            _
          $region76: #{decoder_forward.6} parent=73 // pred_check_branch
            %804 = sbr.rel (0) target = $region78
          $region77: #{decoder_forward.6} parent=73 // pred_region
            // Predicated region
            $region79: #{decoder_forward.6} parent=77 // pred_check
              _
            $region80: #{decoder_forward.6} parent=77 // pred_check_branch
              %806 = sbr.rel (0) target = $region82
            $region81: #{decoder_forward.6} parent=77 // pred_region
              // Predicated region
              $region94: #{decoder_forward.6} parent=81 // pred_check
                _
              $region95: #{decoder_forward.6} parent=81 // pred_check_branch
                %824 = sbr.rel (0) target = $region97
              $region96: #{decoder_forward.6} parent=81 // pred_region
                loop: start=0, step=1, limit=1
                $region98: #{decoder_forward.6} parent=96 // loop_pre_header
                  _
                $region99: #{decoder_forward.6} parent=96 // loop_header
                  %s826 = sphi 0, %s830
                  %p827 = scmp.ge.s32.totalorder %s826, 1
                  %s831 = sphi %s786, %s786
                  %s832 = sphi %s802, %s802
                $region100: #{decoder_forward.6} parent=96 // loop_header_branch
                  %829 = sbr.rel (%p827) target = $region104
                $region101: #{decoder_forward.6} parent=96 // loop_body
                  %v833 = vld [vmem:[%s831] sm:$0xff]
                  %834 = vst [vmem:[%s832] sm:$0xff] %v833
                  %v835 = vld [vmem:[%s831 + $0x8] sm:$0xff]
                  %836 = vst [vmem:[%s832 + $0x10] sm:$0xff] %v835
                $region102: #{decoder_forward.6} parent=96 // loop_footer
                  %s830 = sadd.s32 1, %s826
                $region103: #{decoder_forward.6} parent=96 // loop_footer_branch
                  %825 = sbr.rel target = $region99
                $region104: #{decoder_forward.6} parent=96 // loop_exit
                  _
              $region97: #{decoder_forward.6} parent=81 // pred_fallthru
                _
              // Predicated region
              $region105: #{decoder_forward.6} parent=81 // pred_check
                _
              $region106: #{decoder_forward.6} parent=81 // pred_check_branch
                %838 = sbr.rel target = $region108
              $region107: #{decoder_forward.6} parent=81 // pred_region
                _
              $region108: #{decoder_forward.6} parent=81 // pred_fallthru
                _
            $region82: #{decoder_forward.6} parent=77 // pred_fallthru
              _
            // Predicated region
            $region83: #{decoder_forward.6} parent=77 // pred_check
              _
            $region84: #{decoder_forward.6} parent=77 // pred_check_branch
              %808 = sbr.rel target = $region86
            $region85: #{decoder_forward.6} parent=77 // pred_region
              %s810 = ssub.s32 256, 1
              loop: start=0, step=1, limit=1
              $region87: #{decoder_forward.6} parent=85 // loop_pre_header
                _
              $region88: #{decoder_forward.6} parent=85 // loop_header
                %s812 = sphi 0, %s816
                %p813 = scmp.ge.s32.totalorder %s812, 1
                %s817 = sphi %s786, %s786
                %s818 = sphi %s802, %s802
              $region89: #{decoder_forward.6} parent=85 // loop_header_branch
                %815 = sbr.rel (%p813) target = $region93
              $region90: #{decoder_forward.6} parent=85 // loop_body
                %v819 = vld [vmem:[%s817] sm:%s810]
                %820 = vst [vmem:[%s818] sm:%s810] %v819
                %v821 = vld [vmem:[%s817 + $0x8] sm:%s810]
                %822 = vst [vmem:[%s818 + $0x10] sm:%s810] %v821
              $region91: #{decoder_forward.6} parent=85 // loop_footer
                %s816 = sadd.s32 1, %s812
              $region92: #{decoder_forward.6} parent=85 // loop_footer_branch
                %811 = sbr.rel target = $region88
              $region93: #{decoder_forward.6} parent=85 // loop_exit
                _
            $region86: #{decoder_forward.6} parent=77 // pred_fallthru
              _
          $region78: #{decoder_forward.6} parent=73 // pred_fallthru
            _
          %839 = vnop
        $region74: #{decoder_forward.6} parent=65 // pred_fallthru
          _
        // Predicated region
        $region109: #{decoder_forward.6} parent=65 // pred_check
          %p840 = pneg %p129
        $region110: #{decoder_forward.6} parent=65 // pred_check_branch
          %842 = sbr.rel (%p840) target = $region112
        $region111: #{decoder_forward.6} parent=65 // pred_region
          _
        $region112: #{decoder_forward.6} parent=65 // pred_fallthru
          _
        // Predicated region
        $region113: #{decoder_forward.6} parent=65 // pred_check
          %p843 = pneg %p155
        $region114: #{decoder_forward.6} parent=65 // pred_check_branch
          %845 = sbr.rel (%p843) target = $region116
        $region115: #{decoder_forward.6} parent=65 // pred_region
          _
        $region116: #{decoder_forward.6} parent=65 // pred_fallthru
          _
      $region66: #{decoder_forward.6} parent=5 // pred_fallthru
        _
      %p846 = scmp.le.s32.totalorder 2, %s12
      // Predicated region
      $region117: #{decoder_forward.6} parent=5 // pred_check
        %p847 = pneg %p846
      $region118: #{decoder_forward.6} parent=5 // pred_check_branch
        %849 = sbr.rel (%p847) target = $region120
      $region119: #{decoder_forward.6} parent=5 // pred_region
        %s850 = ssub.s32 %s12, 2
        // Predicated region
        $region121: #{decoder_forward.6} parent=119 // pred_check
          %p851 = pneg %p109
        $region122: #{decoder_forward.6} parent=119 // pred_check_branch
          %853 = sbr.rel (%p851) target = $region124
        $region123: #{decoder_forward.6} parent=119 // pred_region
          %s854 = sand.u32 %s94, 1
          %s855 = sand.u32 %s94, 1
          %s856 = smul.addr %s855, 16
          %s857 = scalar_lea.vmem [#allocation3], %s856
        $region124: #{decoder_forward.6} parent=119 // pred_fallthru
          _
        // Predicated region
        $region125: #{decoder_forward.6} parent=119 // pred_check
          %p858 = pneg %p135
        $region126: #{decoder_forward.6} parent=119 // pred_check_branch
          %860 = sbr.rel (%p858) target = $region128
        $region127: #{decoder_forward.6} parent=119 // pred_region
          %p861 = scmp.lt.s32.totalorder %s18, 1
          %s862 = scalar_select %p861, %s18, 1
          %s863 = smul.addr %s862, 2
          %s864 = smul.addr %s863, 8
          %s865 = scalar_lea.vmem %s4, %s864
        $region128: #{decoder_forward.6} parent=119 // pred_fallthru
          _
        // Predicated region
        $region129: #{decoder_forward.6} parent=119 // pred_check
          %p866 = pneg %p161
        $region130: #{decoder_forward.6} parent=119 // pred_check_branch
          %868 = sbr.rel (%p866) target = $region132
        $region131: #{decoder_forward.6} parent=119 // pred_region
          %p869 = scmp.lt.s32.totalorder %s18, 1
          %s870 = scalar_select %p869, %s18, 1
          %s871 = smul.addr %s870, 2
          %s872 = smul.addr %s871, 8
          %s873 = scalar_lea.vmem %s5, %s872
        $region132: #{decoder_forward.6} parent=119 // pred_fallthru
          _
      $region120: #{decoder_forward.6} parent=5 // pred_fallthru
        _
    $region6: #{decoder_forward.6} parent=1 // loop_footer
      %s16 = sadd.s32 1, %s12
    $region7: #{decoder_forward.6} parent=1 // loop_footer_branch
      %11 = sbr.rel target = $region3
    $region8: #{decoder_forward.6} parent=1 // loop_exit
      _

// kernel: tile.32
$region0: #{tile.32}
  #allocation0 [shape = 's32[1]{0}', space=sflag, size = 0x4, scoped, tag = 'scoped memory for tile.32']
  %s0 = inlined_call_operand.vmem [shape: f32[16], index: 0, kind: input, shape index: {}]
  %s1 = inlined_call_operand.vmem [shape: f32[4,16], index: 1, kind: output, shape index: {}]
  // Predicated region
  $region2: #{tile.32} parent=0 // pred_check
    _
  $region3: #{tile.32} parent=0 // pred_check_branch
    %3 = sbr.rel (0) target = $region5
  $region4: #{tile.32} parent=0 // pred_region
    _
  $region5: #{tile.32} parent=0 // pred_fallthru
    _
  %v4 = vld [vmem:[%s0] ss:$0 sm:$0xff]
  %5 = vst [vmem:[%s1] sm:$0xf] %v4

// kernel: decoder_forward.7
$region0: #{decoder_forward.7}
  #allocation0 [shape = 'u32[]', space=smem, size = 0x4, offset = 0x4, fixed_abs, tag = 'smem constant byte address 0x4 - core index']
  #allocation1 [shape = 'u32[72,128]{1,0:T(1,128)}', space=vmem, size = 0x9000, scoped, tag = 'internal scratch']
  %s0 = inlined_call_operand.vmem [shape: bf16[64,512], index: 0, kind: input, shape index: {}]
  %s1 = inlined_call_operand.vmem [shape: bf16[64,64], index: 1, kind: input, shape index: {}]
  %s2 = inlined_call_operand.vmem [shape: f32[64,1], index: 2, kind: input, shape index: {}]
  %s3 = inlined_call_operand.vmem [shape: bf16[64,512], index: 3, kind: output, shape index: {0}]
  %s4 = inlined_call_operand.vmem [shape: f32[2,64,1], index: 4, kind: output, shape index: {1}]
  %s5 = inlined_call_operand.vmem [shape: f32[2,64,1], index: 5, kind: output, shape index: {2}]
  %6 = xla_tuple %s3, %s4, %s5
  %s7 = sld [smem:[#allocation0]]
  $region133: #{decoder_forward.7} parent=0
    _
  %s9 = ssub.s32 1, %s7
  %s10 = scalar_select 0, %s9, %s7
  $region1: #{decoder_forward.7} parent=0
    #allocation2 [shape = 'u8[65536]{0}', space=vmem, size = 0x10000, scoped, tag = 'input window, operand 0']
    #allocation3 [shape = 'u8[65536]{0}', space=vmem, size = 0x10000, scoped, tag = 'output window, operand 0']
    loop: start=0, step=1, limit=4
    $region2: #{decoder_forward.7} parent=1 // loop_pre_header
      _
    $region3: #{decoder_forward.7} parent=1 // loop_header
      %s12 = sphi 0, %s16
      %p13 = scmp.ge.s32.totalorder %s12, 4
      %s22 = sphi 0, %s24
      %s25 = sphi 0, %s22
      %s26 = sphi 0, %s25
      %s42 = sphi 0, %s26
      %s46 = sphi 0, %s46
      %s48 = sphi 0, %s46
      %s49 = sphi 0, %s48
      %s63 = sphi 0, %s49
      %s67 = sphi 0, %s67
      %s69 = sphi 0, %s67
      %s70 = sphi 0, %s69
      %s84 = sphi 0, %s70
      %s90 = sphi 0, %s92
      %s93 = sphi 0, %s90
      %s94 = sphi 0, %s93
      %s110 = sphi 0, %s94
      %s116 = sphi 0, %s118
      %s119 = sphi 0, %s116
      %s120 = sphi 0, %s119
      %s136 = sphi 0, %s120
      %s142 = sphi 0, %s144
      %s145 = sphi 0, %s142
      %s146 = sphi 0, %s145
      %s162 = sphi 0, %s146
    $region4: #{decoder_forward.7} parent=1 // loop_header_branch
      %15 = sbr.rel (%p13) target = $region8
    $region5: #{decoder_forward.7} parent=1 // loop_body
      %s17 = ssub.s32 %s12, 1
      %s18 = ssub.s32 %s12, 2
      %s19 = sadd.s32 %s12, 1
      %s20 = ssub.s32 %s12, %s19
      %p21 = scmp.eq.s32.totalorder %s20, 0
      %s23 = sadd.s32 %s22, 1
      %s24 = scalar_select %p21, %s22, %s23
      %p27 = pneg %p21
      %p28 = scmp.eq.s32.totalorder %s12, 1
      %p29 = por %p27, %p28
      %p30 = scmp.ne.s32.totalorder %s22, %s25
      %p31 = scmp.eq.s32.totalorder %s12, 0
      %p32 = por %p30, %p31
      %p33 = scmp.ne.s32.totalorder %s22, %s25
      %p34 = scmp.eq.s32.totalorder %s17, 1
      %p35 = por %p33, %p34
      %p36 = scmp.ne.s32.totalorder %s25, %s26
      %p37 = scmp.eq.s32.totalorder %s17, 0
      %p38 = por %p36, %p37
      %p39 = scmp.ne.s32.totalorder %s25, %s26
      %p40 = scmp.eq.s32.totalorder %s18, 1
      %p41 = por %p39, %p40
      %p43 = scmp.ne.s32.totalorder %s26, %s42
      %p44 = scmp.eq.s32.totalorder %s18, 0
      %p45 = por %p43, %p44
      %s47 = sadd.s32 %s46, 1
      %p50 = scmp.eq.s32.totalorder %s12, 1
      %p51 = scmp.ne.s32.totalorder %s46, %s48
      %p52 = scmp.eq.s32.totalorder %s12, 0
      %p53 = por %p51, %p52
      %p54 = scmp.ne.s32.totalorder %s46, %s48
      %p55 = scmp.eq.s32.totalorder %s17, 1
      %p56 = por %p54, %p55
      %p57 = scmp.ne.s32.totalorder %s48, %s49
      %p58 = scmp.eq.s32.totalorder %s17, 0
      %p59 = por %p57, %p58
      %p60 = scmp.ne.s32.totalorder %s48, %s49
      %p61 = scmp.eq.s32.totalorder %s18, 1
      %p62 = por %p60, %p61
      %p64 = scmp.ne.s32.totalorder %s49, %s63
      %p65 = scmp.eq.s32.totalorder %s18, 0
      %p66 = por %p64, %p65
      %s68 = sadd.s32 %s67, 1
      %p71 = scmp.eq.s32.totalorder %s12, 1
      %p72 = scmp.ne.s32.totalorder %s67, %s69
      %p73 = scmp.eq.s32.totalorder %s12, 0
      %p74 = por %p72, %p73
      %p75 = scmp.ne.s32.totalorder %s67, %s69
      %p76 = scmp.eq.s32.totalorder %s17, 1
      %p77 = por %p75, %p76
      %p78 = scmp.ne.s32.totalorder %s69, %s70
      %p79 = scmp.eq.s32.totalorder %s17, 0
      %p80 = por %p78, %p79
      %p81 = scmp.ne.s32.totalorder %s69, %s70
      %p82 = scmp.eq.s32.totalorder %s18, 1
      %p83 = por %p81, %p82
      %p85 = scmp.ne.s32.totalorder %s70, %s84
      %p86 = scmp.eq.s32.totalorder %s18, 0
      %p87 = por %p85, %p86
      %s88 = ssub.s32 %s12, %s19
      %p89 = scmp.eq.s32.totalorder %s88, 0
      %s91 = sadd.s32 %s90, 1
      %s92 = scalar_select %p89, %s90, %s91
      %p95 = pneg %p89
      %p96 = scmp.eq.s32.totalorder %s12, 1
      %p97 = por %p95, %p96
      %p98 = scmp.ne.s32.totalorder %s90, %s93
      %p99 = scmp.eq.s32.totalorder %s12, 0
      %p100 = por %p98, %p99
      %p101 = scmp.ne.s32.totalorder %s90, %s93
      %p102 = scmp.eq.s32.totalorder %s17, 1
      %p103 = por %p101, %p102
      %p104 = scmp.ne.s32.totalorder %s93, %s94
      %p105 = scmp.eq.s32.totalorder %s17, 0
      %p106 = por %p104, %p105
      %p107 = scmp.ne.s32.totalorder %s93, %s94
      %p108 = scmp.eq.s32.totalorder %s18, 1
      %p109 = por %p107, %p108
      %p111 = scmp.ne.s32.totalorder %s94, %s110
      %p112 = scmp.eq.s32.totalorder %s18, 0
      %p113 = por %p111, %p112
      %s114 = ssub.s32 %s12, %s19
      %p115 = scmp.eq.s32.totalorder %s114, 0
      %s117 = sadd.s32 %s116, 1
      %s118 = scalar_select %p115, %s116, %s117
      %p121 = pneg %p115
      %p122 = scmp.eq.s32.totalorder %s12, 1
      %p123 = por %p121, %p122
      %p124 = scmp.ne.s32.totalorder %s116, %s119
      %p125 = scmp.eq.s32.totalorder %s12, 0
      %p126 = por %p124, %p125
      %p127 = scmp.ne.s32.totalorder %s116, %s119
      %p128 = scmp.eq.s32.totalorder %s17, 1
      %p129 = por %p127, %p128
      %p130 = scmp.ne.s32.totalorder %s119, %s120
      %p131 = scmp.eq.s32.totalorder %s17, 0
      %p132 = por %p130, %p131
      %p133 = scmp.ne.s32.totalorder %s119, %s120
      %p134 = scmp.eq.s32.totalorder %s18, 1
      %p135 = por %p133, %p134
      %p137 = scmp.ne.s32.totalorder %s120, %s136
      %p138 = scmp.eq.s32.totalorder %s18, 0
      %p139 = por %p137, %p138
      %s140 = ssub.s32 %s12, %s19
      %p141 = scmp.eq.s32.totalorder %s140, 0
      %s143 = sadd.s32 %s142, 1
      %s144 = scalar_select %p141, %s142, %s143
      %p147 = pneg %p141
      %p148 = scmp.eq.s32.totalorder %s12, 1
      %p149 = por %p147, %p148
      %p150 = scmp.ne.s32.totalorder %s142, %s145
      %p151 = scmp.eq.s32.totalorder %s12, 0
      %p152 = por %p150, %p151
      %p153 = scmp.ne.s32.totalorder %s142, %s145
      %p154 = scmp.eq.s32.totalorder %s17, 1
      %p155 = por %p153, %p154
      %p156 = scmp.ne.s32.totalorder %s145, %s146
      %p157 = scmp.eq.s32.totalorder %s17, 0
      %p158 = por %p156, %p157
      %p159 = scmp.ne.s32.totalorder %s145, %s146
      %p160 = scmp.eq.s32.totalorder %s18, 1
      %p161 = por %p159, %p160
      %p163 = scmp.ne.s32.totalorder %s146, %s162
      %p164 = scmp.eq.s32.totalorder %s18, 0
      %p165 = por %p163, %p164
      %p166 = scmp.le.s32.totalorder 1, %s12
      %p167 = scmp.lt.s32.totalorder %s12, 3
      %p168 = pnand %p166, %p167
      %p169 = pneg %p168
      // Predicated region
      $region9: #{decoder_forward.7} parent=5 // pred_check
        _
      $region10: #{decoder_forward.7} parent=5 // pred_check_branch
        %171 = sbr.rel (%p168) target = $region12
      $region11: #{decoder_forward.7} parent=5 // pred_region
        %s172 = ssub.s32 %s12, 1
        // Predicated region
        $region13: #{decoder_forward.7} parent=11 // pred_check
          %p173 = pneg %p59
        $region14: #{decoder_forward.7} parent=11 // pred_check_branch
          %175 = sbr.rel (%p173) target = $region16
        $region15: #{decoder_forward.7} parent=11 // pred_region
          _
        $region16: #{decoder_forward.7} parent=11 // pred_fallthru
          _
        // Predicated region
        $region17: #{decoder_forward.7} parent=11 // pred_check
          %p176 = pneg %p80
        $region18: #{decoder_forward.7} parent=11 // pred_check_branch
          %178 = sbr.rel (%p176) target = $region20
        $region19: #{decoder_forward.7} parent=11 // pred_region
          _
        $region20: #{decoder_forward.7} parent=11 // pred_fallthru
          _
      $region12: #{decoder_forward.7} parent=5 // pred_fallthru
        _
      %p179 = scmp.lt.s32.totalorder %s12, 2
      // Predicated region
      $region21: #{decoder_forward.7} parent=5 // pred_check
        %p180 = pneg %p179
      $region22: #{decoder_forward.7} parent=5 // pred_check_branch
        %182 = sbr.rel (%p180) target = $region24
      $region23: #{decoder_forward.7} parent=5 // pred_region
        // Predicated region
        $region25: #{decoder_forward.7} parent=23 // pred_check
          %p183 = pneg %p32
        $region26: #{decoder_forward.7} parent=23 // pred_check_branch
          %185 = sbr.rel (%p183) target = $region28
        $region27: #{decoder_forward.7} parent=23 // pred_region
          %s186 = sand.u32 %s22, 1
          %s187 = sand.u32 %s22, 1
          %s188 = smul.addr %s187, 64
          %s189 = scalar_lea.vmem [#allocation2], %s188
          %s190 = smul.u32 2, %s12
          %s191 = smul.addr %s190, 4
          %s192 = scalar_lea.vmem %s0, %s191
          // Predicated region
          $region29: #{decoder_forward.7} parent=27 // pred_check
            _
          $region30: #{decoder_forward.7} parent=27 // pred_check_branch
            %194 = sbr.rel (0) target = $region32
          $region31: #{decoder_forward.7} parent=27 // pred_region
            // Predicated region
            $region33: #{decoder_forward.7} parent=31 // pred_check
              _
            $region34: #{decoder_forward.7} parent=31 // pred_check_branch
              %196 = sbr.rel (0) target = $region36
            $region35: #{decoder_forward.7} parent=31 // pred_region
              // Predicated region
              $region48: #{decoder_forward.7} parent=35 // pred_check
                _
              $region49: #{decoder_forward.7} parent=35 // pred_check_branch
                %226 = sbr.rel (0) target = $region51
              $region50: #{decoder_forward.7} parent=35 // pred_region
                loop: start=0, step=1, limit=1
                $region52: #{decoder_forward.7} parent=50 // loop_pre_header
                  _
                $region53: #{decoder_forward.7} parent=50 // loop_header
                  %s228 = sphi 0, %s232
                  %p229 = scmp.ge.s32.totalorder %s228, 1
                  %s233 = sphi %s192, %s192
                  %s234 = sphi %s189, %s189
                $region54: #{decoder_forward.7} parent=50 // loop_header_branch
                  %231 = sbr.rel (%p229) target = $region58
                $region55: #{decoder_forward.7} parent=50 // loop_body
                  %v235 = vld [vmem:[%s233] sm:$0xff]
                  %236 = vst [vmem:[%s234] sm:$0xff] %v235
                  %v237 = vld [vmem:[%s233 + $0x10] sm:$0xff]
                  %238 = vst [vmem:[%s234 + $0x8] sm:$0xff] %v237
                  %v239 = vld [vmem:[%s233 + $0x20] sm:$0xff]
                  %240 = vst [vmem:[%s234 + $0x10] sm:$0xff] %v239
                  %v241 = vld [vmem:[%s233 + $0x30] sm:$0xff]
                  %242 = vst [vmem:[%s234 + $0x18] sm:$0xff] %v241
                  %v243 = vld [vmem:[%s233 + $0x40] sm:$0xff]
                  %244 = vst [vmem:[%s234 + $0x20] sm:$0xff] %v243
                  %v245 = vld [vmem:[%s233 + $0x50] sm:$0xff]
                  %246 = vst [vmem:[%s234 + $0x28] sm:$0xff] %v245
                  %v247 = vld [vmem:[%s233 + $0x60] sm:$0xff]
                  %248 = vst [vmem:[%s234 + $0x30] sm:$0xff] %v247
                  %v249 = vld [vmem:[%s233 + $0x70] sm:$0xff]
                  %250 = vst [vmem:[%s234 + $0x38] sm:$0xff] %v249
                $region56: #{decoder_forward.7} parent=50 // loop_footer
                  %s232 = sadd.s32 1, %s228
                $region57: #{decoder_forward.7} parent=50 // loop_footer_branch
                  %227 = sbr.rel target = $region53
                $region58: #{decoder_forward.7} parent=50 // loop_exit
                  _
              $region51: #{decoder_forward.7} parent=35 // pred_fallthru
                _
              // Predicated region
              $region59: #{decoder_forward.7} parent=35 // pred_check
                _
              $region60: #{decoder_forward.7} parent=35 // pred_check_branch
                %252 = sbr.rel target = $region62
              $region61: #{decoder_forward.7} parent=35 // pred_region
                _
              $region62: #{decoder_forward.7} parent=35 // pred_fallthru
                _
            $region36: #{decoder_forward.7} parent=31 // pred_fallthru
              _
            // Predicated region
            $region37: #{decoder_forward.7} parent=31 // pred_check
              _
            $region38: #{decoder_forward.7} parent=31 // pred_check_branch
              %198 = sbr.rel target = $region40
            $region39: #{decoder_forward.7} parent=31 // pred_region
              %s200 = ssub.s32 256, 1
              loop: start=0, step=1, limit=1
              $region41: #{decoder_forward.7} parent=39 // loop_pre_header
                _
              $region42: #{decoder_forward.7} parent=39 // loop_header
                %s202 = sphi 0, %s206
                %p203 = scmp.ge.s32.totalorder %s202, 1
                %s207 = sphi %s192, %s192
                %s208 = sphi %s189, %s189
              $region43: #{decoder_forward.7} parent=39 // loop_header_branch
                %205 = sbr.rel (%p203) target = $region47
              $region44: #{decoder_forward.7} parent=39 // loop_body
                %v209 = vld [vmem:[%s207] sm:%s200]
                %210 = vst [vmem:[%s208] sm:%s200] %v209
                %v211 = vld [vmem:[%s207 + $0x10] sm:%s200]
                %212 = vst [vmem:[%s208 + $0x8] sm:%s200] %v211
                %v213 = vld [vmem:[%s207 + $0x20] sm:%s200]
                %214 = vst [vmem:[%s208 + $0x10] sm:%s200] %v213
                %v215 = vld [vmem:[%s207 + $0x30] sm:%s200]
                %216 = vst [vmem:[%s208 + $0x18] sm:%s200] %v215
                %v217 = vld [vmem:[%s207 + $0x40] sm:%s200]
                %218 = vst [vmem:[%s208 + $0x20] sm:%s200] %v217
                %v219 = vld [vmem:[%s207 + $0x50] sm:%s200]
                %220 = vst [vmem:[%s208 + $0x28] sm:%s200] %v219
                %v221 = vld [vmem:[%s207 + $0x60] sm:%s200]
                %222 = vst [vmem:[%s208 + $0x30] sm:%s200] %v221
                %v223 = vld [vmem:[%s207 + $0x70] sm:%s200]
                %224 = vst [vmem:[%s208 + $0x38] sm:%s200] %v223
              $region45: #{decoder_forward.7} parent=39 // loop_footer
                %s206 = sadd.s32 1, %s202
              $region46: #{decoder_forward.7} parent=39 // loop_footer_branch
                %201 = sbr.rel target = $region42
              $region47: #{decoder_forward.7} parent=39 // loop_exit
                _
            $region40: #{decoder_forward.7} parent=31 // pred_fallthru
              _
          $region32: #{decoder_forward.7} parent=27 // pred_fallthru
            _
          %253 = vnop
        $region28: #{decoder_forward.7} parent=23 // pred_fallthru
          _
      $region24: #{decoder_forward.7} parent=5 // pred_fallthru
        _
      %p254 = scmp.le.s32.totalorder 1, %s12
      %p255 = scmp.lt.s32.totalorder %s12, 3
      %p256 = pnand %p254, %p255
      %p257 = pneg %p256
      // Predicated region
      $region63: #{decoder_forward.7} parent=5 // pred_check
        _
      $region64: #{decoder_forward.7} parent=5 // pred_check_branch
        %259 = sbr.rel (%p256) target = $region66
      $region65: #{decoder_forward.7} parent=5 // pred_region
        %s260 = ssub.s32 %s12, 1
        %s261 = sand.u32 %s25, 1
        %s262 = sand.u32 %s25, 1
        %s263 = smul.addr %s262, 64
        %s264 = scalar_lea.vmem [#allocation2], %s263
        // Predicated region
        $region67: #{decoder_forward.7} parent=65 // pred_check
          %p265 = pneg %p38
        $region68: #{decoder_forward.7} parent=65 // pred_check_branch
          %267 = sbr.rel (%p265) target = $region70
        $region69: #{decoder_forward.7} parent=65 // pred_region
          _
        $region70: #{decoder_forward.7} parent=65 // pred_fallthru
          _
        %s268 = sand.u32 %s25, 1
        %s269 = sand.u32 %s25, 1
        %s270 = smul.addr %s269, 64
        %s271 = scalar_lea.vmem [#allocation2], %s270
        %p272 = pneg %p38
        %p273 = pneg %p35
        %p274 = pneg %p59
        %p275 = pneg %p56
        %p276 = pneg %p80
        %p277 = pneg %p77
        %p278 = pneg %p106
        %p279 = pneg %p103
        %s280 = sand.u32 %s93, 1
        %s281 = sand.u32 %s93, 1
        %s282 = smul.addr %s281, 64
        %s283 = scalar_lea.vmem [#allocation3], %s282
        %p284 = pneg %p132
        %p285 = pneg %p129
        %p286 = scmp.lt.s32.totalorder %s17, 1
        %s287 = scalar_select %p286, %s17, 1
        %s288 = smul.addr %s287, 8
        %s289 = smul.addr %s288, 8
        %s290 = scalar_lea.vmem %s4, %s289
        %p291 = pneg %p158
        %p292 = pneg %p155
        %p293 = scmp.lt.s32.totalorder %s17, 1
        %s294 = scalar_select %p293, %s17, 1
        %s295 = smul.addr %s294, 8
        %s296 = smul.addr %s295, 8
        %s297 = scalar_lea.vmem %s5, %s296
        %s298 = smul.u32 2, %s17
        %s299 = smul.u32 2, %s17
        %p300 = scmp.lt.s32.totalorder %s17, 1
        %s301 = scalar_select %p300, %s17, 1
        %s302 = smul.addr %s301, 8
        %s303 = smul.addr %s302, 8
        %s304 = scalar_lea.vmem %s4, %s303
        %p305 = scmp.lt.s32.totalorder %s17, 1
        %s306 = scalar_select %p305, %s17, 1
        %s307 = smul.addr %s306, 8
        %s308 = smul.addr %s307, 8
        %s309 = scalar_lea.vmem %s5, %s308
        %v311 = vld [vmem:[%s1] sm:$0xf]
        %v312 = vld [vmem:[%s1 + $0x4] sm:$0xf]
        %v313 = vld [vmem:[%s1 + $0x8] sm:$0xf]
        %v314 = vld [vmem:[%s1 + $0xc] sm:$0xf]
        %v315 = vld [vmem:[%s1 + $0x10] sm:$0xf]
        %v316 = vld [vmem:[%s1 + $0x14] sm:$0xf]
        %v317 = vld [vmem:[%s1 + $0x18] sm:$0xf]
        %v318 = vld [vmem:[%s1 + $0x1c] sm:$0xf]
        %v319 = vld [vmem:[%s264] sm:$0xff]
        %v320 = vld [vmem:[%s264 + $0x8] sm:$0xff]
        %v321 = vld [vmem:[%s264 + $0x10] sm:$0xff]
        %v322 = vld [vmem:[%s264 + $0x18] sm:$0xff]
        %v323 = vld [vmem:[%s264 + $0x20] sm:$0xff]
        %v324 = vld [vmem:[%s264 + $0x28] sm:$0xff]
        %v325 = vld [vmem:[%s264 + $0x30] sm:$0xff]
        %v326 = vld [vmem:[%s264 + $0x38] sm:$0xff]
        %v327 = vld [vmem:[%s2] sm:$0xff]
        %v328 = vld [vmem:[%s2 + $0x8] sm:$0xff]
        %v329 = vld [vmem:[%s2 + $0x10] sm:$0xff]
        %v330 = vld [vmem:[%s2 + $0x18] sm:$0xff]
        %v331 = vld [vmem:[%s2 + $0x20] sm:$0xff]
        %v332 = vld [vmem:[%s2 + $0x28] sm:$0xff]
        %v333 = vld [vmem:[%s2 + $0x30] sm:$0xff]
        %v334 = vld [vmem:[%s2 + $0x38] sm:$0xff]
        %336 = vset.pattern.permute.xlu0 0
        %337 = vperm.xlu0 %336, %v327
        %v338 = vpop.permute.xlu0 %337
        %341 = vset.pattern.permute.xlu0 0
        %342 = vperm.xlu0 %341, %v328
        %v343 = vpop.permute.xlu0 %342
        %346 = vset.pattern.permute.xlu0 0
        %347 = vperm.xlu0 %346, %v329
        %v348 = vpop.permute.xlu0 %347
        %351 = vset.pattern.permute.xlu0 0
        %352 = vperm.xlu0 %351, %v330
        %v353 = vpop.permute.xlu0 %352
        %356 = vset.pattern.permute.xlu0 0
        %357 = vperm.xlu0 %356, %v331
        %v358 = vpop.permute.xlu0 %357
        %361 = vset.pattern.permute.xlu0 0
        %362 = vperm.xlu0 %361, %v332
        %v363 = vpop.permute.xlu0 %362
        %366 = vset.pattern.permute.xlu0 0
        %367 = vperm.xlu0 %366, %v333
        %v368 = vpop.permute.xlu0 %367
        %371 = vset.pattern.permute.xlu0 0
        %372 = vperm.xlu0 %371, %v334
        %v373 = vpop.permute.xlu0 %372
        %v383 = vunpack.c.l.b16 %v311
        %v384 = vunpack.c.l.b16 %v312
        %v385 = vunpack.c.l.b16 %v313
        %v386 = vunpack.c.l.b16 %v314
        %v387 = vunpack.c.l.b16 %v315
        %v388 = vunpack.c.l.b16 %v316
        %v389 = vunpack.c.l.b16 %v317
        %v390 = vunpack.c.l.b16 %v318
        %v391 = vpack.c.b16 %v384, %v383
        %v392 = vpack.c.b16 %v386, %v385
        %v393 = vpack.c.b16 %v388, %v387
        %v394 = vpack.c.b16 %v390, %v389
        %v403 = vunpack.c.l.b16 %v319
        %v404 = vunpack.c.h.b16 %v319
        %v405 = vunpack.c.l.b16 %v320
        %v406 = vunpack.c.h.b16 %v320
        %v407 = vunpack.c.l.b16 %v321
        %v408 = vunpack.c.h.b16 %v321
        %v409 = vunpack.c.l.b16 %v322
        %v410 = vunpack.c.h.b16 %v322
        %v411 = vunpack.c.l.b16 %v323
        %v412 = vunpack.c.h.b16 %v323
        %v413 = vunpack.c.l.b16 %v324
        %v414 = vunpack.c.h.b16 %v324
        %v415 = vunpack.c.l.b16 %v325
        %v416 = vunpack.c.h.b16 %v325
        %v417 = vunpack.c.l.b16 %v326
        %v418 = vunpack.c.h.b16 %v326
        %v419 = vpack.c.b16 %v405, %v403
        %v420 = vpack.c.b16 %v406, %v404
        %v421 = vpack.c.b16 %v409, %v407
        %v422 = vpack.c.b16 %v410, %v408
        %v423 = vpack.c.b16 %v413, %v411
        %v424 = vpack.c.b16 %v414, %v412
        %v425 = vpack.c.b16 %v417, %v415
        %v426 = vpack.c.b16 %v418, %v416
        %vm435 = vcmask 523264
        %v437 = vsel %vm435, %v391, 0
        %v440 = vsel %vm435, %v392, 0
        %v443 = vsel %vm435, %v393, 0
        %v446 = vsel %vm435, %v394, 0
        %448 = vmatpush.bf16.msra.mxu0 0
        %449 = vmatpush.bf16.msra.mxu0 0
        %450 = vmatpush.bf16.msra.mxu0 0
        %451 = vmatpush.bf16.msra.mxu0 0
        %452 = vmatpush.bf16.msra.mxu0 %v425
        %453 = vmatpush.bf16.msra.mxu0 %v423
        %454 = vmatpush.bf16.msra.mxu0 %v421
        %455 = vmatpush.bf16.msra.mxu0 %v419
        %456 = vmatmul.bf16.gmra.mxu0 %v437
        %v457 = vpop.f32.mrf.mxu0
        %v458 = vadd.f32 %v338, %v457
        %v459 = vpop.f32.mrf.mxu0
        %v460 = vadd.f32 %v343, %v459
        %461 = vmatmul.bf16.gmra.mxu0 %v440
        %v462 = vpop.f32.mrf.mxu0
        %v463 = vadd.f32 %v348, %v462
        %v464 = vpop.f32.mrf.mxu0
        %v465 = vadd.f32 %v353, %v464
        %466 = vmatmul.bf16.gmra.mxu0 %v443
        %v467 = vpop.f32.mrf.mxu0
        %v468 = vadd.f32 %v358, %v467
        %v469 = vpop.f32.mrf.mxu0
        %v470 = vadd.f32 %v363, %v469
        %471 = vmatmul.bf16.gmra.mxu0 %v446
        %v472 = vpop.f32.mrf.mxu0
        %v473 = vadd.f32 %v368, %v472
        %v474 = vpop.f32.mrf.mxu0
        %v475 = vadd.f32 %v373, %v474
        %476 = vdwg.mxu0
        %477 = vmatpush.bf16.msra.mxu0 0
        %478 = vmatpush.bf16.msra.mxu0 0
        %479 = vmatpush.bf16.msra.mxu0 0
        %480 = vmatpush.bf16.msra.mxu0 0
        %481 = vmatpush.bf16.msra.mxu0 %v426
        %482 = vmatpush.bf16.msra.mxu0 %v424
        %483 = vmatpush.bf16.msra.mxu0 %v422
        %484 = vmatpush.bf16.msra.mxu0 %v420
        %485 = vmatmul.bf16.gmra.mxu0 %v437
        %v486 = vpop.f32.mrf.mxu0
        %v487 = vadd.f32 %v338, %v486
        %v488 = vpop.f32.mrf.mxu0
        %v489 = vadd.f32 %v343, %v488
        %490 = vmatmul.bf16.gmra.mxu0 %v440
        %v491 = vpop.f32.mrf.mxu0
        %v492 = vadd.f32 %v348, %v491
        %v493 = vpop.f32.mrf.mxu0
        %v494 = vadd.f32 %v353, %v493
        %495 = vmatmul.bf16.gmra.mxu0 %v443
        %v496 = vpop.f32.mrf.mxu0
        %v497 = vadd.f32 %v358, %v496
        %v498 = vpop.f32.mrf.mxu0
        %v499 = vadd.f32 %v363, %v498
        %500 = vmatmul.bf16.gmra.mxu0 %v446
        %v501 = vpop.f32.mrf.mxu0
        %v502 = vadd.f32 %v368, %v501
        %v503 = vpop.f32.mrf.mxu0
        %v504 = vadd.f32 %v373, %v503
        %505 = vdwg.mxu0
        %v506 = vpack.c.bf16 %v487, %v458
        %v507 = vpack.c.bf16 %v489, %v460
        %v508 = vpack.c.bf16 %v492, %v463
        %v509 = vpack.c.bf16 %v494, %v465
        %v510 = vpack.c.bf16 %v497, %v468
        %v511 = vpack.c.bf16 %v499, %v470
        %v512 = vpack.c.bf16 %v502, %v473
        %v513 = vpack.c.bf16 %v504, %v475
        %514 = vst [vmem:[%s283] sm:$0xff] %v506
        %515 = vst [vmem:[%s283 + $0x8] sm:$0xff] %v507
        %516 = vst [vmem:[%s283 + $0x10] sm:$0xff] %v508
        %517 = vst [vmem:[%s283 + $0x18] sm:$0xff] %v509
        %518 = vst [vmem:[%s283 + $0x20] sm:$0xff] %v510
        %519 = vst [vmem:[%s283 + $0x28] sm:$0xff] %v511
        %520 = vst [vmem:[%s283 + $0x30] sm:$0xff] %v512
        %521 = vst [vmem:[%s283 + $0x38] sm:$0xff] %v513
        %v522 = vadd.f32 %v458, %v487
        %523 = vadd.xlane.f32.xlu0 %v522
        %v524 = vpop.xlane.xlu0 %523
        %v525 = vadd.f32 %v460, %v489
        %526 = vadd.xlane.f32.xlu0 %v525
        %v527 = vpop.xlane.xlu0 %526
        %v528 = vadd.f32 %v463, %v492
        %529 = vadd.xlane.f32.xlu0 %v528
        %v530 = vpop.xlane.xlu0 %529
        %v531 = vadd.f32 %v465, %v494
        %532 = vadd.xlane.f32.xlu0 %v531
        %v533 = vpop.xlane.xlu0 %532
        %v534 = vadd.f32 %v468, %v497
        %535 = vadd.xlane.f32.xlu0 %v534
        %v536 = vpop.xlane.xlu0 %535
        %v537 = vadd.f32 %v470, %v499
        %538 = vadd.xlane.f32.xlu0 %v537
        %v539 = vpop.xlane.xlu0 %538
        %v540 = vadd.f32 %v473, %v502
        %541 = vadd.xlane.f32.xlu0 %v540
        %v542 = vpop.xlane.xlu0 %541
        %v543 = vadd.f32 %v475, %v504
        %544 = vadd.xlane.f32.xlu0 %v543
        %v545 = vpop.xlane.xlu0 %544
        %vm546 = vcmask 7168
        %547 = vst.msk [vmem:[%s304] sm:$0xff] %vm546, %v524
        %548 = vst.msk [vmem:[%s304 + $0x8] sm:$0xff] %vm546, %v527
        %549 = vst.msk [vmem:[%s304 + $0x10] sm:$0xff] %vm546, %v530
        %550 = vst.msk [vmem:[%s304 + $0x18] sm:$0xff] %vm546, %v533
        %551 = vst.msk [vmem:[%s304 + $0x20] sm:$0xff] %vm546, %v536
        %552 = vst.msk [vmem:[%s304 + $0x28] sm:$0xff] %vm546, %v539
        %553 = vst.msk [vmem:[%s304 + $0x30] sm:$0xff] %vm546, %v542
        %554 = vst.msk [vmem:[%s304 + $0x38] sm:$0xff] %vm546, %v545
        %v555 = vmul.f32 %v458, %v458
        %v556 = vmul.f32 %v487, %v487
        %v557 = vmul.f32 %v460, %v460
        %v558 = vmul.f32 %v489, %v489
        %v559 = vmul.f32 %v463, %v463
        %v560 = vmul.f32 %v492, %v492
        %v561 = vmul.f32 %v465, %v465
        %v562 = vmul.f32 %v494, %v494
        %v563 = vmul.f32 %v468, %v468
        %v564 = vmul.f32 %v497, %v497
        %v565 = vmul.f32 %v470, %v470
        %v566 = vmul.f32 %v499, %v499
        %v567 = vmul.f32 %v473, %v473
        %v568 = vmul.f32 %v502, %v502
        %v569 = vmul.f32 %v475, %v475
        %v570 = vmul.f32 %v504, %v504
        %v571 = vadd.f32 %v555, %v556
        %572 = vadd.xlane.f32.xlu0 %v571
        %v573 = vpop.xlane.xlu0 %572
        %v574 = vadd.f32 %v557, %v558
        %575 = vadd.xlane.f32.xlu0 %v574
        %v576 = vpop.xlane.xlu0 %575
        %v577 = vadd.f32 %v559, %v560
        %578 = vadd.xlane.f32.xlu0 %v577
        %v579 = vpop.xlane.xlu0 %578
        %v580 = vadd.f32 %v561, %v562
        %581 = vadd.xlane.f32.xlu0 %v580
        %v582 = vpop.xlane.xlu0 %581
        %v583 = vadd.f32 %v563, %v564
        %584 = vadd.xlane.f32.xlu0 %v583
        %v585 = vpop.xlane.xlu0 %584
        %v586 = vadd.f32 %v565, %v566
        %587 = vadd.xlane.f32.xlu0 %v586
        %v588 = vpop.xlane.xlu0 %587
        %v589 = vadd.f32 %v567, %v568
        %590 = vadd.xlane.f32.xlu0 %v589
        %v591 = vpop.xlane.xlu0 %590
        %v592 = vadd.f32 %v569, %v570
        %593 = vadd.xlane.f32.xlu0 %v592
        %v594 = vpop.xlane.xlu0 %593
        %595 = vst.msk [vmem:[%s309] sm:$0xff] %vm546, %v573
        %596 = vst.msk [vmem:[%s309 + $0x8] sm:$0xff] %vm546, %v576
        %597 = vst.msk [vmem:[%s309 + $0x10] sm:$0xff] %vm546, %v579
        %598 = vst.msk [vmem:[%s309 + $0x18] sm:$0xff] %vm546, %v582
        %599 = vst.msk [vmem:[%s309 + $0x20] sm:$0xff] %vm546, %v585
        %600 = vst.msk [vmem:[%s309 + $0x28] sm:$0xff] %vm546, %v588
        %601 = vst.msk [vmem:[%s309 + $0x30] sm:$0xff] %vm546, %v591
        %602 = vst.msk [vmem:[%s309 + $0x38] sm:$0xff] %vm546, %v594
        %s603 = sand.u32 %s93, 1
        %s604 = sand.u32 %s93, 1
        %s605 = smul.addr %s604, 64
        %s606 = scalar_lea.vmem [#allocation3], %s605
        %p607 = scmp.lt.s32.totalorder %s17, 1
        %s608 = scalar_select %p607, %s17, 1
        %s609 = smul.addr %s608, 8
        %s610 = smul.addr %s609, 8
        %s611 = scalar_lea.vmem %s4, %s610
        %p612 = scmp.lt.s32.totalorder %s17, 1
        %s613 = scalar_select %p612, %s17, 1
        %s614 = smul.addr %s613, 8
        %s615 = smul.addr %s614, 8
        %s616 = scalar_lea.vmem %s5, %s615
        // Predicated region
        $region71: #{decoder_forward.7} parent=65 // pred_check
          %p617 = pneg %p103
        $region72: #{decoder_forward.7} parent=65 // pred_check_branch
          %619 = sbr.rel (%p617) target = $region74
        $region73: #{decoder_forward.7} parent=65 // pred_region
          %s620 = smul.u32 2, %s17
          %s621 = smul.addr %s620, 4
          %s622 = scalar_lea.vmem %s3, %s621
          // Predicated region
          $region75: #{decoder_forward.7} parent=73 // pred_check
            _
          $region76: #{decoder_forward.7} parent=73 // pred_check_branch
            %624 = sbr.rel (0) target = $region78
          $region77: #{decoder_forward.7} parent=73 // pred_region
            // Predicated region
            $region79: #{decoder_forward.7} parent=77 // pred_check
              _
            $region80: #{decoder_forward.7} parent=77 // pred_check_branch
              %626 = sbr.rel (0) target = $region82
            $region81: #{decoder_forward.7} parent=77 // pred_region
              // Predicated region
              $region94: #{decoder_forward.7} parent=81 // pred_check
                _
              $region95: #{decoder_forward.7} parent=81 // pred_check_branch
                %656 = sbr.rel (0) target = $region97
              $region96: #{decoder_forward.7} parent=81 // pred_region
                loop: start=0, step=1, limit=1
                $region98: #{decoder_forward.7} parent=96 // loop_pre_header
                  _
                $region99: #{decoder_forward.7} parent=96 // loop_header
                  %s658 = sphi 0, %s662
                  %p659 = scmp.ge.s32.totalorder %s658, 1
                  %s663 = sphi %s606, %s606
                  %s664 = sphi %s622, %s622
                $region100: #{decoder_forward.7} parent=96 // loop_header_branch
                  %661 = sbr.rel (%p659) target = $region104
                $region101: #{decoder_forward.7} parent=96 // loop_body
                  %v665 = vld [vmem:[%s663] sm:$0xff]
                  %666 = vst [vmem:[%s664] sm:$0xff] %v665
                  %v667 = vld [vmem:[%s663 + $0x8] sm:$0xff]
                  %668 = vst [vmem:[%s664 + $0x10] sm:$0xff] %v667
                  %v669 = vld [vmem:[%s663 + $0x10] sm:$0xff]
                  %670 = vst [vmem:[%s664 + $0x20] sm:$0xff] %v669
                  %v671 = vld [vmem:[%s663 + $0x18] sm:$0xff]
                  %672 = vst [vmem:[%s664 + $0x30] sm:$0xff] %v671
                  %v673 = vld [vmem:[%s663 + $0x20] sm:$0xff]
                  %674 = vst [vmem:[%s664 + $0x40] sm:$0xff] %v673
                  %v675 = vld [vmem:[%s663 + $0x28] sm:$0xff]
                  %676 = vst [vmem:[%s664 + $0x50] sm:$0xff] %v675
                  %v677 = vld [vmem:[%s663 + $0x30] sm:$0xff]
                  %678 = vst [vmem:[%s664 + $0x60] sm:$0xff] %v677
                  %v679 = vld [vmem:[%s663 + $0x38] sm:$0xff]
                  %680 = vst [vmem:[%s664 + $0x70] sm:$0xff] %v679
                $region102: #{decoder_forward.7} parent=96 // loop_footer
                  %s662 = sadd.s32 1, %s658
                $region103: #{decoder_forward.7} parent=96 // loop_footer_branch
                  %657 = sbr.rel target = $region99
                $region104: #{decoder_forward.7} parent=96 // loop_exit
                  _
              $region97: #{decoder_forward.7} parent=81 // pred_fallthru
                _
              // Predicated region
              $region105: #{decoder_forward.7} parent=81 // pred_check
                _
              $region106: #{decoder_forward.7} parent=81 // pred_check_branch
                %682 = sbr.rel target = $region108
              $region107: #{decoder_forward.7} parent=81 // pred_region
                _
              $region108: #{decoder_forward.7} parent=81 // pred_fallthru
                _
            $region82: #{decoder_forward.7} parent=77 // pred_fallthru
              _
            // Predicated region
            $region83: #{decoder_forward.7} parent=77 // pred_check
              _
            $region84: #{decoder_forward.7} parent=77 // pred_check_branch
              %628 = sbr.rel target = $region86
            $region85: #{decoder_forward.7} parent=77 // pred_region
              %s630 = ssub.s32 256, 1
              loop: start=0, step=1, limit=1
              $region87: #{decoder_forward.7} parent=85 // loop_pre_header
                _
              $region88: #{decoder_forward.7} parent=85 // loop_header
                %s632 = sphi 0, %s636
                %p633 = scmp.ge.s32.totalorder %s632, 1
                %s637 = sphi %s606, %s606
                %s638 = sphi %s622, %s622
              $region89: #{decoder_forward.7} parent=85 // loop_header_branch
                %635 = sbr.rel (%p633) target = $region93
              $region90: #{decoder_forward.7} parent=85 // loop_body
                %v639 = vld [vmem:[%s637] sm:%s630]
                %640 = vst [vmem:[%s638] sm:%s630] %v639
                %v641 = vld [vmem:[%s637 + $0x8] sm:%s630]
                %642 = vst [vmem:[%s638 + $0x10] sm:%s630] %v641
                %v643 = vld [vmem:[%s637 + $0x10] sm:%s630]
                %644 = vst [vmem:[%s638 + $0x20] sm:%s630] %v643
                %v645 = vld [vmem:[%s637 + $0x18] sm:%s630]
                %646 = vst [vmem:[%s638 + $0x30] sm:%s630] %v645
                %v647 = vld [vmem:[%s637 + $0x20] sm:%s630]
                %648 = vst [vmem:[%s638 + $0x40] sm:%s630] %v647
                %v649 = vld [vmem:[%s637 + $0x28] sm:%s630]
                %650 = vst [vmem:[%s638 + $0x50] sm:%s630] %v649
                %v651 = vld [vmem:[%s637 + $0x30] sm:%s630]
                %652 = vst [vmem:[%s638 + $0x60] sm:%s630] %v651
                %v653 = vld [vmem:[%s637 + $0x38] sm:%s630]
                %654 = vst [vmem:[%s638 + $0x70] sm:%s630] %v653
              $region91: #{decoder_forward.7} parent=85 // loop_footer
                %s636 = sadd.s32 1, %s632
              $region92: #{decoder_forward.7} parent=85 // loop_footer_branch
                %631 = sbr.rel target = $region88
              $region93: #{decoder_forward.7} parent=85 // loop_exit
                _
            $region86: #{decoder_forward.7} parent=77 // pred_fallthru
              _
          $region78: #{decoder_forward.7} parent=73 // pred_fallthru
            _
          %683 = vnop
        $region74: #{decoder_forward.7} parent=65 // pred_fallthru
          _
        // Predicated region
        $region109: #{decoder_forward.7} parent=65 // pred_check
          %p684 = pneg %p129
        $region110: #{decoder_forward.7} parent=65 // pred_check_branch
          %686 = sbr.rel (%p684) target = $region112
        $region111: #{decoder_forward.7} parent=65 // pred_region
          _
        $region112: #{decoder_forward.7} parent=65 // pred_fallthru
          _
        // Predicated region
        $region113: #{decoder_forward.7} parent=65 // pred_check
          %p687 = pneg %p155
        $region114: #{decoder_forward.7} parent=65 // pred_check_branch
          %689 = sbr.rel (%p687) target = $region116
        $region115: #{decoder_forward.7} parent=65 // pred_region
          _
        $region116: #{decoder_forward.7} parent=65 // pred_fallthru
          _
      $region66: #{decoder_forward.7} parent=5 // pred_fallthru
        _
      %p690 = scmp.le.s32.totalorder 2, %s12
      // Predicated region
      $region117: #{decoder_forward.7} parent=5 // pred_check
        %p691 = pneg %p690
      $region118: #{decoder_forward.7} parent=5 // pred_check_branch
        %693 = sbr.rel (%p691) target = $region120
      $region119: #{decoder_forward.7} parent=5 // pred_region
        %s694 = ssub.s32 %s12, 2
        // Predicated region
        $region121: #{decoder_forward.7} parent=119 // pred_check
          %p695 = pneg %p109
        $region122: #{decoder_forward.7} parent=119 // pred_check_branch
          %697 = sbr.rel (%p695) target = $region124
        $region123: #{decoder_forward.7} parent=119 // pred_region
          %s698 = sand.u32 %s94, 1
          %s699 = sand.u32 %s94, 1
          %s700 = smul.addr %s699, 64
          %s701 = scalar_lea.vmem [#allocation3], %s700
        $region124: #{decoder_forward.7} parent=119 // pred_fallthru
          _
        // Predicated region
        $region125: #{decoder_forward.7} parent=119 // pred_check
          %p702 = pneg %p135
        $region126: #{decoder_forward.7} parent=119 // pred_check_branch
          %704 = sbr.rel (%p702) target = $region128
        $region127: #{decoder_forward.7} parent=119 // pred_region
          %p705 = scmp.lt.s32.totalorder %s18, 1
          %s706 = scalar_select %p705, %s18, 1
          %s707 = smul.addr %s706, 8
          %s708 = smul.addr %s707, 8
          %s709 = scalar_lea.vmem %s4, %s708
        $region128: #{decoder_forward.7} parent=119 // pred_fallthru
          _
        // Predicated region
        $region129: #{decoder_forward.7} parent=119 // pred_check
          %p710 = pneg %p161
        $region130: #{decoder_forward.7} parent=119 // pred_check_branch
          %712 = sbr.rel (%p710) target = $region132
        $region131: #{decoder_forward.7} parent=119 // pred_region
          %p713 = scmp.lt.s32.totalorder %s18, 1
          %s714 = scalar_select %p713, %s18, 1
          %s715 = smul.addr %s714, 8
          %s716 = smul.addr %s715, 8
          %s717 = scalar_lea.vmem %s5, %s716
        $region132: #{decoder_forward.7} parent=119 // pred_fallthru
          _
      $region120: #{decoder_forward.7} parent=5 // pred_fallthru
        _
    $region6: #{decoder_forward.7} parent=1 // loop_footer
      %s16 = sadd.s32 1, %s12
    $region7: #{decoder_forward.7} parent=1 // loop_footer_branch
      %11 = sbr.rel target = $region3
    $region8: #{decoder_forward.7} parent=1 // loop_exit
      _

// kernel: tile.42
$region0: #{tile.42}
  #allocation0 [shape = 's32[1]{0}', space=sflag, size = 0x4, scoped, tag = 'scoped memory for tile.42']
  %s0 = inlined_call_operand.vmem [shape: f32[8], index: 0, kind: input, shape index: {}]
  %s1 = inlined_call_operand.vmem [shape: f32[4,8], index: 1, kind: output, shape index: {}]
  // Predicated region
  $region2: #{tile.42} parent=0 // pred_check
    _
  $region3: #{tile.42} parent=0 // pred_check_branch
    %3 = sbr.rel (0) target = $region5
  $region4: #{tile.42} parent=0 // pred_region
    _
  $region5: #{tile.42} parent=0 // pred_fallthru
    _
  %v4 = vld [vmem:[%s0] ss:$0 sm:$0xff]
  %5 = vst [vmem:[%s1] sm:$0xf] %v4

// kernel: decoder_forward.8
$region0: #{decoder_forward.8}
  #allocation0 [shape = 'u32[]', space=smem, size = 0x4, offset = 0x4, fixed_abs, tag = 'smem constant byte address 0x4 - core index']
  #allocation1 [shape = 'u32[72,128]{1,0:T(1,128)}', space=vmem, size = 0x9000, scoped, tag = 'internal scratch']
  %s0 = inlined_call_operand.vmem [shape: bf16[64,2048], index: 0, kind: input, shape index: {}]
  %s1 = inlined_call_operand.vmem [shape: bf16[32,64], index: 1, kind: input, shape index: {}]
  %s2 = inlined_call_operand.vmem [shape: f32[32,1], index: 2, kind: input, shape index: {}]
  %s3 = inlined_call_operand.vmem [shape: bf16[32,2048], index: 3, kind: output, shape index: {0}]
  %s4 = inlined_call_operand.vmem [shape: f32[2,32,1], index: 4, kind: output, shape index: {1}]
  %s5 = inlined_call_operand.vmem [shape: f32[2,32,1], index: 5, kind: output, shape index: {2}]
  %6 = xla_tuple %s3, %s4, %s5
  %s7 = sld [smem:[#allocation0]]
  $region103: #{decoder_forward.8} parent=0
    _
  %s9 = ssub.s32 1, %s7
  %s10 = scalar_select 0, %s9, %s7
  $region1: #{decoder_forward.8} parent=0
    #allocation2 [shape = 'u8[262144]{0}', space=vmem, size = 0x40000, scoped, tag = 'input window, operand 0']
    #allocation3 [shape = 'u8[131072]{0}', space=vmem, size = 0x20000, scoped, tag = 'output window, operand 0']
    loop: start=0, step=1, limit=4
    $region2: #{decoder_forward.8} parent=1 // loop_pre_header
      _
    $region3: #{decoder_forward.8} parent=1 // loop_header
      %s12 = sphi 0, %s16
      %p13 = scmp.ge.s32.totalorder %s12, 4
      %s22 = sphi 0, %s24
      %s25 = sphi 0, %s22
      %s26 = sphi 0, %s25
      %s42 = sphi 0, %s26
      %s46 = sphi 0, %s46
      %s48 = sphi 0, %s46
      %s49 = sphi 0, %s48
      %s63 = sphi 0, %s49
      %s67 = sphi 0, %s67
      %s69 = sphi 0, %s67
      %s70 = sphi 0, %s69
      %s84 = sphi 0, %s70
      %s90 = sphi 0, %s92
      %s93 = sphi 0, %s90
      %s94 = sphi 0, %s93
      %s110 = sphi 0, %s94
      %s116 = sphi 0, %s118
      %s119 = sphi 0, %s116
      %s120 = sphi 0, %s119
      %s136 = sphi 0, %s120
      %s142 = sphi 0, %s144
      %s145 = sphi 0, %s142
      %s146 = sphi 0, %s145
      %s162 = sphi 0, %s146
    $region4: #{decoder_forward.8} parent=1 // loop_header_branch
      %15 = sbr.rel (%p13) target = $region8
    $region5: #{decoder_forward.8} parent=1 // loop_body
      %s17 = ssub.s32 %s12, 1
      %s18 = ssub.s32 %s12, 2
      %s19 = sadd.s32 %s12, 1
      %s20 = ssub.s32 %s12, %s19
      %p21 = scmp.eq.s32.totalorder %s20, 0
      %s23 = sadd.s32 %s22, 1
      %s24 = scalar_select %p21, %s22, %s23
      %p27 = pneg %p21
      %p28 = scmp.eq.s32.totalorder %s12, 1
      %p29 = por %p27, %p28
      %p30 = scmp.ne.s32.totalorder %s22, %s25
      %p31 = scmp.eq.s32.totalorder %s12, 0
      %p32 = por %p30, %p31
      %p33 = scmp.ne.s32.totalorder %s22, %s25
      %p34 = scmp.eq.s32.totalorder %s17, 1
      %p35 = por %p33, %p34
      %p36 = scmp.ne.s32.totalorder %s25, %s26
      %p37 = scmp.eq.s32.totalorder %s17, 0
      %p38 = por %p36, %p37
      %p39 = scmp.ne.s32.totalorder %s25, %s26
      %p40 = scmp.eq.s32.totalorder %s18, 1
      %p41 = por %p39, %p40
      %p43 = scmp.ne.s32.totalorder %s26, %s42
      %p44 = scmp.eq.s32.totalorder %s18, 0
      %p45 = por %p43, %p44
      %s47 = sadd.s32 %s46, 1
      %p50 = scmp.eq.s32.totalorder %s12, 1
      %p51 = scmp.ne.s32.totalorder %s46, %s48
      %p52 = scmp.eq.s32.totalorder %s12, 0
      %p53 = por %p51, %p52
      %p54 = scmp.ne.s32.totalorder %s46, %s48
      %p55 = scmp.eq.s32.totalorder %s17, 1
      %p56 = por %p54, %p55
      %p57 = scmp.ne.s32.totalorder %s48, %s49
      %p58 = scmp.eq.s32.totalorder %s17, 0
      %p59 = por %p57, %p58
      %p60 = scmp.ne.s32.totalorder %s48, %s49
      %p61 = scmp.eq.s32.totalorder %s18, 1
      %p62 = por %p60, %p61
      %p64 = scmp.ne.s32.totalorder %s49, %s63
      %p65 = scmp.eq.s32.totalorder %s18, 0
      %p66 = por %p64, %p65
      %s68 = sadd.s32 %s67, 1
      %p71 = scmp.eq.s32.totalorder %s12, 1
      %p72 = scmp.ne.s32.totalorder %s67, %s69
      %p73 = scmp.eq.s32.totalorder %s12, 0
      %p74 = por %p72, %p73
      %p75 = scmp.ne.s32.totalorder %s67, %s69
      %p76 = scmp.eq.s32.totalorder %s17, 1
      %p77 = por %p75, %p76
      %p78 = scmp.ne.s32.totalorder %s69, %s70
      %p79 = scmp.eq.s32.totalorder %s17, 0
      %p80 = por %p78, %p79
      %p81 = scmp.ne.s32.totalorder %s69, %s70
      %p82 = scmp.eq.s32.totalorder %s18, 1
      %p83 = por %p81, %p82
      %p85 = scmp.ne.s32.totalorder %s70, %s84
      %p86 = scmp.eq.s32.totalorder %s18, 0
      %p87 = por %p85, %p86
      %s88 = ssub.s32 %s12, %s19
      %p89 = scmp.eq.s32.totalorder %s88, 0
      %s91 = sadd.s32 %s90, 1
      %s92 = scalar_select %p89, %s90, %s91
      %p95 = pneg %p89
      %p96 = scmp.eq.s32.totalorder %s12, 1
      %p97 = por %p95, %p96
      %p98 = scmp.ne.s32.totalorder %s90, %s93
      %p99 = scmp.eq.s32.totalorder %s12, 0
      %p100 = por %p98, %p99
      %p101 = scmp.ne.s32.totalorder %s90, %s93
      %p102 = scmp.eq.s32.totalorder %s17, 1
      %p103 = por %p101, %p102
      %p104 = scmp.ne.s32.totalorder %s93, %s94
      %p105 = scmp.eq.s32.totalorder %s17, 0
      %p106 = por %p104, %p105
      %p107 = scmp.ne.s32.totalorder %s93, %s94
      %p108 = scmp.eq.s32.totalorder %s18, 1
      %p109 = por %p107, %p108
      %p111 = scmp.ne.s32.totalorder %s94, %s110
      %p112 = scmp.eq.s32.totalorder %s18, 0
      %p113 = por %p111, %p112
      %s114 = ssub.s32 %s12, %s19
      %p115 = scmp.eq.s32.totalorder %s114, 0
      %s117 = sadd.s32 %s116, 1
      %s118 = scalar_select %p115, %s116, %s117
      %p121 = pneg %p115
      %p122 = scmp.eq.s32.totalorder %s12, 1
      %p123 = por %p121, %p122
      %p124 = scmp.ne.s32.totalorder %s116, %s119
      %p125 = scmp.eq.s32.totalorder %s12, 0
      %p126 = por %p124, %p125
      %p127 = scmp.ne.s32.totalorder %s116, %s119
      %p128 = scmp.eq.s32.totalorder %s17, 1
      %p129 = por %p127, %p128
      %p130 = scmp.ne.s32.totalorder %s119, %s120
      %p131 = scmp.eq.s32.totalorder %s17, 0
      %p132 = por %p130, %p131
      %p133 = scmp.ne.s32.totalorder %s119, %s120
      %p134 = scmp.eq.s32.totalorder %s18, 1
      %p135 = por %p133, %p134
      %p137 = scmp.ne.s32.totalorder %s120, %s136
      %p138 = scmp.eq.s32.totalorder %s18, 0
      %p139 = por %p137, %p138
      %s140 = ssub.s32 %s12, %s19
      %p141 = scmp.eq.s32.totalorder %s140, 0
      %s143 = sadd.s32 %s142, 1
      %s144 = scalar_select %p141, %s142, %s143
      %p147 = pneg %p141
      %p148 = scmp.eq.s32.totalorder %s12, 1
      %p149 = por %p147, %p148
      %p150 = scmp.ne.s32.totalorder %s142, %s145
      %p151 = scmp.eq.s32.totalorder %s12, 0
      %p152 = por %p150, %p151
      %p153 = scmp.ne.s32.totalorder %s142, %s145
      %p154 = scmp.eq.s32.totalorder %s17, 1
      %p155 = por %p153, %p154
      %p156 = scmp.ne.s32.totalorder %s145, %s146
      %p157 = scmp.eq.s32.totalorder %s17, 0
      %p158 = por %p156, %p157
      %p159 = scmp.ne.s32.totalorder %s145, %s146
      %p160 = scmp.eq.s32.totalorder %s18, 1
      %p161 = por %p159, %p160
      %p163 = scmp.ne.s32.totalorder %s146, %s162
      %p164 = scmp.eq.s32.totalorder %s18, 0
      %p165 = por %p163, %p164
      %p166 = scmp.le.s32.totalorder 1, %s12
      %p167 = scmp.lt.s32.totalorder %s12, 3
      %p168 = pnand %p166, %p167
      %p169 = pneg %p168
      // Predicated region
      $region9: #{decoder_forward.8} parent=5 // pred_check
        _
      $region10: #{decoder_forward.8} parent=5 // pred_check_branch
        %171 = sbr.rel (%p168) target = $region12
      $region11: #{decoder_forward.8} parent=5 // pred_region
        %s172 = ssub.s32 %s12, 1
        // Predicated region
        $region13: #{decoder_forward.8} parent=11 // pred_check
          %p173 = pneg %p59
        $region14: #{decoder_forward.8} parent=11 // pred_check_branch
          %175 = sbr.rel (%p173) target = $region16
        $region15: #{decoder_forward.8} parent=11 // pred_region
          _
        $region16: #{decoder_forward.8} parent=11 // pred_fallthru
          _
        // Predicated region
        $region17: #{decoder_forward.8} parent=11 // pred_check
          %p176 = pneg %p80
        $region18: #{decoder_forward.8} parent=11 // pred_check_branch
          %178 = sbr.rel (%p176) target = $region20
        $region19: #{decoder_forward.8} parent=11 // pred_region
          _
        $region20: #{decoder_forward.8} parent=11 // pred_fallthru
          _
      $region12: #{decoder_forward.8} parent=5 // pred_fallthru
        _
      %p179 = scmp.lt.s32.totalorder %s12, 2
      // Predicated region
      $region21: #{decoder_forward.8} parent=5 // pred_check
        %p180 = pneg %p179
      $region22: #{decoder_forward.8} parent=5 // pred_check_branch
        %182 = sbr.rel (%p180) target = $region24
      $region23: #{decoder_forward.8} parent=5 // pred_region
        // Predicated region
        $region25: #{decoder_forward.8} parent=23 // pred_check
          %p183 = pneg %p32
        $region26: #{decoder_forward.8} parent=23 // pred_check_branch
          %185 = sbr.rel (%p183) target = $region28
        $region27: #{decoder_forward.8} parent=23 // pred_region
          %s186 = sand.u32 %s22, 1
          %s187 = sand.u32 %s22, 1
          %s188 = smul.addr %s187, 256
          %s189 = scalar_lea.vmem [#allocation2], %s188
          %s190 = smul.u32 8, %s12
          %s191 = smul.addr %s190, 4
          %s192 = scalar_lea.vmem %s0, %s191
          // Predicated region
          $region29: #{decoder_forward.8} parent=27 // pred_check
            _
          $region30: #{decoder_forward.8} parent=27 // pred_check_branch
            %194 = sbr.rel (0) target = $region32
          $region31: #{decoder_forward.8} parent=27 // pred_region
            // Predicated region
            $region33: #{decoder_forward.8} parent=31 // pred_check
              _
            $region34: #{decoder_forward.8} parent=31 // pred_check_branch
              %196 = sbr.rel (0) target = $region36
            $region35: #{decoder_forward.8} parent=31 // pred_region
              loop: start=0, step=1, limit=1
              $region37: #{decoder_forward.8} parent=35 // loop_pre_header
                _
              $region38: #{decoder_forward.8} parent=35 // loop_header
                %s198 = sphi 0, %s202
                %p199 = scmp.ge.s32.totalorder %s198, 1
                %s203 = sphi %s192, %s192
                %s204 = sphi %s189, %s189
              $region39: #{decoder_forward.8} parent=35 // loop_header_branch
                %201 = sbr.rel (%p199) target = $region43
              $region40: #{decoder_forward.8} parent=35 // loop_body
                %v205 = vld [vmem:[%s203] sm:$0xff]
                %206 = vst [vmem:[%s204] sm:$0xff] %v205
                %v207 = vld [vmem:[%s203 + $0x8] sm:$0xff]
                %208 = vst [vmem:[%s204 + $0x8] sm:$0xff] %v207
                %v209 = vld [vmem:[%s203 + $0x10] sm:$0xff]
                %210 = vst [vmem:[%s204 + $0x10] sm:$0xff] %v209
                %v211 = vld [vmem:[%s203 + $0x18] sm:$0xff]
                %212 = vst [vmem:[%s204 + $0x18] sm:$0xff] %v211
                %v213 = vld [vmem:[%s203 + $0x40] sm:$0xff]
                %214 = vst [vmem:[%s204 + $0x20] sm:$0xff] %v213
                %v215 = vld [vmem:[%s203 + $0x48] sm:$0xff]
                %216 = vst [vmem:[%s204 + $0x28] sm:$0xff] %v215
                %v217 = vld [vmem:[%s203 + $0x50] sm:$0xff]
                %218 = vst [vmem:[%s204 + $0x30] sm:$0xff] %v217
                %v219 = vld [vmem:[%s203 + $0x58] sm:$0xff]
                %220 = vst [vmem:[%s204 + $0x38] sm:$0xff] %v219
                %v221 = vld [vmem:[%s203 + $0x80] sm:$0xff]
                %222 = vst [vmem:[%s204 + $0x40] sm:$0xff] %v221
                %v223 = vld [vmem:[%s203 + $0x88] sm:$0xff]
                %224 = vst [vmem:[%s204 + $0x48] sm:$0xff] %v223
                %v225 = vld [vmem:[%s203 + $0x90] sm:$0xff]
                %226 = vst [vmem:[%s204 + $0x50] sm:$0xff] %v225
                %v227 = vld [vmem:[%s203 + $0x98] sm:$0xff]
                %228 = vst [vmem:[%s204 + $0x58] sm:$0xff] %v227
                %v229 = vld [vmem:[%s203 + $0xc0] sm:$0xff]
                %230 = vst [vmem:[%s204 + $0x60] sm:$0xff] %v229
                %v231 = vld [vmem:[%s203 + $0xc8] sm:$0xff]
                %232 = vst [vmem:[%s204 + $0x68] sm:$0xff] %v231
                %v233 = vld [vmem:[%s203 + $0xd0] sm:$0xff]
                %234 = vst [vmem:[%s204 + $0x70] sm:$0xff] %v233
                %v235 = vld [vmem:[%s203 + $0xd8] sm:$0xff]
                %236 = vst [vmem:[%s204 + $0x78] sm:$0xff] %v235
                %v237 = vld [vmem:[%s203 + $0x100] sm:$0xff]
                %238 = vst [vmem:[%s204 + $0x80] sm:$0xff] %v237
                %v239 = vld [vmem:[%s203 + $0x108] sm:$0xff]
                %240 = vst [vmem:[%s204 + $0x88] sm:$0xff] %v239
                %v241 = vld [vmem:[%s203 + $0x110] sm:$0xff]
                %242 = vst [vmem:[%s204 + $0x90] sm:$0xff] %v241
                %v243 = vld [vmem:[%s203 + $0x118] sm:$0xff]
                %244 = vst [vmem:[%s204 + $0x98] sm:$0xff] %v243
                %v245 = vld [vmem:[%s203 + $0x140] sm:$0xff]
                %246 = vst [vmem:[%s204 + $0xa0] sm:$0xff] %v245
                %v247 = vld [vmem:[%s203 + $0x148] sm:$0xff]
                %248 = vst [vmem:[%s204 + $0xa8] sm:$0xff] %v247
                %v249 = vld [vmem:[%s203 + $0x150] sm:$0xff]
                %250 = vst [vmem:[%s204 + $0xb0] sm:$0xff] %v249
                %v251 = vld [vmem:[%s203 + $0x158] sm:$0xff]
                %252 = vst [vmem:[%s204 + $0xb8] sm:$0xff] %v251
                %v253 = vld [vmem:[%s203 + $0x180] sm:$0xff]
                %254 = vst [vmem:[%s204 + $0xc0] sm:$0xff] %v253
                %v255 = vld [vmem:[%s203 + $0x188] sm:$0xff]
                %256 = vst [vmem:[%s204 + $0xc8] sm:$0xff] %v255
                %v257 = vld [vmem:[%s203 + $0x190] sm:$0xff]
                %258 = vst [vmem:[%s204 + $0xd0] sm:$0xff] %v257
                %v259 = vld [vmem:[%s203 + $0x198] sm:$0xff]
                %260 = vst [vmem:[%s204 + $0xd8] sm:$0xff] %v259
                %v261 = vld [vmem:[%s203 + $0x1c0] sm:$0xff]
                %262 = vst [vmem:[%s204 + $0xe0] sm:$0xff] %v261
                %v263 = vld [vmem:[%s203 + $0x1c8] sm:$0xff]
                %264 = vst [vmem:[%s204 + $0xe8] sm:$0xff] %v263
                %v265 = vld [vmem:[%s203 + $0x1d0] sm:$0xff]
                %266 = vst [vmem:[%s204 + $0xf0] sm:$0xff] %v265
                %v267 = vld [vmem:[%s203 + $0x1d8] sm:$0xff]
                %268 = vst [vmem:[%s204 + $0xf8] sm:$0xff] %v267
              $region41: #{decoder_forward.8} parent=35 // loop_footer
                %s202 = sadd.s32 1, %s198
              $region42: #{decoder_forward.8} parent=35 // loop_footer_branch
                %197 = sbr.rel target = $region38
              $region43: #{decoder_forward.8} parent=35 // loop_exit
                _
            $region36: #{decoder_forward.8} parent=31 // pred_fallthru
              _
            // Predicated region
            $region44: #{decoder_forward.8} parent=31 // pred_check
              _
            $region45: #{decoder_forward.8} parent=31 // pred_check_branch
              %270 = sbr.rel target = $region47
            $region46: #{decoder_forward.8} parent=31 // pred_region
              _
            $region47: #{decoder_forward.8} parent=31 // pred_fallthru
              _
          $region32: #{decoder_forward.8} parent=27 // pred_fallthru
            _
          %271 = vnop
        $region28: #{decoder_forward.8} parent=23 // pred_fallthru
          _
      $region24: #{decoder_forward.8} parent=5 // pred_fallthru
        _
      %p272 = scmp.le.s32.totalorder 1, %s12
      %p273 = scmp.lt.s32.totalorder %s12, 3
      %p274 = pnand %p272, %p273
      %p275 = pneg %p274
      // Predicated region
      $region48: #{decoder_forward.8} parent=5 // pred_check
        _
      $region49: #{decoder_forward.8} parent=5 // pred_check_branch
        %277 = sbr.rel (%p274) target = $region51
      $region50: #{decoder_forward.8} parent=5 // pred_region
        %s278 = ssub.s32 %s12, 1
        %s279 = sand.u32 %s25, 1
        %s280 = sand.u32 %s25, 1
        %s281 = smul.addr %s280, 256
        %s282 = scalar_lea.vmem [#allocation2], %s281
        // Predicated region
        $region52: #{decoder_forward.8} parent=50 // pred_check
          %p283 = pneg %p38
        $region53: #{decoder_forward.8} parent=50 // pred_check_branch
          %285 = sbr.rel (%p283) target = $region55
        $region54: #{decoder_forward.8} parent=50 // pred_region
          _
        $region55: #{decoder_forward.8} parent=50 // pred_fallthru
          _
        %s286 = sand.u32 %s25, 1
        %s287 = sand.u32 %s25, 1
        %s288 = smul.addr %s287, 256
        %s289 = scalar_lea.vmem [#allocation2], %s288
        %p290 = pneg %p38
        %p291 = pneg %p35
        %p292 = pneg %p59
        %p293 = pneg %p56
        %p294 = pneg %p80
        %p295 = pneg %p77
        %p296 = pneg %p106
        %p297 = pneg %p103
        %s298 = sand.u32 %s93, 1
        %s299 = sand.u32 %s93, 1
        %s300 = smul.addr %s299, 128
        %s301 = scalar_lea.vmem [#allocation3], %s300
        %p302 = pneg %p132
        %p303 = pneg %p129
        %p304 = scmp.lt.s32.totalorder %s17, 1
        %s305 = scalar_select %p304, %s17, 1
        %s306 = smul.addr %s305, 4
        %s307 = smul.addr %s306, 8
        %s308 = scalar_lea.vmem %s4, %s307
        %p309 = pneg %p158
        %p310 = pneg %p155
        %p311 = scmp.lt.s32.totalorder %s17, 1
        %s312 = scalar_select %p311, %s17, 1
        %s313 = smul.addr %s312, 4
        %s314 = smul.addr %s313, 8
        %s315 = scalar_lea.vmem %s5, %s314
        %s316 = smul.u32 8, %s17
        %s317 = smul.u32 8, %s17
        %p318 = scmp.lt.s32.totalorder %s17, 1
        %s319 = scalar_select %p318, %s17, 1
        %s320 = smul.addr %s319, 4
        %s321 = smul.addr %s320, 8
        %s322 = scalar_lea.vmem %s4, %s321
        %p323 = scmp.lt.s32.totalorder %s17, 1
        %s324 = scalar_select %p323, %s17, 1
        %s325 = smul.addr %s324, 4
        %s326 = smul.addr %s325, 8
        %s327 = scalar_lea.vmem %s5, %s326
        %v329 = vld [vmem:[%s1] sm:$0xf]
        %v330 = vld [vmem:[%s1 + $0x4] sm:$0xf]
        %v331 = vld [vmem:[%s1 + $0x8] sm:$0xf]
        %v332 = vld [vmem:[%s1 + $0xc] sm:$0xf]
        %v333 = vld [vmem:[%s282] sm:$0xff]
        %v334 = vld [vmem:[%s282 + $0x8] sm:$0xff]
        %v335 = vld [vmem:[%s282 + $0x10] sm:$0xff]
        %v336 = vld [vmem:[%s282 + $0x18] sm:$0xff]
        %v337 = vld [vmem:[%s282 + $0x20] sm:$0xff]
        %v338 = vld [vmem:[%s282 + $0x28] sm:$0xff]
        %v339 = vld [vmem:[%s282 + $0x30] sm:$0xff]
        %v340 = vld [vmem:[%s282 + $0x38] sm:$0xff]
        %v341 = vld [vmem:[%s282 + $0x40] sm:$0xff]
        %v342 = vld [vmem:[%s282 + $0x48] sm:$0xff]
        %v343 = vld [vmem:[%s282 + $0x50] sm:$0xff]
        %v344 = vld [vmem:[%s282 + $0x58] sm:$0xff]
        %v345 = vld [vmem:[%s282 + $0x60] sm:$0xff]
        %v346 = vld [vmem:[%s282 + $0x68] sm:$0xff]
        %v347 = vld [vmem:[%s282 + $0x70] sm:$0xff]
        %v348 = vld [vmem:[%s282 + $0x78] sm:$0xff]
        %v349 = vld [vmem:[%s282 + $0x80] sm:$0xff]
        %v350 = vld [vmem:[%s282 + $0x88] sm:$0xff]
        %v351 = vld [vmem:[%s282 + $0x90] sm:$0xff]
        %v352 = vld [vmem:[%s282 + $0x98] sm:$0xff]
        %v353 = vld [vmem:[%s282 + $0xa0] sm:$0xff]
        %v354 = vld [vmem:[%s282 + $0xa8] sm:$0xff]
        %v355 = vld [vmem:[%s282 + $0xb0] sm:$0xff]
        %v356 = vld [vmem:[%s282 + $0xb8] sm:$0xff]
        %v357 = vld [vmem:[%s282 + $0xc0] sm:$0xff]
        %v358 = vld [vmem:[%s282 + $0xc8] sm:$0xff]
        %v359 = vld [vmem:[%s282 + $0xd0] sm:$0xff]
        %v360 = vld [vmem:[%s282 + $0xd8] sm:$0xff]
        %v361 = vld [vmem:[%s282 + $0xe0] sm:$0xff]
        %v362 = vld [vmem:[%s282 + $0xe8] sm:$0xff]
        %v363 = vld [vmem:[%s282 + $0xf0] sm:$0xff]
        %v364 = vld [vmem:[%s282 + $0xf8] sm:$0xff]
        %v365 = vld [vmem:[%s2] sm:$0xff]
        %v366 = vld [vmem:[%s2 + $0x8] sm:$0xff]
        %v367 = vld [vmem:[%s2 + $0x10] sm:$0xff]
        %v368 = vld [vmem:[%s2 + $0x18] sm:$0xff]
        %370 = vset.pattern.permute.xlu0 0
        %371 = vperm.xlu0 %370, %v365
        %v372 = vpop.permute.xlu0 %371
        %375 = vset.pattern.permute.xlu0 0
        %376 = vperm.xlu0 %375, %v366
        %v377 = vpop.permute.xlu0 %376
        %380 = vset.pattern.permute.xlu0 0
        %381 = vperm.xlu0 %380, %v367
        %v382 = vpop.permute.xlu0 %381
        %385 = vset.pattern.permute.xlu0 0
        %386 = vperm.xlu0 %385, %v368
        %v387 = vpop.permute.xlu0 %386
        %v393 = vunpack.c.l.b16 %v329
        %v394 = vunpack.c.l.b16 %v330
        %v395 = vunpack.c.l.b16 %v331
        %v396 = vunpack.c.l.b16 %v332
        %v397 = vpack.c.b16 %v394, %v393
        %v398 = vpack.c.b16 %v396, %v395
        %v431 = vunpack.c.l.b16 %v333
        %v432 = vunpack.c.h.b16 %v333
        %v433 = vunpack.c.l.b16 %v334
        %v434 = vunpack.c.h.b16 %v334
        %v435 = vunpack.c.l.b16 %v335
        %v436 = vunpack.c.h.b16 %v335
        %v437 = vunpack.c.l.b16 %v336
        %v438 = vunpack.c.h.b16 %v336
        %v439 = vunpack.c.l.b16 %v337
        %v440 = vunpack.c.h.b16 %v337
        %v441 = vunpack.c.l.b16 %v338
        %v442 = vunpack.c.h.b16 %v338
        %v443 = vunpack.c.l.b16 %v339
        %v444 = vunpack.c.h.b16 %v339
        %v445 = vunpack.c.l.b16 %v340
        %v446 = vunpack.c.h.b16 %v340
        %v447 = vunpack.c.l.b16 %v341
        %v448 = vunpack.c.h.b16 %v341
        %v449 = vunpack.c.l.b16 %v342
        %v450 = vunpack.c.h.b16 %v342
        %v451 = vunpack.c.l.b16 %v343
        %v452 = vunpack.c.h.b16 %v343
        %v453 = vunpack.c.l.b16 %v344
        %v454 = vunpack.c.h.b16 %v344
        %v455 = vunpack.c.l.b16 %v345
        %v456 = vunpack.c.h.b16 %v345
        %v457 = vunpack.c.l.b16 %v346
        %v458 = vunpack.c.h.b16 %v346
        %v459 = vunpack.c.l.b16 %v347
        %v460 = vunpack.c.h.b16 %v347
        %v461 = vunpack.c.l.b16 %v348
        %v462 = vunpack.c.h.b16 %v348
        %v463 = vunpack.c.l.b16 %v349
        %v464 = vunpack.c.h.b16 %v349
        %v465 = vunpack.c.l.b16 %v350
        %v466 = vunpack.c.h.b16 %v350
        %v467 = vunpack.c.l.b16 %v351
        %v468 = vunpack.c.h.b16 %v351
        %v469 = vunpack.c.l.b16 %v352
        %v470 = vunpack.c.h.b16 %v352
        %v471 = vunpack.c.l.b16 %v353
        %v472 = vunpack.c.h.b16 %v353
        %v473 = vunpack.c.l.b16 %v354
        %v474 = vunpack.c.h.b16 %v354
        %v475 = vunpack.c.l.b16 %v355
        %v476 = vunpack.c.h.b16 %v355
        %v477 = vunpack.c.l.b16 %v356
        %v478 = vunpack.c.h.b16 %v356
        %v479 = vunpack.c.l.b16 %v357
        %v480 = vunpack.c.h.b16 %v357
        %v481 = vunpack.c.l.b16 %v358
        %v482 = vunpack.c.h.b16 %v358
        %v483 = vunpack.c.l.b16 %v359
        %v484 = vunpack.c.h.b16 %v359
        %v485 = vunpack.c.l.b16 %v360
        %v486 = vunpack.c.h.b16 %v360
        %v487 = vunpack.c.l.b16 %v361
        %v488 = vunpack.c.h.b16 %v361
        %v489 = vunpack.c.l.b16 %v362
        %v490 = vunpack.c.h.b16 %v362
        %v491 = vunpack.c.l.b16 %v363
        %v492 = vunpack.c.h.b16 %v363
        %v493 = vunpack.c.l.b16 %v364
        %v494 = vunpack.c.h.b16 %v364
        %v495 = vpack.c.b16 %v439, %v431
        %v496 = vpack.c.b16 %v440, %v432
        %v497 = vpack.c.b16 %v441, %v433
        %v498 = vpack.c.b16 %v442, %v434
        %v499 = vpack.c.b16 %v443, %v435
        %v500 = vpack.c.b16 %v444, %v436
        %v501 = vpack.c.b16 %v445, %v437
        %v502 = vpack.c.b16 %v446, %v438
        %v503 = vpack.c.b16 %v455, %v447
        %v504 = vpack.c.b16 %v456, %v448
        %v505 = vpack.c.b16 %v457, %v449
        %v506 = vpack.c.b16 %v458, %v450
        %v507 = vpack.c.b16 %v459, %v451
        %v508 = vpack.c.b16 %v460, %v452
        %v509 = vpack.c.b16 %v461, %v453
        %v510 = vpack.c.b16 %v462, %v454
        %v511 = vpack.c.b16 %v471, %v463
        %v512 = vpack.c.b16 %v472, %v464
        %v513 = vpack.c.b16 %v473, %v465
        %v514 = vpack.c.b16 %v474, %v466
        %v515 = vpack.c.b16 %v475, %v467
        %v516 = vpack.c.b16 %v476, %v468
        %v517 = vpack.c.b16 %v477, %v469
        %v518 = vpack.c.b16 %v478, %v470
        %v519 = vpack.c.b16 %v487, %v479
        %v520 = vpack.c.b16 %v488, %v480
        %v521 = vpack.c.b16 %v489, %v481
        %v522 = vpack.c.b16 %v490, %v482
        %v523 = vpack.c.b16 %v491, %v483
        %v524 = vpack.c.b16 %v492, %v484
        %v525 = vpack.c.b16 %v493, %v485
        %v526 = vpack.c.b16 %v494, %v486
        %vm559 = vcmask 523264
        %v561 = vsel %vm559, %v397, 0
        %v564 = vsel %vm559, %v398, 0
        %566 = vmatpush.bf16.msra.mxu0 0
        %567 = vmatpush.bf16.msra.mxu0 0
        %568 = vmatpush.bf16.msra.mxu0 0
        %569 = vmatpush.bf16.msra.mxu0 0
        %570 = vmatpush.bf16.msra.mxu0 %v519
        %571 = vmatpush.bf16.msra.mxu0 %v511
        %572 = vmatpush.bf16.msra.mxu0 %v503
        %573 = vmatpush.bf16.msra.mxu0 %v495
        %574 = vmatmul.bf16.gmra.mxu0 %v561
        %v575 = vpop.f32.mrf.mxu0
        %v576 = vadd.f32 %v372, %v575
        %v577 = vpop.f32.mrf.mxu0
        %v578 = vadd.f32 %v377, %v577
        %579 = vmatmul.bf16.gmra.mxu0 %v564
        %v580 = vpop.f32.mrf.mxu0
        %v581 = vadd.f32 %v382, %v580
        %v582 = vpop.f32.mrf.mxu0
        %v583 = vadd.f32 %v387, %v582
        %584 = vdwg.mxu0
        %585 = vmatpush.bf16.msra.mxu0 0
        %586 = vmatpush.bf16.msra.mxu0 0
        %587 = vmatpush.bf16.msra.mxu0 0
        %588 = vmatpush.bf16.msra.mxu0 0
        %589 = vmatpush.bf16.msra.mxu0 %v520
        %590 = vmatpush.bf16.msra.mxu0 %v512
        %591 = vmatpush.bf16.msra.mxu0 %v504
        %592 = vmatpush.bf16.msra.mxu0 %v496
        %593 = vmatmul.bf16.gmra.mxu0 %v561
        %v594 = vpop.f32.mrf.mxu0
        %v595 = vadd.f32 %v372, %v594
        %v596 = vpop.f32.mrf.mxu0
        %v597 = vadd.f32 %v377, %v596
        %598 = vmatmul.bf16.gmra.mxu0 %v564
        %v599 = vpop.f32.mrf.mxu0
        %v600 = vadd.f32 %v382, %v599
        %v601 = vpop.f32.mrf.mxu0
        %v602 = vadd.f32 %v387, %v601
        %603 = vdwg.mxu0
        %604 = vmatpush.bf16.msra.mxu0 0
        %605 = vmatpush.bf16.msra.mxu0 0
        %606 = vmatpush.bf16.msra.mxu0 0
        %607 = vmatpush.bf16.msra.mxu0 0
        %608 = vmatpush.bf16.msra.mxu0 %v521
        %609 = vmatpush.bf16.msra.mxu0 %v513
        %610 = vmatpush.bf16.msra.mxu0 %v505
        %611 = vmatpush.bf16.msra.mxu0 %v497
        %612 = vmatmul.bf16.gmra.mxu0 %v561
        %v613 = vpop.f32.mrf.mxu0
        %v614 = vadd.f32 %v372, %v613
        %v615 = vpop.f32.mrf.mxu0
        %v616 = vadd.f32 %v377, %v615
        %617 = vmatmul.bf16.gmra.mxu0 %v564
        %v618 = vpop.f32.mrf.mxu0
        %v619 = vadd.f32 %v382, %v618
        %v620 = vpop.f32.mrf.mxu0
        %v621 = vadd.f32 %v387, %v620
        %622 = vdwg.mxu0
        %623 = vmatpush.bf16.msra.mxu0 0
        %624 = vmatpush.bf16.msra.mxu0 0
        %625 = vmatpush.bf16.msra.mxu0 0
        %626 = vmatpush.bf16.msra.mxu0 0
        %627 = vmatpush.bf16.msra.mxu0 %v522
        %628 = vmatpush.bf16.msra.mxu0 %v514
        %629 = vmatpush.bf16.msra.mxu0 %v506
        %630 = vmatpush.bf16.msra.mxu0 %v498
        %631 = vmatmul.bf16.gmra.mxu0 %v561
        %v632 = vpop.f32.mrf.mxu0
        %v633 = vadd.f32 %v372, %v632
        %v634 = vpop.f32.mrf.mxu0
        %v635 = vadd.f32 %v377, %v634
        %636 = vmatmul.bf16.gmra.mxu0 %v564
        %v637 = vpop.f32.mrf.mxu0
        %v638 = vadd.f32 %v382, %v637
        %v639 = vpop.f32.mrf.mxu0
        %v640 = vadd.f32 %v387, %v639
        %641 = vdwg.mxu0
        %642 = vmatpush.bf16.msra.mxu0 0
        %643 = vmatpush.bf16.msra.mxu0 0
        %644 = vmatpush.bf16.msra.mxu0 0
        %645 = vmatpush.bf16.msra.mxu0 0
        %646 = vmatpush.bf16.msra.mxu0 %v523
        %647 = vmatpush.bf16.msra.mxu0 %v515
        %648 = vmatpush.bf16.msra.mxu0 %v507
        %649 = vmatpush.bf16.msra.mxu0 %v499
        %650 = vmatmul.bf16.gmra.mxu0 %v561
        %v651 = vpop.f32.mrf.mxu0
        %v652 = vadd.f32 %v372, %v651
        %v653 = vpop.f32.mrf.mxu0
        %v654 = vadd.f32 %v377, %v653
        %655 = vmatmul.bf16.gmra.mxu0 %v564
        %v656 = vpop.f32.mrf.mxu0
        %v657 = vadd.f32 %v382, %v656
        %v658 = vpop.f32.mrf.mxu0
        %v659 = vadd.f32 %v387, %v658
        %660 = vdwg.mxu0
        %661 = vmatpush.bf16.msra.mxu0 0
        %662 = vmatpush.bf16.msra.mxu0 0
        %663 = vmatpush.bf16.msra.mxu0 0
        %664 = vmatpush.bf16.msra.mxu0 0
        %665 = vmatpush.bf16.msra.mxu0 %v524
        %666 = vmatpush.bf16.msra.mxu0 %v516
        %667 = vmatpush.bf16.msra.mxu0 %v508
        %668 = vmatpush.bf16.msra.mxu0 %v500
        %669 = vmatmul.bf16.gmra.mxu0 %v561
        %v670 = vpop.f32.mrf.mxu0
        %v671 = vadd.f32 %v372, %v670
        %v672 = vpop.f32.mrf.mxu0
        %v673 = vadd.f32 %v377, %v672
        %674 = vmatmul.bf16.gmra.mxu0 %v564
        %v675 = vpop.f32.mrf.mxu0
        %v676 = vadd.f32 %v382, %v675
        %v677 = vpop.f32.mrf.mxu0
        %v678 = vadd.f32 %v387, %v677
        %679 = vdwg.mxu0
        %680 = vmatpush.bf16.msra.mxu0 0
        %681 = vmatpush.bf16.msra.mxu0 0
        %682 = vmatpush.bf16.msra.mxu0 0
        %683 = vmatpush.bf16.msra.mxu0 0
        %684 = vmatpush.bf16.msra.mxu0 %v525
        %685 = vmatpush.bf16.msra.mxu0 %v517
        %686 = vmatpush.bf16.msra.mxu0 %v509
        %687 = vmatpush.bf16.msra.mxu0 %v501
        %688 = vmatmul.bf16.gmra.mxu0 %v561
        %v689 = vpop.f32.mrf.mxu0
        %v690 = vadd.f32 %v372, %v689
        %v691 = vpop.f32.mrf.mxu0
        %v692 = vadd.f32 %v377, %v691
        %693 = vmatmul.bf16.gmra.mxu0 %v564
        %v694 = vpop.f32.mrf.mxu0
        %v695 = vadd.f32 %v382, %v694
        %v696 = vpop.f32.mrf.mxu0
        %v697 = vadd.f32 %v387, %v696
        %698 = vdwg.mxu0
        %699 = vmatpush.bf16.msra.mxu0 0
        %700 = vmatpush.bf16.msra.mxu0 0
        %701 = vmatpush.bf16.msra.mxu0 0
        %702 = vmatpush.bf16.msra.mxu0 0
        %703 = vmatpush.bf16.msra.mxu0 %v526
        %704 = vmatpush.bf16.msra.mxu0 %v518
        %705 = vmatpush.bf16.msra.mxu0 %v510
        %706 = vmatpush.bf16.msra.mxu0 %v502
        %707 = vmatmul.bf16.gmra.mxu0 %v561
        %v708 = vpop.f32.mrf.mxu0
        %v709 = vadd.f32 %v372, %v708
        %v710 = vpop.f32.mrf.mxu0
        %v711 = vadd.f32 %v377, %v710
        %712 = vmatmul.bf16.gmra.mxu0 %v564
        %v713 = vpop.f32.mrf.mxu0
        %v714 = vadd.f32 %v382, %v713
        %v715 = vpop.f32.mrf.mxu0
        %v716 = vadd.f32 %v387, %v715
        %717 = vdwg.mxu0
        %v718 = vpack.c.bf16 %v595, %v576
        %v719 = vpack.c.bf16 %v633, %v614
        %v720 = vpack.c.bf16 %v671, %v652
        %v721 = vpack.c.bf16 %v709, %v690
        %v722 = vpack.c.bf16 %v597, %v578
        %v723 = vpack.c.bf16 %v635, %v616
        %v724 = vpack.c.bf16 %v673, %v654
        %v725 = vpack.c.bf16 %v711, %v692
        %v726 = vpack.c.bf16 %v600, %v581
        %v727 = vpack.c.bf16 %v638, %v619
        %v728 = vpack.c.bf16 %v676, %v657
        %v729 = vpack.c.bf16 %v714, %v695
        %v730 = vpack.c.bf16 %v602, %v583
        %v731 = vpack.c.bf16 %v640, %v621
        %v732 = vpack.c.bf16 %v678, %v659
        %v733 = vpack.c.bf16 %v716, %v697
        %734 = vst [vmem:[%s301] sm:$0xff] %v718
        %735 = vst [vmem:[%s301 + $0x8] sm:$0xff] %v719
        %736 = vst [vmem:[%s301 + $0x10] sm:$0xff] %v720
        %737 = vst [vmem:[%s301 + $0x18] sm:$0xff] %v721
        %738 = vst [vmem:[%s301 + $0x20] sm:$0xff] %v722
        %739 = vst [vmem:[%s301 + $0x28] sm:$0xff] %v723
        %740 = vst [vmem:[%s301 + $0x30] sm:$0xff] %v724
        %741 = vst [vmem:[%s301 + $0x38] sm:$0xff] %v725
        %742 = vst [vmem:[%s301 + $0x40] sm:$0xff] %v726
        %743 = vst [vmem:[%s301 + $0x48] sm:$0xff] %v727
        %744 = vst [vmem:[%s301 + $0x50] sm:$0xff] %v728
        %745 = vst [vmem:[%s301 + $0x58] sm:$0xff] %v729
        %746 = vst [vmem:[%s301 + $0x60] sm:$0xff] %v730
        %747 = vst [vmem:[%s301 + $0x68] sm:$0xff] %v731
        %748 = vst [vmem:[%s301 + $0x70] sm:$0xff] %v732
        %749 = vst [vmem:[%s301 + $0x78] sm:$0xff] %v733
        %v750 = vadd.f32 %v576, %v595
        %v751 = vadd.f32 %v750, %v614
        %v752 = vadd.f32 %v751, %v633
        %v753 = vadd.f32 %v752, %v652
        %v754 = vadd.f32 %v753, %v671
        %v755 = vadd.f32 %v754, %v690
        %v756 = vadd.f32 %v755, %v709
        %757 = vadd.xlane.f32.xlu0 %v756
        %v758 = vpop.xlane.xlu0 %757
        %v759 = vadd.f32 %v578, %v597
        %v760 = vadd.f32 %v759, %v616
        %v761 = vadd.f32 %v760, %v635
        %v762 = vadd.f32 %v761, %v654
        %v763 = vadd.f32 %v762, %v673
        %v764 = vadd.f32 %v763, %v692
        %v765 = vadd.f32 %v764, %v711
        %766 = vadd.xlane.f32.xlu0 %v765
        %v767 = vpop.xlane.xlu0 %766
        %v768 = vadd.f32 %v581, %v600
        %v769 = vadd.f32 %v768, %v619
        %v770 = vadd.f32 %v769, %v638
        %v771 = vadd.f32 %v770, %v657
        %v772 = vadd.f32 %v771, %v676
        %v773 = vadd.f32 %v772, %v695
        %v774 = vadd.f32 %v773, %v714
        %775 = vadd.xlane.f32.xlu0 %v774
        %v776 = vpop.xlane.xlu0 %775
        %v777 = vadd.f32 %v583, %v602
        %v778 = vadd.f32 %v777, %v621
        %v779 = vadd.f32 %v778, %v640
        %v780 = vadd.f32 %v779, %v659
        %v781 = vadd.f32 %v780, %v678
        %v782 = vadd.f32 %v781, %v697
        %v783 = vadd.f32 %v782, %v716
        %784 = vadd.xlane.f32.xlu0 %v783
        %v785 = vpop.xlane.xlu0 %784
        %vm786 = vcmask 7168
        %787 = vst.msk [vmem:[%s322] sm:$0xff] %vm786, %v758
        %788 = vst.msk [vmem:[%s322 + $0x8] sm:$0xff] %vm786, %v767
        %789 = vst.msk [vmem:[%s322 + $0x10] sm:$0xff] %vm786, %v776
        %790 = vst.msk [vmem:[%s322 + $0x18] sm:$0xff] %vm786, %v785
        %v791 = vmul.f32 %v576, %v576
        %v792 = vmul.f32 %v595, %v595
        %v793 = vmul.f32 %v614, %v614
        %v794 = vmul.f32 %v633, %v633
        %v795 = vmul.f32 %v652, %v652
        %v796 = vmul.f32 %v671, %v671
        %v797 = vmul.f32 %v690, %v690
        %v798 = vmul.f32 %v709, %v709
        %v799 = vmul.f32 %v578, %v578
        %v800 = vmul.f32 %v597, %v597
        %v801 = vmul.f32 %v616, %v616
        %v802 = vmul.f32 %v635, %v635
        %v803 = vmul.f32 %v654, %v654
        %v804 = vmul.f32 %v673, %v673
        %v805 = vmul.f32 %v692, %v692
        %v806 = vmul.f32 %v711, %v711
        %v807 = vmul.f32 %v581, %v581
        %v808 = vmul.f32 %v600, %v600
        %v809 = vmul.f32 %v619, %v619
        %v810 = vmul.f32 %v638, %v638
        %v811 = vmul.f32 %v657, %v657
        %v812 = vmul.f32 %v676, %v676
        %v813 = vmul.f32 %v695, %v695
        %v814 = vmul.f32 %v714, %v714
        %v815 = vmul.f32 %v583, %v583
        %v816 = vmul.f32 %v602, %v602
        %v817 = vmul.f32 %v621, %v621
        %v818 = vmul.f32 %v640, %v640
        %v819 = vmul.f32 %v659, %v659
        %v820 = vmul.f32 %v678, %v678
        %v821 = vmul.f32 %v697, %v697
        %v822 = vmul.f32 %v716, %v716
        %v823 = vadd.f32 %v791, %v792
        %v824 = vadd.f32 %v823, %v793
        %v825 = vadd.f32 %v824, %v794
        %v826 = vadd.f32 %v825, %v795
        %v827 = vadd.f32 %v826, %v796
        %v828 = vadd.f32 %v827, %v797
        %v829 = vadd.f32 %v828, %v798
        %830 = vadd.xlane.f32.xlu0 %v829
        %v831 = vpop.xlane.xlu0 %830
        %v832 = vadd.f32 %v799, %v800
        %v833 = vadd.f32 %v832, %v801
        %v834 = vadd.f32 %v833, %v802
        %v835 = vadd.f32 %v834, %v803
        %v836 = vadd.f32 %v835, %v804
        %v837 = vadd.f32 %v836, %v805
        %v838 = vadd.f32 %v837, %v806
        %839 = vadd.xlane.f32.xlu0 %v838
        %v840 = vpop.xlane.xlu0 %839
        %v841 = vadd.f32 %v807, %v808
        %v842 = vadd.f32 %v841, %v809
        %v843 = vadd.f32 %v842, %v810
        %v844 = vadd.f32 %v843, %v811
        %v845 = vadd.f32 %v844, %v812
        %v846 = vadd.f32 %v845, %v813
        %v847 = vadd.f32 %v846, %v814
        %848 = vadd.xlane.f32.xlu0 %v847
        %v849 = vpop.xlane.xlu0 %848
        %v850 = vadd.f32 %v815, %v816
        %v851 = vadd.f32 %v850, %v817
        %v852 = vadd.f32 %v851, %v818
        %v853 = vadd.f32 %v852, %v819
        %v854 = vadd.f32 %v853, %v820
        %v855 = vadd.f32 %v854, %v821
        %v856 = vadd.f32 %v855, %v822
        %857 = vadd.xlane.f32.xlu0 %v856
        %v858 = vpop.xlane.xlu0 %857
        %859 = vst.msk [vmem:[%s327] sm:$0xff] %vm786, %v831
        %860 = vst.msk [vmem:[%s327 + $0x8] sm:$0xff] %vm786, %v840
        %861 = vst.msk [vmem:[%s327 + $0x10] sm:$0xff] %vm786, %v849
        %862 = vst.msk [vmem:[%s327 + $0x18] sm:$0xff] %vm786, %v858
        %s863 = sand.u32 %s93, 1
        %s864 = sand.u32 %s93, 1
        %s865 = smul.addr %s864, 128
        %s866 = scalar_lea.vmem [#allocation3], %s865
        %p867 = scmp.lt.s32.totalorder %s17, 1
        %s868 = scalar_select %p867, %s17, 1
        %s869 = smul.addr %s868, 4
        %s870 = smul.addr %s869, 8
        %s871 = scalar_lea.vmem %s4, %s870
        %p872 = scmp.lt.s32.totalorder %s17, 1
        %s873 = scalar_select %p872, %s17, 1
        %s874 = smul.addr %s873, 4
        %s875 = smul.addr %s874, 8
        %s876 = scalar_lea.vmem %s5, %s875
        // Predicated region
        $region56: #{decoder_forward.8} parent=50 // pred_check
          %p877 = pneg %p103
        $region57: #{decoder_forward.8} parent=50 // pred_check_branch
          %879 = sbr.rel (%p877) target = $region59
        $region58: #{decoder_forward.8} parent=50 // pred_region
          %s880 = smul.u32 8, %s17
          %s881 = smul.addr %s880, 4
          %s882 = scalar_lea.vmem %s3, %s881
          // Predicated region
          $region60: #{decoder_forward.8} parent=58 // pred_check
            _
          $region61: #{decoder_forward.8} parent=58 // pred_check_branch
            %884 = sbr.rel (0) target = $region63
          $region62: #{decoder_forward.8} parent=58 // pred_region
            // Predicated region
            $region64: #{decoder_forward.8} parent=62 // pred_check
              _
            $region65: #{decoder_forward.8} parent=62 // pred_check_branch
              %886 = sbr.rel (0) target = $region67
            $region66: #{decoder_forward.8} parent=62 // pred_region
              loop: start=0, step=1, limit=1
              $region68: #{decoder_forward.8} parent=66 // loop_pre_header
                _
              $region69: #{decoder_forward.8} parent=66 // loop_header
                %s888 = sphi 0, %s892
                %p889 = scmp.ge.s32.totalorder %s888, 1
                %s893 = sphi %s866, %s866
                %s894 = sphi %s882, %s882
              $region70: #{decoder_forward.8} parent=66 // loop_header_branch
                %891 = sbr.rel (%p889) target = $region74
              $region71: #{decoder_forward.8} parent=66 // loop_body
                %v895 = vld [vmem:[%s893] sm:$0xff]
                %896 = vst [vmem:[%s894] sm:$0xff] %v895
                %v897 = vld [vmem:[%s893 + $0x8] sm:$0xff]
                %898 = vst [vmem:[%s894 + $0x8] sm:$0xff] %v897
                %v899 = vld [vmem:[%s893 + $0x10] sm:$0xff]
                %900 = vst [vmem:[%s894 + $0x10] sm:$0xff] %v899
                %v901 = vld [vmem:[%s893 + $0x18] sm:$0xff]
                %902 = vst [vmem:[%s894 + $0x18] sm:$0xff] %v901
                %v903 = vld [vmem:[%s893 + $0x20] sm:$0xff]
                %904 = vst [vmem:[%s894 + $0x40] sm:$0xff] %v903
                %v905 = vld [vmem:[%s893 + $0x28] sm:$0xff]
                %906 = vst [vmem:[%s894 + $0x48] sm:$0xff] %v905
                %v907 = vld [vmem:[%s893 + $0x30] sm:$0xff]
                %908 = vst [vmem:[%s894 + $0x50] sm:$0xff] %v907
                %v909 = vld [vmem:[%s893 + $0x38] sm:$0xff]
                %910 = vst [vmem:[%s894 + $0x58] sm:$0xff] %v909
                %v911 = vld [vmem:[%s893 + $0x40] sm:$0xff]
                %912 = vst [vmem:[%s894 + $0x80] sm:$0xff] %v911
                %v913 = vld [vmem:[%s893 + $0x48] sm:$0xff]
                %914 = vst [vmem:[%s894 + $0x88] sm:$0xff] %v913
                %v915 = vld [vmem:[%s893 + $0x50] sm:$0xff]
                %916 = vst [vmem:[%s894 + $0x90] sm:$0xff] %v915
                %v917 = vld [vmem:[%s893 + $0x58] sm:$0xff]
                %918 = vst [vmem:[%s894 + $0x98] sm:$0xff] %v917
                %v919 = vld [vmem:[%s893 + $0x60] sm:$0xff]
                %920 = vst [vmem:[%s894 + $0xc0] sm:$0xff] %v919
                %v921 = vld [vmem:[%s893 + $0x68] sm:$0xff]
                %922 = vst [vmem:[%s894 + $0xc8] sm:$0xff] %v921
                %v923 = vld [vmem:[%s893 + $0x70] sm:$0xff]
                %924 = vst [vmem:[%s894 + $0xd0] sm:$0xff] %v923
                %v925 = vld [vmem:[%s893 + $0x78] sm:$0xff]
                %926 = vst [vmem:[%s894 + $0xd8] sm:$0xff] %v925
              $region72: #{decoder_forward.8} parent=66 // loop_footer
                %s892 = sadd.s32 1, %s888
              $region73: #{decoder_forward.8} parent=66 // loop_footer_branch
                %887 = sbr.rel target = $region69
              $region74: #{decoder_forward.8} parent=66 // loop_exit
                _
            $region67: #{decoder_forward.8} parent=62 // pred_fallthru
              _
            // Predicated region
            $region75: #{decoder_forward.8} parent=62 // pred_check
              _
            $region76: #{decoder_forward.8} parent=62 // pred_check_branch
              %928 = sbr.rel target = $region78
            $region77: #{decoder_forward.8} parent=62 // pred_region
              _
            $region78: #{decoder_forward.8} parent=62 // pred_fallthru
              _
          $region63: #{decoder_forward.8} parent=58 // pred_fallthru
            _
          %929 = vnop
        $region59: #{decoder_forward.8} parent=50 // pred_fallthru
          _
        // Predicated region
        $region79: #{decoder_forward.8} parent=50 // pred_check
          %p930 = pneg %p129
        $region80: #{decoder_forward.8} parent=50 // pred_check_branch
          %932 = sbr.rel (%p930) target = $region82
        $region81: #{decoder_forward.8} parent=50 // pred_region
          _
        $region82: #{decoder_forward.8} parent=50 // pred_fallthru
          _
        // Predicated region
        $region83: #{decoder_forward.8} parent=50 // pred_check
          %p933 = pneg %p155
        $region84: #{decoder_forward.8} parent=50 // pred_check_branch
          %935 = sbr.rel (%p933) target = $region86
        $region85: #{decoder_forward.8} parent=50 // pred_region
          _
        $region86: #{decoder_forward.8} parent=50 // pred_fallthru
          _
      $region51: #{decoder_forward.8} parent=5 // pred_fallthru
        _
      %p936 = scmp.le.s32.totalorder 2, %s12
      // Predicated region
      $region87: #{decoder_forward.8} parent=5 // pred_check
        %p937 = pneg %p936
      $region88: #{decoder_forward.8} parent=5 // pred_check_branch
        %939 = sbr.rel (%p937) target = $region90
      $region89: #{decoder_forward.8} parent=5 // pred_region
        %s940 = ssub.s32 %s12, 2
        // Predicated region
        $region91: #{decoder_forward.8} parent=89 // pred_check
          %p941 = pneg %p109
        $region92: #{decoder_forward.8} parent=89 // pred_check_branch
          %943 = sbr.rel (%p941) target = $region94
        $region93: #{decoder_forward.8} parent=89 // pred_region
          %s944 = sand.u32 %s94, 1
          %s945 = sand.u32 %s94, 1
          %s946 = smul.addr %s945, 128
          %s947 = scalar_lea.vmem [#allocation3], %s946
        $region94: #{decoder_forward.8} parent=89 // pred_fallthru
          _
        // Predicated region
        $region95: #{decoder_forward.8} parent=89 // pred_check
          %p948 = pneg %p135
        $region96: #{decoder_forward.8} parent=89 // pred_check_branch
          %950 = sbr.rel (%p948) target = $region98
        $region97: #{decoder_forward.8} parent=89 // pred_region
          %p951 = scmp.lt.s32.totalorder %s18, 1
          %s952 = scalar_select %p951, %s18, 1
          %s953 = smul.addr %s952, 4
          %s954 = smul.addr %s953, 8
          %s955 = scalar_lea.vmem %s4, %s954
        $region98: #{decoder_forward.8} parent=89 // pred_fallthru
          _
        // Predicated region
        $region99: #{decoder_forward.8} parent=89 // pred_check
          %p956 = pneg %p161
        $region100: #{decoder_forward.8} parent=89 // pred_check_branch
          %958 = sbr.rel (%p956) target = $region102
        $region101: #{decoder_forward.8} parent=89 // pred_region
          %p959 = scmp.lt.s32.totalorder %s18, 1
          %s960 = scalar_select %p959, %s18, 1
          %s961 = smul.addr %s960, 4
          %s962 = smul.addr %s961, 8
          %s963 = scalar_lea.vmem %s5, %s962
        $region102: #{decoder_forward.8} parent=89 // pred_fallthru
          _
      $region90: #{decoder_forward.8} parent=5 // pred_fallthru
        _
    $region6: #{decoder_forward.8} parent=1 // loop_footer
      %s16 = sadd.s32 1, %s12
    $region7: #{decoder_forward.8} parent=1 // loop_footer_branch
      %11 = sbr.rel target = $region3
    $region8: #{decoder_forward.8} parent=1 // loop_exit
      _

// kernel: decoder_forward.9
$region0: #{decoder_forward.9}
  #allocation0 [shape = 'u32[]', space=smem, size = 0x4, offset = 0x4, fixed_abs, tag = 'smem constant byte address 0x4 - core index']
  #allocation1 [shape = 'u32[72,128]{1,0:T(1,128)}', space=vmem, size = 0x9000, scoped, tag = 'internal scratch']
  %s0 = inlined_call_operand.vmem [shape: bf16[32,8192], index: 0, kind: input, shape index: {}]
  %s1 = inlined_call_operand.vmem [shape: bf16[4,32], index: 1, kind: input, shape index: {}]
  %s2 = inlined_call_operand.vmem [shape: f32[4,1], index: 2, kind: input, shape index: {}]
  %s3 = inlined_call_operand.vmem [shape: bf16[4,8192], index: 3, kind: output, shape index: {}]
  %s4 = sld [smem:[#allocation0]]
  $region68: #{decoder_forward.9} parent=0
    _
  %s6 = ssub.s32 1, %s4
  %s7 = scalar_select 0, %s6, %s4
  $region1: #{decoder_forward.9} parent=0
    #allocation2 [shape = 'u8[524288]{0}', space=vmem, size = 0x80000, scoped, tag = 'input window, operand 0']
    loop: start=0, step=1, limit=4
    $region2: #{decoder_forward.9} parent=1 // loop_pre_header
      _
    $region3: #{decoder_forward.9} parent=1 // loop_header
      %s9 = sphi 0, %s13
      %p10 = scmp.ge.s32.totalorder %s9, 4
      %s19 = sphi 0, %s21
      %s22 = sphi 0, %s19
      %s23 = sphi 0, %s22
      %s39 = sphi 0, %s23
      %s43 = sphi 0, %s43
      %s45 = sphi 0, %s43
      %s46 = sphi 0, %s45
      %s60 = sphi 0, %s46
      %s64 = sphi 0, %s64
      %s66 = sphi 0, %s64
      %s67 = sphi 0, %s66
      %s81 = sphi 0, %s67
      %s87 = sphi 0, %s89
      %s90 = sphi 0, %s87
      %s91 = sphi 0, %s90
      %s107 = sphi 0, %s91
    $region4: #{decoder_forward.9} parent=1 // loop_header_branch
      %12 = sbr.rel (%p10) target = $region8
    $region5: #{decoder_forward.9} parent=1 // loop_body
      %s14 = ssub.s32 %s9, 1
      %s15 = ssub.s32 %s9, 2
      %s16 = sadd.s32 %s9, 1
      %s17 = ssub.s32 %s9, %s16
      %p18 = scmp.eq.s32.totalorder %s17, 0
      %s20 = sadd.s32 %s19, 1
      %s21 = scalar_select %p18, %s19, %s20
      %p24 = pneg %p18
      %p25 = scmp.eq.s32.totalorder %s9, 1
      %p26 = por %p24, %p25
      %p27 = scmp.ne.s32.totalorder %s19, %s22
      %p28 = scmp.eq.s32.totalorder %s9, 0
      %p29 = por %p27, %p28
      %p30 = scmp.ne.s32.totalorder %s19, %s22
      %p31 = scmp.eq.s32.totalorder %s14, 1
      %p32 = por %p30, %p31
      %p33 = scmp.ne.s32.totalorder %s22, %s23
      %p34 = scmp.eq.s32.totalorder %s14, 0
      %p35 = por %p33, %p34
      %p36 = scmp.ne.s32.totalorder %s22, %s23
      %p37 = scmp.eq.s32.totalorder %s15, 1
      %p38 = por %p36, %p37
      %p40 = scmp.ne.s32.totalorder %s23, %s39
      %p41 = scmp.eq.s32.totalorder %s15, 0
      %p42 = por %p40, %p41
      %s44 = sadd.s32 %s43, 1
      %p47 = scmp.eq.s32.totalorder %s9, 1
      %p48 = scmp.ne.s32.totalorder %s43, %s45
      %p49 = scmp.eq.s32.totalorder %s9, 0
      %p50 = por %p48, %p49
      %p51 = scmp.ne.s32.totalorder %s43, %s45
      %p52 = scmp.eq.s32.totalorder %s14, 1
      %p53 = por %p51, %p52
      %p54 = scmp.ne.s32.totalorder %s45, %s46
      %p55 = scmp.eq.s32.totalorder %s14, 0
      %p56 = por %p54, %p55
      %p57 = scmp.ne.s32.totalorder %s45, %s46
      %p58 = scmp.eq.s32.totalorder %s15, 1
      %p59 = por %p57, %p58
      %p61 = scmp.ne.s32.totalorder %s46, %s60
      %p62 = scmp.eq.s32.totalorder %s15, 0
      %p63 = por %p61, %p62
      %s65 = sadd.s32 %s64, 1
      %p68 = scmp.eq.s32.totalorder %s9, 1
      %p69 = scmp.ne.s32.totalorder %s64, %s66
      %p70 = scmp.eq.s32.totalorder %s9, 0
      %p71 = por %p69, %p70
      %p72 = scmp.ne.s32.totalorder %s64, %s66
      %p73 = scmp.eq.s32.totalorder %s14, 1
      %p74 = por %p72, %p73
      %p75 = scmp.ne.s32.totalorder %s66, %s67
      %p76 = scmp.eq.s32.totalorder %s14, 0
      %p77 = por %p75, %p76
      %p78 = scmp.ne.s32.totalorder %s66, %s67
      %p79 = scmp.eq.s32.totalorder %s15, 1
      %p80 = por %p78, %p79
      %p82 = scmp.ne.s32.totalorder %s67, %s81
      %p83 = scmp.eq.s32.totalorder %s15, 0
      %p84 = por %p82, %p83
      %s85 = ssub.s32 %s9, %s16
      %p86 = scmp.eq.s32.totalorder %s85, 0
      %s88 = sadd.s32 %s87, 1
      %s89 = scalar_select %p86, %s87, %s88
      %p92 = pneg %p86
      %p93 = scmp.eq.s32.totalorder %s9, 1
      %p94 = por %p92, %p93
      %p95 = scmp.ne.s32.totalorder %s87, %s90
      %p96 = scmp.eq.s32.totalorder %s9, 0
      %p97 = por %p95, %p96
      %p98 = scmp.ne.s32.totalorder %s87, %s90
      %p99 = scmp.eq.s32.totalorder %s14, 1
      %p100 = por %p98, %p99
      %p101 = scmp.ne.s32.totalorder %s90, %s91
      %p102 = scmp.eq.s32.totalorder %s14, 0
      %p103 = por %p101, %p102
      %p104 = scmp.ne.s32.totalorder %s90, %s91
      %p105 = scmp.eq.s32.totalorder %s15, 1
      %p106 = por %p104, %p105
      %p108 = scmp.ne.s32.totalorder %s91, %s107
      %p109 = scmp.eq.s32.totalorder %s15, 0
      %p110 = por %p108, %p109
      %p111 = scmp.le.s32.totalorder 1, %s9
      %p112 = scmp.lt.s32.totalorder %s9, 3
      %p113 = pnand %p111, %p112
      %p114 = pneg %p113
      // Predicated region
      $region9: #{decoder_forward.9} parent=5 // pred_check
        _
      $region10: #{decoder_forward.9} parent=5 // pred_check_branch
        %116 = sbr.rel (%p113) target = $region12
      $region11: #{decoder_forward.9} parent=5 // pred_region
        %s117 = ssub.s32 %s9, 1
        // Predicated region
        $region13: #{decoder_forward.9} parent=11 // pred_check
          %p118 = pneg %p56
        $region14: #{decoder_forward.9} parent=11 // pred_check_branch
          %120 = sbr.rel (%p118) target = $region16
        $region15: #{decoder_forward.9} parent=11 // pred_region
          _
        $region16: #{decoder_forward.9} parent=11 // pred_fallthru
          _
        // Predicated region
        $region17: #{decoder_forward.9} parent=11 // pred_check
          %p121 = pneg %p77
        $region18: #{decoder_forward.9} parent=11 // pred_check_branch
          %123 = sbr.rel (%p121) target = $region20
        $region19: #{decoder_forward.9} parent=11 // pred_region
          _
        $region20: #{decoder_forward.9} parent=11 // pred_fallthru
          _
      $region12: #{decoder_forward.9} parent=5 // pred_fallthru
        _
      %p124 = scmp.lt.s32.totalorder %s9, 2
      // Predicated region
      $region21: #{decoder_forward.9} parent=5 // pred_check
        %p125 = pneg %p124
      $region22: #{decoder_forward.9} parent=5 // pred_check_branch
        %127 = sbr.rel (%p125) target = $region24
      $region23: #{decoder_forward.9} parent=5 // pred_region
        // Predicated region
        $region25: #{decoder_forward.9} parent=23 // pred_check
          %p128 = pneg %p29
        $region26: #{decoder_forward.9} parent=23 // pred_check_branch
          %130 = sbr.rel (%p128) target = $region28
        $region27: #{decoder_forward.9} parent=23 // pred_region
          %s131 = sand.u32 %s19, 1
          %s132 = sand.u32 %s19, 1
          %s133 = smul.addr %s132, 512
          %s134 = scalar_lea.vmem [#allocation2], %s133
          %s135 = smul.u32 32, %s9
          %s136 = smul.addr %s135, 4
          %s137 = scalar_lea.vmem %s0, %s136
          // Predicated region
          $region29: #{decoder_forward.9} parent=27 // pred_check
            _
          $region30: #{decoder_forward.9} parent=27 // pred_check_branch
            %139 = sbr.rel (0) target = $region32
          $region31: #{decoder_forward.9} parent=27 // pred_region
            // Predicated region
            $region33: #{decoder_forward.9} parent=31 // pred_check
              _
            $region34: #{decoder_forward.9} parent=31 // pred_check_branch
              %141 = sbr.rel (0) target = $region36
            $region35: #{decoder_forward.9} parent=31 // pred_region
              loop: start=0, step=1, limit=1
              $region37: #{decoder_forward.9} parent=35 // loop_pre_header
                _
              $region38: #{decoder_forward.9} parent=35 // loop_header
                %s143 = sphi 0, %s147
                %p144 = scmp.ge.s32.totalorder %s143, 1
                %s148 = sphi %s137, %s137
                %s149 = sphi %s134, %s134
              $region39: #{decoder_forward.9} parent=35 // loop_header_branch
                %146 = sbr.rel (%p144) target = $region43
              $region40: #{decoder_forward.9} parent=35 // loop_body
                %v150 = vld [vmem:[%s148] sm:$0xff]
                %151 = vst [vmem:[%s149] sm:$0xff] %v150
                %v152 = vld [vmem:[%s148 + $0x8] sm:$0xff]
                %153 = vst [vmem:[%s149 + $0x8] sm:$0xff] %v152
                %v154 = vld [vmem:[%s148 + $0x10] sm:$0xff]
                %155 = vst [vmem:[%s149 + $0x10] sm:$0xff] %v154
                %v156 = vld [vmem:[%s148 + $0x18] sm:$0xff]
                %157 = vst [vmem:[%s149 + $0x18] sm:$0xff] %v156
                %v158 = vld [vmem:[%s148 + $0x20] sm:$0xff]
                %159 = vst [vmem:[%s149 + $0x20] sm:$0xff] %v158
                %v160 = vld [vmem:[%s148 + $0x28] sm:$0xff]
                %161 = vst [vmem:[%s149 + $0x28] sm:$0xff] %v160
                %v162 = vld [vmem:[%s148 + $0x30] sm:$0xff]
                %163 = vst [vmem:[%s149 + $0x30] sm:$0xff] %v162
                %v164 = vld [vmem:[%s148 + $0x38] sm:$0xff]
                %165 = vst [vmem:[%s149 + $0x38] sm:$0xff] %v164
                %v166 = vld [vmem:[%s148 + $0x40] sm:$0xff]
                %167 = vst [vmem:[%s149 + $0x40] sm:$0xff] %v166
                %v168 = vld [vmem:[%s148 + $0x48] sm:$0xff]
                %169 = vst [vmem:[%s149 + $0x48] sm:$0xff] %v168
                %v170 = vld [vmem:[%s148 + $0x50] sm:$0xff]
                %171 = vst [vmem:[%s149 + $0x50] sm:$0xff] %v170
                %v172 = vld [vmem:[%s148 + $0x58] sm:$0xff]
                %173 = vst [vmem:[%s149 + $0x58] sm:$0xff] %v172
                %v174 = vld [vmem:[%s148 + $0x60] sm:$0xff]
                %175 = vst [vmem:[%s149 + $0x60] sm:$0xff] %v174
                %v176 = vld [vmem:[%s148 + $0x68] sm:$0xff]
                %177 = vst [vmem:[%s149 + $0x68] sm:$0xff] %v176
                %v178 = vld [vmem:[%s148 + $0x70] sm:$0xff]
                %179 = vst [vmem:[%s149 + $0x70] sm:$0xff] %v178
                %v180 = vld [vmem:[%s148 + $0x78] sm:$0xff]
                %181 = vst [vmem:[%s149 + $0x78] sm:$0xff] %v180
                %v182 = vld [vmem:[%s148 + $0x100] sm:$0xff]
                %183 = vst [vmem:[%s149 + $0x80] sm:$0xff] %v182
                %v184 = vld [vmem:[%s148 + $0x108] sm:$0xff]
                %185 = vst [vmem:[%s149 + $0x88] sm:$0xff] %v184
                %v186 = vld [vmem:[%s148 + $0x110] sm:$0xff]
                %187 = vst [vmem:[%s149 + $0x90] sm:$0xff] %v186
                %v188 = vld [vmem:[%s148 + $0x118] sm:$0xff]
                %189 = vst [vmem:[%s149 + $0x98] sm:$0xff] %v188
                %v190 = vld [vmem:[%s148 + $0x120] sm:$0xff]
                %191 = vst [vmem:[%s149 + $0xa0] sm:$0xff] %v190
                %v192 = vld [vmem:[%s148 + $0x128] sm:$0xff]
                %193 = vst [vmem:[%s149 + $0xa8] sm:$0xff] %v192
                %v194 = vld [vmem:[%s148 + $0x130] sm:$0xff]
                %195 = vst [vmem:[%s149 + $0xb0] sm:$0xff] %v194
                %v196 = vld [vmem:[%s148 + $0x138] sm:$0xff]
                %197 = vst [vmem:[%s149 + $0xb8] sm:$0xff] %v196
                %v198 = vld [vmem:[%s148 + $0x140] sm:$0xff]
                %199 = vst [vmem:[%s149 + $0xc0] sm:$0xff] %v198
                %v200 = vld [vmem:[%s148 + $0x148] sm:$0xff]
                %201 = vst [vmem:[%s149 + $0xc8] sm:$0xff] %v200
                %v202 = vld [vmem:[%s148 + $0x150] sm:$0xff]
                %203 = vst [vmem:[%s149 + $0xd0] sm:$0xff] %v202
                %v204 = vld [vmem:[%s148 + $0x158] sm:$0xff]
                %205 = vst [vmem:[%s149 + $0xd8] sm:$0xff] %v204
                %v206 = vld [vmem:[%s148 + $0x160] sm:$0xff]
                %207 = vst [vmem:[%s149 + $0xe0] sm:$0xff] %v206
                %v208 = vld [vmem:[%s148 + $0x168] sm:$0xff]
                %209 = vst [vmem:[%s149 + $0xe8] sm:$0xff] %v208
                %v210 = vld [vmem:[%s148 + $0x170] sm:$0xff]
                %211 = vst [vmem:[%s149 + $0xf0] sm:$0xff] %v210
                %v212 = vld [vmem:[%s148 + $0x178] sm:$0xff]
                %213 = vst [vmem:[%s149 + $0xf8] sm:$0xff] %v212
                %v214 = vld [vmem:[%s148 + $0x200] sm:$0xff]
                %215 = vst [vmem:[%s149 + $0x100] sm:$0xff] %v214
                %v216 = vld [vmem:[%s148 + $0x208] sm:$0xff]
                %217 = vst [vmem:[%s149 + $0x108] sm:$0xff] %v216
                %v218 = vld [vmem:[%s148 + $0x210] sm:$0xff]
                %219 = vst [vmem:[%s149 + $0x110] sm:$0xff] %v218
                %v220 = vld [vmem:[%s148 + $0x218] sm:$0xff]
                %221 = vst [vmem:[%s149 + $0x118] sm:$0xff] %v220
                %v222 = vld [vmem:[%s148 + $0x220] sm:$0xff]
                %223 = vst [vmem:[%s149 + $0x120] sm:$0xff] %v222
                %v224 = vld [vmem:[%s148 + $0x228] sm:$0xff]
                %225 = vst [vmem:[%s149 + $0x128] sm:$0xff] %v224
                %v226 = vld [vmem:[%s148 + $0x230] sm:$0xff]
                %227 = vst [vmem:[%s149 + $0x130] sm:$0xff] %v226
                %v228 = vld [vmem:[%s148 + $0x238] sm:$0xff]
                %229 = vst [vmem:[%s149 + $0x138] sm:$0xff] %v228
                %v230 = vld [vmem:[%s148 + $0x240] sm:$0xff]
                %231 = vst [vmem:[%s149 + $0x140] sm:$0xff] %v230
                %v232 = vld [vmem:[%s148 + $0x248] sm:$0xff]
                %233 = vst [vmem:[%s149 + $0x148] sm:$0xff] %v232
                %v234 = vld [vmem:[%s148 + $0x250] sm:$0xff]
                %235 = vst [vmem:[%s149 + $0x150] sm:$0xff] %v234
                %v236 = vld [vmem:[%s148 + $0x258] sm:$0xff]
                %237 = vst [vmem:[%s149 + $0x158] sm:$0xff] %v236
                %v238 = vld [vmem:[%s148 + $0x260] sm:$0xff]
                %239 = vst [vmem:[%s149 + $0x160] sm:$0xff] %v238
                %v240 = vld [vmem:[%s148 + $0x268] sm:$0xff]
                %241 = vst [vmem:[%s149 + $0x168] sm:$0xff] %v240
                %v242 = vld [vmem:[%s148 + $0x270] sm:$0xff]
                %243 = vst [vmem:[%s149 + $0x170] sm:$0xff] %v242
                %v244 = vld [vmem:[%s148 + $0x278] sm:$0xff]
                %245 = vst [vmem:[%s149 + $0x178] sm:$0xff] %v244
                %v246 = vld [vmem:[%s148 + $0x300] sm:$0xff]
                %247 = vst [vmem:[%s149 + $0x180] sm:$0xff] %v246
                %v248 = vld [vmem:[%s148 + $0x308] sm:$0xff]
                %249 = vst [vmem:[%s149 + $0x188] sm:$0xff] %v248
                %v250 = vld [vmem:[%s148 + $0x310] sm:$0xff]
                %251 = vst [vmem:[%s149 + $0x190] sm:$0xff] %v250
                %v252 = vld [vmem:[%s148 + $0x318] sm:$0xff]
                %253 = vst [vmem:[%s149 + $0x198] sm:$0xff] %v252
                %v254 = vld [vmem:[%s148 + $0x320] sm:$0xff]
                %255 = vst [vmem:[%s149 + $0x1a0] sm:$0xff] %v254
                %v256 = vld [vmem:[%s148 + $0x328] sm:$0xff]
                %257 = vst [vmem:[%s149 + $0x1a8] sm:$0xff] %v256
                %v258 = vld [vmem:[%s148 + $0x330] sm:$0xff]
                %259 = vst [vmem:[%s149 + $0x1b0] sm:$0xff] %v258
                %v260 = vld [vmem:[%s148 + $0x338] sm:$0xff]
                %261 = vst [vmem:[%s149 + $0x1b8] sm:$0xff] %v260
                %v262 = vld [vmem:[%s148 + $0x340] sm:$0xff]
                %263 = vst [vmem:[%s149 + $0x1c0] sm:$0xff] %v262
                %v264 = vld [vmem:[%s148 + $0x348] sm:$0xff]
                %265 = vst [vmem:[%s149 + $0x1c8] sm:$0xff] %v264
                %v266 = vld [vmem:[%s148 + $0x350] sm:$0xff]
                %267 = vst [vmem:[%s149 + $0x1d0] sm:$0xff] %v266
                %v268 = vld [vmem:[%s148 + $0x358] sm:$0xff]
                %269 = vst [vmem:[%s149 + $0x1d8] sm:$0xff] %v268
                %v270 = vld [vmem:[%s148 + $0x360] sm:$0xff]
                %271 = vst [vmem:[%s149 + $0x1e0] sm:$0xff] %v270
                %v272 = vld [vmem:[%s148 + $0x368] sm:$0xff]
                %273 = vst [vmem:[%s149 + $0x1e8] sm:$0xff] %v272
                %v274 = vld [vmem:[%s148 + $0x370] sm:$0xff]
                %275 = vst [vmem:[%s149 + $0x1f0] sm:$0xff] %v274
                %v276 = vld [vmem:[%s148 + $0x378] sm:$0xff]
                %277 = vst [vmem:[%s149 + $0x1f8] sm:$0xff] %v276
              $region41: #{decoder_forward.9} parent=35 // loop_footer
                %s147 = sadd.s32 1, %s143
              $region42: #{decoder_forward.9} parent=35 // loop_footer_branch
                %142 = sbr.rel target = $region38
              $region43: #{decoder_forward.9} parent=35 // loop_exit
                _
            $region36: #{decoder_forward.9} parent=31 // pred_fallthru
              _
            // Predicated region
            $region44: #{decoder_forward.9} parent=31 // pred_check
              _
            $region45: #{decoder_forward.9} parent=31 // pred_check_branch
              %279 = sbr.rel target = $region47
            $region46: #{decoder_forward.9} parent=31 // pred_region
              _
            $region47: #{decoder_forward.9} parent=31 // pred_fallthru
              _
          $region32: #{decoder_forward.9} parent=27 // pred_fallthru
            _
          %280 = vnop
        $region28: #{decoder_forward.9} parent=23 // pred_fallthru
          _
      $region24: #{decoder_forward.9} parent=5 // pred_fallthru
        _
      %p281 = scmp.le.s32.totalorder 1, %s9
      %p282 = scmp.lt.s32.totalorder %s9, 3
      %p283 = pnand %p281, %p282
      %p284 = pneg %p283
      // Predicated region
      $region48: #{decoder_forward.9} parent=5 // pred_check
        _
      $region49: #{decoder_forward.9} parent=5 // pred_check_branch
        %286 = sbr.rel (%p283) target = $region51
      $region50: #{decoder_forward.9} parent=5 // pred_region
        %s287 = ssub.s32 %s9, 1
        %s288 = sand.u32 %s22, 1
        %s289 = sand.u32 %s22, 1
        %s290 = smul.addr %s289, 512
        %s291 = scalar_lea.vmem [#allocation2], %s290
        // Predicated region
        $region52: #{decoder_forward.9} parent=50 // pred_check
          %p292 = pneg %p35
        $region53: #{decoder_forward.9} parent=50 // pred_check_branch
          %294 = sbr.rel (%p292) target = $region55
        $region54: #{decoder_forward.9} parent=50 // pred_region
          _
        $region55: #{decoder_forward.9} parent=50 // pred_fallthru
          _
        %s295 = sand.u32 %s22, 1
        %s296 = sand.u32 %s22, 1
        %s297 = smul.addr %s296, 512
        %s298 = scalar_lea.vmem [#allocation2], %s297
        %p299 = pneg %p35
        %p300 = pneg %p32
        %p301 = pneg %p56
        %p302 = pneg %p53
        %p303 = pneg %p77
        %p304 = pneg %p74
        %p305 = pneg %p103
        %p306 = pneg %p100
        %s307 = smul.u32 32, %s14
        %p308 = scmp.lt.s32.totalorder %s307, 63
        %s309 = scalar_select %p308, %s307, 63
        %s310 = smul.addr %s309, 2
        %s311 = scalar_lea.vmem %s3, %s310
        %s312 = smul.u32 32, %s14
        %s313 = smul.u32 32, %s14
        %p314 = scmp.lt.s32.totalorder %s313, 63
        %s315 = scalar_select %p314, %s313, 63
        %s316 = smul.addr %s315, 2
        %s317 = scalar_lea.vmem %s3, %s316
        %s318 = smul.u32 32, %s14
        %v320 = vld [vmem:[%s1] sm:$0x3]
        %v321 = vld [vmem:[%s291] sm:$0xff]
        %v322 = vld [vmem:[%s291 + $0x8] sm:$0xff]
        %v323 = vld [vmem:[%s291 + $0x10] sm:$0xff]
        %v324 = vld [vmem:[%s291 + $0x18] sm:$0xff]
        %v325 = vld [vmem:[%s291 + $0x20] sm:$0xff]
        %v326 = vld [vmem:[%s291 + $0x28] sm:$0xff]
        %v327 = vld [vmem:[%s291 + $0x30] sm:$0xff]
        %v328 = vld [vmem:[%s291 + $0x38] sm:$0xff]
        %v329 = vld [vmem:[%s291 + $0x40] sm:$0xff]
        %v330 = vld [vmem:[%s291 + $0x48] sm:$0xff]
        %v331 = vld [vmem:[%s291 + $0x50] sm:$0xff]
        %v332 = vld [vmem:[%s291 + $0x58] sm:$0xff]
        %v333 = vld [vmem:[%s291 + $0x60] sm:$0xff]
        %v334 = vld [vmem:[%s291 + $0x68] sm:$0xff]
        %v335 = vld [vmem:[%s291 + $0x70] sm:$0xff]
        %v336 = vld [vmem:[%s291 + $0x78] sm:$0xff]
        %v337 = vld [vmem:[%s291 + $0x80] sm:$0xff]
        %v338 = vld [vmem:[%s291 + $0x88] sm:$0xff]
        %v339 = vld [vmem:[%s291 + $0x90] sm:$0xff]
        %v340 = vld [vmem:[%s291 + $0x98] sm:$0xff]
        %v341 = vld [vmem:[%s291 + $0xa0] sm:$0xff]
        %v342 = vld [vmem:[%s291 + $0xa8] sm:$0xff]
        %v343 = vld [vmem:[%s291 + $0xb0] sm:$0xff]
        %v344 = vld [vmem:[%s291 + $0xb8] sm:$0xff]
        %v345 = vld [vmem:[%s291 + $0xc0] sm:$0xff]
        %v346 = vld [vmem:[%s291 + $0xc8] sm:$0xff]
        %v347 = vld [vmem:[%s291 + $0xd0] sm:$0xff]
        %v348 = vld [vmem:[%s291 + $0xd8] sm:$0xff]
        %v349 = vld [vmem:[%s291 + $0xe0] sm:$0xff]
        %v350 = vld [vmem:[%s291 + $0xe8] sm:$0xff]
        %v351 = vld [vmem:[%s291 + $0xf0] sm:$0xff]
        %v352 = vld [vmem:[%s291 + $0xf8] sm:$0xff]
        %v353 = vld [vmem:[%s291 + $0x100] sm:$0xff]
        %v354 = vld [vmem:[%s291 + $0x108] sm:$0xff]
        %v355 = vld [vmem:[%s291 + $0x110] sm:$0xff]
        %v356 = vld [vmem:[%s291 + $0x118] sm:$0xff]
        %v357 = vld [vmem:[%s291 + $0x120] sm:$0xff]
        %v358 = vld [vmem:[%s291 + $0x128] sm:$0xff]
        %v359 = vld [vmem:[%s291 + $0x130] sm:$0xff]
        %v360 = vld [vmem:[%s291 + $0x138] sm:$0xff]
        %v361 = vld [vmem:[%s291 + $0x140] sm:$0xff]
        %v362 = vld [vmem:[%s291 + $0x148] sm:$0xff]
        %v363 = vld [vmem:[%s291 + $0x150] sm:$0xff]
        %v364 = vld [vmem:[%s291 + $0x158] sm:$0xff]
        %v365 = vld [vmem:[%s291 + $0x160] sm:$0xff]
        %v366 = vld [vmem:[%s291 + $0x168] sm:$0xff]
        %v367 = vld [vmem:[%s291 + $0x170] sm:$0xff]
        %v368 = vld [vmem:[%s291 + $0x178] sm:$0xff]
        %v369 = vld [vmem:[%s291 + $0x180] sm:$0xff]
        %v370 = vld [vmem:[%s291 + $0x188] sm:$0xff]
        %v371 = vld [vmem:[%s291 + $0x190] sm:$0xff]
        %v372 = vld [vmem:[%s291 + $0x198] sm:$0xff]
        %v373 = vld [vmem:[%s291 + $0x1a0] sm:$0xff]
        %v374 = vld [vmem:[%s291 + $0x1a8] sm:$0xff]
        %v375 = vld [vmem:[%s291 + $0x1b0] sm:$0xff]
        %v376 = vld [vmem:[%s291 + $0x1b8] sm:$0xff]
        %v377 = vld [vmem:[%s291 + $0x1c0] sm:$0xff]
        %v378 = vld [vmem:[%s291 + $0x1c8] sm:$0xff]
        %v379 = vld [vmem:[%s291 + $0x1d0] sm:$0xff]
        %v380 = vld [vmem:[%s291 + $0x1d8] sm:$0xff]
        %v381 = vld [vmem:[%s291 + $0x1e0] sm:$0xff]
        %v382 = vld [vmem:[%s291 + $0x1e8] sm:$0xff]
        %v383 = vld [vmem:[%s291 + $0x1f0] sm:$0xff]
        %v384 = vld [vmem:[%s291 + $0x1f8] sm:$0xff]
        %v385 = vld [vmem:[%s2] sm:$0xf]
        %387 = vset.pattern.permute.xlu0 0
        %388 = vperm.xlu0 %387, %v385
        %v389 = vpop.permute.xlu0 %388
        %v455 = vunpack.c.l.b16 %v321
        %v456 = vunpack.c.h.b16 %v321
        %v457 = vunpack.c.l.b16 %v322
        %v458 = vunpack.c.h.b16 %v322
        %v459 = vunpack.c.l.b16 %v323
        %v460 = vunpack.c.h.b16 %v323
        %v461 = vunpack.c.l.b16 %v324
        %v462 = vunpack.c.h.b16 %v324
        %v463 = vunpack.c.l.b16 %v325
        %v464 = vunpack.c.h.b16 %v325
        %v465 = vunpack.c.l.b16 %v326
        %v466 = vunpack.c.h.b16 %v326
        %v467 = vunpack.c.l.b16 %v327
        %v468 = vunpack.c.h.b16 %v327
        %v469 = vunpack.c.l.b16 %v328
        %v470 = vunpack.c.h.b16 %v328
        %v471 = vunpack.c.l.b16 %v329
        %v472 = vunpack.c.h.b16 %v329
        %v473 = vunpack.c.l.b16 %v330
        %v474 = vunpack.c.h.b16 %v330
        %v475 = vunpack.c.l.b16 %v331
        %v476 = vunpack.c.h.b16 %v331
        %v477 = vunpack.c.l.b16 %v332
        %v478 = vunpack.c.h.b16 %v332
        %v479 = vunpack.c.l.b16 %v333
        %v480 = vunpack.c.h.b16 %v333
        %v481 = vunpack.c.l.b16 %v334
        %v482 = vunpack.c.h.b16 %v334
        %v483 = vunpack.c.l.b16 %v335
        %v484 = vunpack.c.h.b16 %v335
        %v485 = vunpack.c.l.b16 %v336
        %v486 = vunpack.c.h.b16 %v336
        %v487 = vunpack.c.l.b16 %v337
        %v488 = vunpack.c.h.b16 %v337
        %v489 = vunpack.c.l.b16 %v338
        %v490 = vunpack.c.h.b16 %v338
        %v491 = vunpack.c.l.b16 %v339
        %v492 = vunpack.c.h.b16 %v339
        %v493 = vunpack.c.l.b16 %v340
        %v494 = vunpack.c.h.b16 %v340
        %v495 = vunpack.c.l.b16 %v341
        %v496 = vunpack.c.h.b16 %v341
        %v497 = vunpack.c.l.b16 %v342
        %v498 = vunpack.c.h.b16 %v342
        %v499 = vunpack.c.l.b16 %v343
        %v500 = vunpack.c.h.b16 %v343
        %v501 = vunpack.c.l.b16 %v344
        %v502 = vunpack.c.h.b16 %v344
        %v503 = vunpack.c.l.b16 %v345
        %v504 = vunpack.c.h.b16 %v345
        %v505 = vunpack.c.l.b16 %v346
        %v506 = vunpack.c.h.b16 %v346
        %v507 = vunpack.c.l.b16 %v347
        %v508 = vunpack.c.h.b16 %v347
        %v509 = vunpack.c.l.b16 %v348
        %v510 = vunpack.c.h.b16 %v348
        %v511 = vunpack.c.l.b16 %v349
        %v512 = vunpack.c.h.b16 %v349
        %v513 = vunpack.c.l.b16 %v350
        %v514 = vunpack.c.h.b16 %v350
        %v515 = vunpack.c.l.b16 %v351
        %v516 = vunpack.c.h.b16 %v351
        %v517 = vunpack.c.l.b16 %v352
        %v518 = vunpack.c.h.b16 %v352
        %v519 = vunpack.c.l.b16 %v353
        %v520 = vunpack.c.h.b16 %v353
        %v521 = vunpack.c.l.b16 %v354
        %v522 = vunpack.c.h.b16 %v354
        %v523 = vunpack.c.l.b16 %v355
        %v524 = vunpack.c.h.b16 %v355
        %v525 = vunpack.c.l.b16 %v356
        %v526 = vunpack.c.h.b16 %v356
        %v527 = vunpack.c.l.b16 %v357
        %v528 = vunpack.c.h.b16 %v357
        %v529 = vunpack.c.l.b16 %v358
        %v530 = vunpack.c.h.b16 %v358
        %v531 = vunpack.c.l.b16 %v359
        %v532 = vunpack.c.h.b16 %v359
        %v533 = vunpack.c.l.b16 %v360
        %v534 = vunpack.c.h.b16 %v360
        %v535 = vunpack.c.l.b16 %v361
        %v536 = vunpack.c.h.b16 %v361
        %v537 = vunpack.c.l.b16 %v362
        %v538 = vunpack.c.h.b16 %v362
        %v539 = vunpack.c.l.b16 %v363
        %v540 = vunpack.c.h.b16 %v363
        %v541 = vunpack.c.l.b16 %v364
        %v542 = vunpack.c.h.b16 %v364
        %v543 = vunpack.c.l.b16 %v365
        %v544 = vunpack.c.h.b16 %v365
        %v545 = vunpack.c.l.b16 %v366
        %v546 = vunpack.c.h.b16 %v366
        %v547 = vunpack.c.l.b16 %v367
        %v548 = vunpack.c.h.b16 %v367
        %v549 = vunpack.c.l.b16 %v368
        %v550 = vunpack.c.h.b16 %v368
        %v551 = vunpack.c.l.b16 %v369
        %v552 = vunpack.c.h.b16 %v369
        %v553 = vunpack.c.l.b16 %v370
        %v554 = vunpack.c.h.b16 %v370
        %v555 = vunpack.c.l.b16 %v371
        %v556 = vunpack.c.h.b16 %v371
        %v557 = vunpack.c.l.b16 %v372
        %v558 = vunpack.c.h.b16 %v372
        %v559 = vunpack.c.l.b16 %v373
        %v560 = vunpack.c.h.b16 %v373
        %v561 = vunpack.c.l.b16 %v374
        %v562 = vunpack.c.h.b16 %v374
        %v563 = vunpack.c.l.b16 %v375
        %v564 = vunpack.c.h.b16 %v375
        %v565 = vunpack.c.l.b16 %v376
        %v566 = vunpack.c.h.b16 %v376
        %v567 = vunpack.c.l.b16 %v377
        %v568 = vunpack.c.h.b16 %v377
        %v569 = vunpack.c.l.b16 %v378
        %v570 = vunpack.c.h.b16 %v378
        %v571 = vunpack.c.l.b16 %v379
        %v572 = vunpack.c.h.b16 %v379
        %v573 = vunpack.c.l.b16 %v380
        %v574 = vunpack.c.h.b16 %v380
        %v575 = vunpack.c.l.b16 %v381
        %v576 = vunpack.c.h.b16 %v381
        %v577 = vunpack.c.l.b16 %v382
        %v578 = vunpack.c.h.b16 %v382
        %v579 = vunpack.c.l.b16 %v383
        %v580 = vunpack.c.h.b16 %v383
        %v581 = vunpack.c.l.b16 %v384
        %v582 = vunpack.c.h.b16 %v384
        %v583 = vpack.c.b16 %v487, %v455
        %v584 = vpack.c.b16 %v488, %v456
        %v585 = vpack.c.b16 %v489, %v457
        %v586 = vpack.c.b16 %v490, %v458
        %v587 = vpack.c.b16 %v491, %v459
        %v588 = vpack.c.b16 %v492, %v460
        %v589 = vpack.c.b16 %v493, %v461
        %v590 = vpack.c.b16 %v494, %v462
        %v591 = vpack.c.b16 %v495, %v463
        %v592 = vpack.c.b16 %v496, %v464
        %v593 = vpack.c.b16 %v497, %v465
        %v594 = vpack.c.b16 %v498, %v466
        %v595 = vpack.c.b16 %v499, %v467
        %v596 = vpack.c.b16 %v500, %v468
        %v597 = vpack.c.b16 %v501, %v469
        %v598 = vpack.c.b16 %v502, %v470
        %v599 = vpack.c.b16 %v503, %v471
        %v600 = vpack.c.b16 %v504, %v472
        %v601 = vpack.c.b16 %v505, %v473
        %v602 = vpack.c.b16 %v506, %v474
        %v603 = vpack.c.b16 %v507, %v475
        %v604 = vpack.c.b16 %v508, %v476
        %v605 = vpack.c.b16 %v509, %v477
        %v606 = vpack.c.b16 %v510, %v478
        %v607 = vpack.c.b16 %v511, %v479
        %v608 = vpack.c.b16 %v512, %v480
        %v609 = vpack.c.b16 %v513, %v481
        %v610 = vpack.c.b16 %v514, %v482
        %v611 = vpack.c.b16 %v515, %v483
        %v612 = vpack.c.b16 %v516, %v484
        %v613 = vpack.c.b16 %v517, %v485
        %v614 = vpack.c.b16 %v518, %v486
        %v615 = vpack.c.b16 %v551, %v519
        %v616 = vpack.c.b16 %v552, %v520
        %v617 = vpack.c.b16 %v553, %v521
        %v618 = vpack.c.b16 %v554, %v522
        %v619 = vpack.c.b16 %v555, %v523
        %v620 = vpack.c.b16 %v556, %v524
        %v621 = vpack.c.b16 %v557, %v525
        %v622 = vpack.c.b16 %v558, %v526
        %v623 = vpack.c.b16 %v559, %v527
        %v624 = vpack.c.b16 %v560, %v528
        %v625 = vpack.c.b16 %v561, %v529
        %v626 = vpack.c.b16 %v562, %v530
        %v627 = vpack.c.b16 %v563, %v531
        %v628 = vpack.c.b16 %v564, %v532
        %v629 = vpack.c.b16 %v565, %v533
        %v630 = vpack.c.b16 %v566, %v534
        %v631 = vpack.c.b16 %v567, %v535
        %v632 = vpack.c.b16 %v568, %v536
        %v633 = vpack.c.b16 %v569, %v537
        %v634 = vpack.c.b16 %v570, %v538
        %v635 = vpack.c.b16 %v571, %v539
        %v636 = vpack.c.b16 %v572, %v540
        %v637 = vpack.c.b16 %v573, %v541
        %v638 = vpack.c.b16 %v574, %v542
        %v639 = vpack.c.b16 %v575, %v543
        %v640 = vpack.c.b16 %v576, %v544
        %v641 = vpack.c.b16 %v577, %v545
        %v642 = vpack.c.b16 %v578, %v546
        %v643 = vpack.c.b16 %v579, %v547
        %v644 = vpack.c.b16 %v580, %v548
        %v645 = vpack.c.b16 %v581, %v549
        %v646 = vpack.c.b16 %v582, %v550
        %vm711 = vcmask 261120
        %v713 = vsel %vm711, %v320, 0
        %715 = vmatpush.bf16.msra.mxu0 0
        %716 = vmatpush.bf16.msra.mxu0 0
        %717 = vmatpush.bf16.msra.mxu0 0
        %718 = vmatpush.bf16.msra.mxu0 0
        %719 = vmatpush.bf16.msra.mxu0 0
        %720 = vmatpush.bf16.msra.mxu0 0
        %721 = vmatpush.bf16.msra.mxu0 %v615
        %722 = vmatpush.bf16.msra.mxu0 %v583
        %723 = vmatmul.bf16.gmra.mxu0 %v713
        %v724 = vpop.f32.mrf.mxu0
        %v725 = vadd.f32 %v389, %v724
        %v726 = vpop.f32.mrf.mxu0
        %727 = vdwg.mxu0
        %728 = vmatpush.bf16.msra.mxu0 0
        %729 = vmatpush.bf16.msra.mxu0 0
        %730 = vmatpush.bf16.msra.mxu0 0
        %731 = vmatpush.bf16.msra.mxu0 0
        %732 = vmatpush.bf16.msra.mxu0 0
        %733 = vmatpush.bf16.msra.mxu0 0
        %734 = vmatpush.bf16.msra.mxu0 %v616
        %735 = vmatpush.bf16.msra.mxu0 %v584
        %736 = vmatmul.bf16.gmra.mxu0 %v713
        %v737 = vpop.f32.mrf.mxu0
        %v738 = vadd.f32 %v389, %v737
        %v739 = vpop.f32.mrf.mxu0
        %740 = vdwg.mxu0
        %741 = vmatpush.bf16.msra.mxu0 0
        %742 = vmatpush.bf16.msra.mxu0 0
        %743 = vmatpush.bf16.msra.mxu0 0
        %744 = vmatpush.bf16.msra.mxu0 0
        %745 = vmatpush.bf16.msra.mxu0 0
        %746 = vmatpush.bf16.msra.mxu0 0
        %747 = vmatpush.bf16.msra.mxu0 %v617
        %748 = vmatpush.bf16.msra.mxu0 %v585
        %749 = vmatmul.bf16.gmra.mxu0 %v713
        %v750 = vpop.f32.mrf.mxu0
        %v751 = vadd.f32 %v389, %v750
        %v752 = vpop.f32.mrf.mxu0
        %753 = vdwg.mxu0
        %754 = vmatpush.bf16.msra.mxu0 0
        %755 = vmatpush.bf16.msra.mxu0 0
        %756 = vmatpush.bf16.msra.mxu0 0
        %757 = vmatpush.bf16.msra.mxu0 0
        %758 = vmatpush.bf16.msra.mxu0 0
        %759 = vmatpush.bf16.msra.mxu0 0
        %760 = vmatpush.bf16.msra.mxu0 %v618
        %761 = vmatpush.bf16.msra.mxu0 %v586
        %762 = vmatmul.bf16.gmra.mxu0 %v713
        %v763 = vpop.f32.mrf.mxu0
        %v764 = vadd.f32 %v389, %v763
        %v765 = vpop.f32.mrf.mxu0
        %766 = vdwg.mxu0
        %767 = vmatpush.bf16.msra.mxu0 0
        %768 = vmatpush.bf16.msra.mxu0 0
        %769 = vmatpush.bf16.msra.mxu0 0
        %770 = vmatpush.bf16.msra.mxu0 0
        %771 = vmatpush.bf16.msra.mxu0 0
        %772 = vmatpush.bf16.msra.mxu0 0
        %773 = vmatpush.bf16.msra.mxu0 %v619
        %774 = vmatpush.bf16.msra.mxu0 %v587
        %775 = vmatmul.bf16.gmra.mxu0 %v713
        %v776 = vpop.f32.mrf.mxu0
        %v777 = vadd.f32 %v389, %v776
        %v778 = vpop.f32.mrf.mxu0
        %779 = vdwg.mxu0
        %780 = vmatpush.bf16.msra.mxu0 0
        %781 = vmatpush.bf16.msra.mxu0 0
        %782 = vmatpush.bf16.msra.mxu0 0
        %783 = vmatpush.bf16.msra.mxu0 0
        %784 = vmatpush.bf16.msra.mxu0 0
        %785 = vmatpush.bf16.msra.mxu0 0
        %786 = vmatpush.bf16.msra.mxu0 %v620
        %787 = vmatpush.bf16.msra.mxu0 %v588
        %788 = vmatmul.bf16.gmra.mxu0 %v713
        %v789 = vpop.f32.mrf.mxu0
        %v790 = vadd.f32 %v389, %v789
        %v791 = vpop.f32.mrf.mxu0
        %792 = vdwg.mxu0
        %793 = vmatpush.bf16.msra.mxu0 0
        %794 = vmatpush.bf16.msra.mxu0 0
        %795 = vmatpush.bf16.msra.mxu0 0
        %796 = vmatpush.bf16.msra.mxu0 0
        %797 = vmatpush.bf16.msra.mxu0 0
        %798 = vmatpush.bf16.msra.mxu0 0
        %799 = vmatpush.bf16.msra.mxu0 %v621
        %800 = vmatpush.bf16.msra.mxu0 %v589
        %801 = vmatmul.bf16.gmra.mxu0 %v713
        %v802 = vpop.f32.mrf.mxu0
        %v803 = vadd.f32 %v389, %v802
        %v804 = vpop.f32.mrf.mxu0
        %805 = vdwg.mxu0
        %806 = vmatpush.bf16.msra.mxu0 0
        %807 = vmatpush.bf16.msra.mxu0 0
        %808 = vmatpush.bf16.msra.mxu0 0
        %809 = vmatpush.bf16.msra.mxu0 0
        %810 = vmatpush.bf16.msra.mxu0 0
        %811 = vmatpush.bf16.msra.mxu0 0
        %812 = vmatpush.bf16.msra.mxu0 %v622
        %813 = vmatpush.bf16.msra.mxu0 %v590
        %814 = vmatmul.bf16.gmra.mxu0 %v713
        %v815 = vpop.f32.mrf.mxu0
        %v816 = vadd.f32 %v389, %v815
        %v817 = vpop.f32.mrf.mxu0
        %818 = vdwg.mxu0
        %819 = vmatpush.bf16.msra.mxu0 0
        %820 = vmatpush.bf16.msra.mxu0 0
        %821 = vmatpush.bf16.msra.mxu0 0
        %822 = vmatpush.bf16.msra.mxu0 0
        %823 = vmatpush.bf16.msra.mxu0 0
        %824 = vmatpush.bf16.msra.mxu0 0
        %825 = vmatpush.bf16.msra.mxu0 %v623
        %826 = vmatpush.bf16.msra.mxu0 %v591
        %827 = vmatmul.bf16.gmra.mxu0 %v713
        %v828 = vpop.f32.mrf.mxu0
        %v829 = vadd.f32 %v389, %v828
        %v830 = vpop.f32.mrf.mxu0
        %831 = vdwg.mxu0
        %832 = vmatpush.bf16.msra.mxu0 0
        %833 = vmatpush.bf16.msra.mxu0 0
        %834 = vmatpush.bf16.msra.mxu0 0
        %835 = vmatpush.bf16.msra.mxu0 0
        %836 = vmatpush.bf16.msra.mxu0 0
        %837 = vmatpush.bf16.msra.mxu0 0
        %838 = vmatpush.bf16.msra.mxu0 %v624
        %839 = vmatpush.bf16.msra.mxu0 %v592
        %840 = vmatmul.bf16.gmra.mxu0 %v713
        %v841 = vpop.f32.mrf.mxu0
        %v842 = vadd.f32 %v389, %v841
        %v843 = vpop.f32.mrf.mxu0
        %844 = vdwg.mxu0
        %845 = vmatpush.bf16.msra.mxu0 0
        %846 = vmatpush.bf16.msra.mxu0 0
        %847 = vmatpush.bf16.msra.mxu0 0
        %848 = vmatpush.bf16.msra.mxu0 0
        %849 = vmatpush.bf16.msra.mxu0 0
        %850 = vmatpush.bf16.msra.mxu0 0
        %851 = vmatpush.bf16.msra.mxu0 %v625
        %852 = vmatpush.bf16.msra.mxu0 %v593
        %853 = vmatmul.bf16.gmra.mxu0 %v713
        %v854 = vpop.f32.mrf.mxu0
        %v855 = vadd.f32 %v389, %v854
        %v856 = vpop.f32.mrf.mxu0
        %857 = vdwg.mxu0
        %858 = vmatpush.bf16.msra.mxu0 0
        %859 = vmatpush.bf16.msra.mxu0 0
        %860 = vmatpush.bf16.msra.mxu0 0
        %861 = vmatpush.bf16.msra.mxu0 0
        %862 = vmatpush.bf16.msra.mxu0 0
        %863 = vmatpush.bf16.msra.mxu0 0
        %864 = vmatpush.bf16.msra.mxu0 %v626
        %865 = vmatpush.bf16.msra.mxu0 %v594
        %866 = vmatmul.bf16.gmra.mxu0 %v713
        %v867 = vpop.f32.mrf.mxu0
        %v868 = vadd.f32 %v389, %v867
        %v869 = vpop.f32.mrf.mxu0
        %870 = vdwg.mxu0
        %871 = vmatpush.bf16.msra.mxu0 0
        %872 = vmatpush.bf16.msra.mxu0 0
        %873 = vmatpush.bf16.msra.mxu0 0
        %874 = vmatpush.bf16.msra.mxu0 0
        %875 = vmatpush.bf16.msra.mxu0 0
        %876 = vmatpush.bf16.msra.mxu0 0
        %877 = vmatpush.bf16.msra.mxu0 %v627
        %878 = vmatpush.bf16.msra.mxu0 %v595
        %879 = vmatmul.bf16.gmra.mxu0 %v713
        %v880 = vpop.f32.mrf.mxu0
        %v881 = vadd.f32 %v389, %v880
        %v882 = vpop.f32.mrf.mxu0
        %883 = vdwg.mxu0
        %884 = vmatpush.bf16.msra.mxu0 0
        %885 = vmatpush.bf16.msra.mxu0 0
        %886 = vmatpush.bf16.msra.mxu0 0
        %887 = vmatpush.bf16.msra.mxu0 0
        %888 = vmatpush.bf16.msra.mxu0 0
        %889 = vmatpush.bf16.msra.mxu0 0
        %890 = vmatpush.bf16.msra.mxu0 %v628
        %891 = vmatpush.bf16.msra.mxu0 %v596
        %892 = vmatmul.bf16.gmra.mxu0 %v713
        %v893 = vpop.f32.mrf.mxu0
        %v894 = vadd.f32 %v389, %v893
        %v895 = vpop.f32.mrf.mxu0
        %896 = vdwg.mxu0
        %897 = vmatpush.bf16.msra.mxu0 0
        %898 = vmatpush.bf16.msra.mxu0 0
        %899 = vmatpush.bf16.msra.mxu0 0
        %900 = vmatpush.bf16.msra.mxu0 0
        %901 = vmatpush.bf16.msra.mxu0 0
        %902 = vmatpush.bf16.msra.mxu0 0
        %903 = vmatpush.bf16.msra.mxu0 %v629
        %904 = vmatpush.bf16.msra.mxu0 %v597
        %905 = vmatmul.bf16.gmra.mxu0 %v713
        %v906 = vpop.f32.mrf.mxu0
        %v907 = vadd.f32 %v389, %v906
        %v908 = vpop.f32.mrf.mxu0
        %909 = vdwg.mxu0
        %910 = vmatpush.bf16.msra.mxu0 0
        %911 = vmatpush.bf16.msra.mxu0 0
        %912 = vmatpush.bf16.msra.mxu0 0
        %913 = vmatpush.bf16.msra.mxu0 0
        %914 = vmatpush.bf16.msra.mxu0 0
        %915 = vmatpush.bf16.msra.mxu0 0
        %916 = vmatpush.bf16.msra.mxu0 %v630
        %917 = vmatpush.bf16.msra.mxu0 %v598
        %918 = vmatmul.bf16.gmra.mxu0 %v713
        %v919 = vpop.f32.mrf.mxu0
        %v920 = vadd.f32 %v389, %v919
        %v921 = vpop.f32.mrf.mxu0
        %922 = vdwg.mxu0
        %923 = vmatpush.bf16.msra.mxu0 0
        %924 = vmatpush.bf16.msra.mxu0 0
        %925 = vmatpush.bf16.msra.mxu0 0
        %926 = vmatpush.bf16.msra.mxu0 0
        %927 = vmatpush.bf16.msra.mxu0 0
        %928 = vmatpush.bf16.msra.mxu0 0
        %929 = vmatpush.bf16.msra.mxu0 %v631
        %930 = vmatpush.bf16.msra.mxu0 %v599
        %931 = vmatmul.bf16.gmra.mxu0 %v713
        %v932 = vpop.f32.mrf.mxu0
        %v933 = vadd.f32 %v389, %v932
        %v934 = vpop.f32.mrf.mxu0
        %935 = vdwg.mxu0
        %936 = vmatpush.bf16.msra.mxu0 0
        %937 = vmatpush.bf16.msra.mxu0 0
        %938 = vmatpush.bf16.msra.mxu0 0
        %939 = vmatpush.bf16.msra.mxu0 0
        %940 = vmatpush.bf16.msra.mxu0 0
        %941 = vmatpush.bf16.msra.mxu0 0
        %942 = vmatpush.bf16.msra.mxu0 %v632
        %943 = vmatpush.bf16.msra.mxu0 %v600
        %944 = vmatmul.bf16.gmra.mxu0 %v713
        %v945 = vpop.f32.mrf.mxu0
        %v946 = vadd.f32 %v389, %v945
        %v947 = vpop.f32.mrf.mxu0
        %948 = vdwg.mxu0
        %949 = vmatpush.bf16.msra.mxu0 0
        %950 = vmatpush.bf16.msra.mxu0 0
        %951 = vmatpush.bf16.msra.mxu0 0
        %952 = vmatpush.bf16.msra.mxu0 0
        %953 = vmatpush.bf16.msra.mxu0 0
        %954 = vmatpush.bf16.msra.mxu0 0
        %955 = vmatpush.bf16.msra.mxu0 %v633
        %956 = vmatpush.bf16.msra.mxu0 %v601
        %957 = vmatmul.bf16.gmra.mxu0 %v713
        %v958 = vpop.f32.mrf.mxu0
        %v959 = vadd.f32 %v389, %v958
        %v960 = vpop.f32.mrf.mxu0
        %961 = vdwg.mxu0
        %962 = vmatpush.bf16.msra.mxu0 0
        %963 = vmatpush.bf16.msra.mxu0 0
        %964 = vmatpush.bf16.msra.mxu0 0
        %965 = vmatpush.bf16.msra.mxu0 0
        %966 = vmatpush.bf16.msra.mxu0 0
        %967 = vmatpush.bf16.msra.mxu0 0
        %968 = vmatpush.bf16.msra.mxu0 %v634
        %969 = vmatpush.bf16.msra.mxu0 %v602
        %970 = vmatmul.bf16.gmra.mxu0 %v713
        %v971 = vpop.f32.mrf.mxu0
        %v972 = vadd.f32 %v389, %v971
        %v973 = vpop.f32.mrf.mxu0
        %974 = vdwg.mxu0
        %975 = vmatpush.bf16.msra.mxu0 0
        %976 = vmatpush.bf16.msra.mxu0 0
        %977 = vmatpush.bf16.msra.mxu0 0
        %978 = vmatpush.bf16.msra.mxu0 0
        %979 = vmatpush.bf16.msra.mxu0 0
        %980 = vmatpush.bf16.msra.mxu0 0
        %981 = vmatpush.bf16.msra.mxu0 %v635
        %982 = vmatpush.bf16.msra.mxu0 %v603
        %983 = vmatmul.bf16.gmra.mxu0 %v713
        %v984 = vpop.f32.mrf.mxu0
        %v985 = vadd.f32 %v389, %v984
        %v986 = vpop.f32.mrf.mxu0
        %987 = vdwg.mxu0
        %988 = vmatpush.bf16.msra.mxu0 0
        %989 = vmatpush.bf16.msra.mxu0 0
        %990 = vmatpush.bf16.msra.mxu0 0
        %991 = vmatpush.bf16.msra.mxu0 0
        %992 = vmatpush.bf16.msra.mxu0 0
        %993 = vmatpush.bf16.msra.mxu0 0
        %994 = vmatpush.bf16.msra.mxu0 %v636
        %995 = vmatpush.bf16.msra.mxu0 %v604
        %996 = vmatmul.bf16.gmra.mxu0 %v713
        %v997 = vpop.f32.mrf.mxu0
        %v998 = vadd.f32 %v389, %v997
        %v999 = vpop.f32.mrf.mxu0
        %1000 = vdwg.mxu0
        %1001 = vmatpush.bf16.msra.mxu0 0
        %1002 = vmatpush.bf16.msra.mxu0 0
        %1003 = vmatpush.bf16.msra.mxu0 0
        %1004 = vmatpush.bf16.msra.mxu0 0
        %1005 = vmatpush.bf16.msra.mxu0 0
        %1006 = vmatpush.bf16.msra.mxu0 0
        %1007 = vmatpush.bf16.msra.mxu0 %v637
        %1008 = vmatpush.bf16.msra.mxu0 %v605
        %1009 = vmatmul.bf16.gmra.mxu0 %v713
        %v1010 = vpop.f32.mrf.mxu0
        %v1011 = vadd.f32 %v389, %v1010
        %v1012 = vpop.f32.mrf.mxu0
        %1013 = vdwg.mxu0
        %1014 = vmatpush.bf16.msra.mxu0 0
        %1015 = vmatpush.bf16.msra.mxu0 0
        %1016 = vmatpush.bf16.msra.mxu0 0
        %1017 = vmatpush.bf16.msra.mxu0 0
        %1018 = vmatpush.bf16.msra.mxu0 0
        %1019 = vmatpush.bf16.msra.mxu0 0
        %1020 = vmatpush.bf16.msra.mxu0 %v638
        %1021 = vmatpush.bf16.msra.mxu0 %v606
        %1022 = vmatmul.bf16.gmra.mxu0 %v713
        %v1023 = vpop.f32.mrf.mxu0
        %v1024 = vadd.f32 %v389, %v1023
        %v1025 = vpop.f32.mrf.mxu0
        %1026 = vdwg.mxu0
        %1027 = vmatpush.bf16.msra.mxu0 0
        %1028 = vmatpush.bf16.msra.mxu0 0
        %1029 = vmatpush.bf16.msra.mxu0 0
        %1030 = vmatpush.bf16.msra.mxu0 0
        %1031 = vmatpush.bf16.msra.mxu0 0
        %1032 = vmatpush.bf16.msra.mxu0 0
        %1033 = vmatpush.bf16.msra.mxu0 %v639
        %1034 = vmatpush.bf16.msra.mxu0 %v607
        %1035 = vmatmul.bf16.gmra.mxu0 %v713
        %v1036 = vpop.f32.mrf.mxu0
        %v1037 = vadd.f32 %v389, %v1036
        %v1038 = vpop.f32.mrf.mxu0
        %1039 = vdwg.mxu0
        %1040 = vmatpush.bf16.msra.mxu0 0
        %1041 = vmatpush.bf16.msra.mxu0 0
        %1042 = vmatpush.bf16.msra.mxu0 0
        %1043 = vmatpush.bf16.msra.mxu0 0
        %1044 = vmatpush.bf16.msra.mxu0 0
        %1045 = vmatpush.bf16.msra.mxu0 0
        %1046 = vmatpush.bf16.msra.mxu0 %v640
        %1047 = vmatpush.bf16.msra.mxu0 %v608
        %1048 = vmatmul.bf16.gmra.mxu0 %v713
        %v1049 = vpop.f32.mrf.mxu0
        %v1050 = vadd.f32 %v389, %v1049
        %v1051 = vpop.f32.mrf.mxu0
        %1052 = vdwg.mxu0
        %1053 = vmatpush.bf16.msra.mxu0 0
        %1054 = vmatpush.bf16.msra.mxu0 0
        %1055 = vmatpush.bf16.msra.mxu0 0
        %1056 = vmatpush.bf16.msra.mxu0 0
        %1057 = vmatpush.bf16.msra.mxu0 0
        %1058 = vmatpush.bf16.msra.mxu0 0
        %1059 = vmatpush.bf16.msra.mxu0 %v641
        %1060 = vmatpush.bf16.msra.mxu0 %v609
        %1061 = vmatmul.bf16.gmra.mxu0 %v713
        %v1062 = vpop.f32.mrf.mxu0
        %v1063 = vadd.f32 %v389, %v1062
        %v1064 = vpop.f32.mrf.mxu0
        %1065 = vdwg.mxu0
        %1066 = vmatpush.bf16.msra.mxu0 0
        %1067 = vmatpush.bf16.msra.mxu0 0
        %1068 = vmatpush.bf16.msra.mxu0 0
        %1069 = vmatpush.bf16.msra.mxu0 0
        %1070 = vmatpush.bf16.msra.mxu0 0
        %1071 = vmatpush.bf16.msra.mxu0 0
        %1072 = vmatpush.bf16.msra.mxu0 %v642
        %1073 = vmatpush.bf16.msra.mxu0 %v610
        %1074 = vmatmul.bf16.gmra.mxu0 %v713
        %v1075 = vpop.f32.mrf.mxu0
        %v1076 = vadd.f32 %v389, %v1075
        %v1077 = vpop.f32.mrf.mxu0
        %1078 = vdwg.mxu0
        %1079 = vmatpush.bf16.msra.mxu0 0
        %1080 = vmatpush.bf16.msra.mxu0 0
        %1081 = vmatpush.bf16.msra.mxu0 0
        %1082 = vmatpush.bf16.msra.mxu0 0
        %1083 = vmatpush.bf16.msra.mxu0 0
        %1084 = vmatpush.bf16.msra.mxu0 0
        %1085 = vmatpush.bf16.msra.mxu0 %v643
        %1086 = vmatpush.bf16.msra.mxu0 %v611
        %1087 = vmatmul.bf16.gmra.mxu0 %v713
        %v1088 = vpop.f32.mrf.mxu0
        %v1089 = vadd.f32 %v389, %v1088
        %v1090 = vpop.f32.mrf.mxu0
        %1091 = vdwg.mxu0
        %1092 = vmatpush.bf16.msra.mxu0 0
        %1093 = vmatpush.bf16.msra.mxu0 0
        %1094 = vmatpush.bf16.msra.mxu0 0
        %1095 = vmatpush.bf16.msra.mxu0 0
        %1096 = vmatpush.bf16.msra.mxu0 0
        %1097 = vmatpush.bf16.msra.mxu0 0
        %1098 = vmatpush.bf16.msra.mxu0 %v644
        %1099 = vmatpush.bf16.msra.mxu0 %v612
        %1100 = vmatmul.bf16.gmra.mxu0 %v713
        %v1101 = vpop.f32.mrf.mxu0
        %v1102 = vadd.f32 %v389, %v1101
        %v1103 = vpop.f32.mrf.mxu0
        %1104 = vdwg.mxu0
        %1105 = vmatpush.bf16.msra.mxu0 0
        %1106 = vmatpush.bf16.msra.mxu0 0
        %1107 = vmatpush.bf16.msra.mxu0 0
        %1108 = vmatpush.bf16.msra.mxu0 0
        %1109 = vmatpush.bf16.msra.mxu0 0
        %1110 = vmatpush.bf16.msra.mxu0 0
        %1111 = vmatpush.bf16.msra.mxu0 %v645
        %1112 = vmatpush.bf16.msra.mxu0 %v613
        %1113 = vmatmul.bf16.gmra.mxu0 %v713
        %v1114 = vpop.f32.mrf.mxu0
        %v1115 = vadd.f32 %v389, %v1114
        %v1116 = vpop.f32.mrf.mxu0
        %1117 = vdwg.mxu0
        %1118 = vmatpush.bf16.msra.mxu0 0
        %1119 = vmatpush.bf16.msra.mxu0 0
        %1120 = vmatpush.bf16.msra.mxu0 0
        %1121 = vmatpush.bf16.msra.mxu0 0
        %1122 = vmatpush.bf16.msra.mxu0 0
        %1123 = vmatpush.bf16.msra.mxu0 0
        %1124 = vmatpush.bf16.msra.mxu0 %v646
        %1125 = vmatpush.bf16.msra.mxu0 %v614
        %1126 = vmatmul.bf16.gmra.mxu0 %v713
        %v1127 = vpop.f32.mrf.mxu0
        %v1128 = vadd.f32 %v389, %v1127
        %v1129 = vpop.f32.mrf.mxu0
        %1130 = vdwg.mxu0
        %v1131 = vsub.f32 0.0, %v725
        %v1132 = vsub.f32 0.0, %v738
        %v1133 = vsub.f32 0.0, %v751
        %v1134 = vsub.f32 0.0, %v764
        %v1135 = vsub.f32 0.0, %v777
        %v1136 = vsub.f32 0.0, %v790
        %v1137 = vsub.f32 0.0, %v803
        %v1138 = vsub.f32 0.0, %v816
        %v1139 = vsub.f32 0.0, %v829
        %v1140 = vsub.f32 0.0, %v842
        %v1141 = vsub.f32 0.0, %v855
        %v1142 = vsub.f32 0.0, %v868
        %v1143 = vsub.f32 0.0, %v881
        %v1144 = vsub.f32 0.0, %v894
        %v1145 = vsub.f32 0.0, %v907
        %v1146 = vsub.f32 0.0, %v920
        %v1147 = vsub.f32 0.0, %v933
        %v1148 = vsub.f32 0.0, %v946
        %v1149 = vsub.f32 0.0, %v959
        %v1150 = vsub.f32 0.0, %v972
        %v1151 = vsub.f32 0.0, %v985
        %v1152 = vsub.f32 0.0, %v998
        %v1153 = vsub.f32 0.0, %v1011
        %v1154 = vsub.f32 0.0, %v1024
        %v1155 = vsub.f32 0.0, %v1037
        %v1156 = vsub.f32 0.0, %v1050
        %v1157 = vsub.f32 0.0, %v1063
        %v1158 = vsub.f32 0.0, %v1076
        %v1159 = vsub.f32 0.0, %v1089
        %v1160 = vsub.f32 0.0, %v1102
        %v1161 = vsub.f32 0.0, %v1115
        %v1162 = vsub.f32 0.0, %v1128
        %v1163 = vmul.f32 %v1131, 1.442695
        %v1164 = vpow.pop %v1163
        %v1165 = vmul.f32 %v1132, 1.442695
        %v1166 = vpow.pop %v1165
        %v1167 = vmul.f32 %v1133, 1.442695
        %v1168 = vpow.pop %v1167
        %v1169 = vmul.f32 %v1134, 1.442695
        %v1170 = vpow.pop %v1169
        %v1171 = vmul.f32 %v1135, 1.442695
        %v1172 = vpow.pop %v1171
        %v1173 = vmul.f32 %v1136, 1.442695
        %v1174 = vpow.pop %v1173
        %v1175 = vmul.f32 %v1137, 1.442695
        %v1176 = vpow.pop %v1175
        %v1177 = vmul.f32 %v1138, 1.442695
        %v1178 = vpow.pop %v1177
        %v1179 = vmul.f32 %v1139, 1.442695
        %v1180 = vpow.pop %v1179
        %v1181 = vmul.f32 %v1140, 1.442695
        %v1182 = vpow.pop %v1181
        %v1183 = vmul.f32 %v1141, 1.442695
        %v1184 = vpow.pop %v1183
        %v1185 = vmul.f32 %v1142, 1.442695
        %v1186 = vpow.pop %v1185
        %v1187 = vmul.f32 %v1143, 1.442695
        %v1188 = vpow.pop %v1187
        %v1189 = vmul.f32 %v1144, 1.442695
        %v1190 = vpow.pop %v1189
        %v1191 = vmul.f32 %v1145, 1.442695
        %v1192 = vpow.pop %v1191
        %v1193 = vmul.f32 %v1146, 1.442695
        %v1194 = vpow.pop %v1193
        %v1195 = vmul.f32 %v1147, 1.442695
        %v1196 = vpow.pop %v1195
        %v1197 = vmul.f32 %v1148, 1.442695
        %v1198 = vpow.pop %v1197
        %v1199 = vmul.f32 %v1149, 1.442695
        %v1200 = vpow.pop %v1199
        %v1201 = vmul.f32 %v1150, 1.442695
        %v1202 = vpow.pop %v1201
        %v1203 = vmul.f32 %v1151, 1.442695
        %v1204 = vpow.pop %v1203
        %v1205 = vmul.f32 %v1152, 1.442695
        %v1206 = vpow.pop %v1205
        %v1207 = vmul.f32 %v1153, 1.442695
        %v1208 = vpow.pop %v1207
        %v1209 = vmul.f32 %v1154, 1.442695
        %v1210 = vpow.pop %v1209
        %v1211 = vmul.f32 %v1155, 1.442695
        %v1212 = vpow.pop %v1211
        %v1213 = vmul.f32 %v1156, 1.442695
        %v1214 = vpow.pop %v1213
        %v1215 = vmul.f32 %v1157, 1.442695
        %v1216 = vpow.pop %v1215
        %v1217 = vmul.f32 %v1158, 1.442695
        %v1218 = vpow.pop %v1217
        %v1219 = vmul.f32 %v1159, 1.442695
        %v1220 = vpow.pop %v1219
        %v1221 = vmul.f32 %v1160, 1.442695
        %v1222 = vpow.pop %v1221
        %v1223 = vmul.f32 %v1161, 1.442695
        %v1224 = vpow.pop %v1223
        %v1225 = vmul.f32 %v1162, 1.442695
        %v1226 = vpow.pop %v1225
        %v1227 = vadd.f32 %v1164, 1.0
        %v1228 = vadd.f32 %v1166, 1.0
        %v1229 = vadd.f32 %v1168, 1.0
        %v1230 = vadd.f32 %v1170, 1.0
        %v1231 = vadd.f32 %v1172, 1.0
        %v1232 = vadd.f32 %v1174, 1.0
        %v1233 = vadd.f32 %v1176, 1.0
        %v1234 = vadd.f32 %v1178, 1.0
        %v1235 = vadd.f32 %v1180, 1.0
        %v1236 = vadd.f32 %v1182, 1.0
        %v1237 = vadd.f32 %v1184, 1.0
        %v1238 = vadd.f32 %v1186, 1.0
        %v1239 = vadd.f32 %v1188, 1.0
        %v1240 = vadd.f32 %v1190, 1.0
        %v1241 = vadd.f32 %v1192, 1.0
        %v1242 = vadd.f32 %v1194, 1.0
        %v1243 = vadd.f32 %v1196, 1.0
        %v1244 = vadd.f32 %v1198, 1.0
        %v1245 = vadd.f32 %v1200, 1.0
        %v1246 = vadd.f32 %v1202, 1.0
        %v1247 = vadd.f32 %v1204, 1.0
        %v1248 = vadd.f32 %v1206, 1.0
        %v1249 = vadd.f32 %v1208, 1.0
        %v1250 = vadd.f32 %v1210, 1.0
        %v1251 = vadd.f32 %v1212, 1.0
        %v1252 = vadd.f32 %v1214, 1.0
        %v1253 = vadd.f32 %v1216, 1.0
        %v1254 = vadd.f32 %v1218, 1.0
        %v1255 = vadd.f32 %v1220, 1.0
        %v1256 = vadd.f32 %v1222, 1.0
        %v1257 = vadd.f32 %v1224, 1.0
        %v1258 = vadd.f32 %v1226, 1.0
        %v1259 = vrcp.pop %v1227
        %v1260 = vmul.f32 %v1227, %v1259
        %v1261 = vsub.f32 1.0, %v1260
        %v1262 = vmul.f32 %v1259, %v1261
        %v1263 = vadd.f32 %v1259, %v1262
        %vm1264 = vweird.f32 %v1227
        %vm1265 = vweird.f32 %v1259
        %vm1266 = vmor %vm1264, %vm1265
        %v1267 = vsel %vm1266, %v1259, %v1263
        %v1268 = vand.u32 2147483647, %v1227
        %vm1269 = vcmp.eq.f32.partialorder %v1268, 8.507059e+37
        %v1270 = vand.u32 %v1227, 2147483648
        %v1271 = vor.u32 1.1754944e-38, %v1270
        %v1272 = vsel %vm1269, %v1271, %v1267
        %v1273 = vmul.f32 1.0, %v1272
        %v1274 = vrcp.pop %v1228
        %v1275 = vmul.f32 %v1228, %v1274
        %v1276 = vsub.f32 1.0, %v1275
        %v1277 = vmul.f32 %v1274, %v1276
        %v1278 = vadd.f32 %v1274, %v1277
        %vm1279 = vweird.f32 %v1228
        %vm1280 = vweird.f32 %v1274
        %vm1281 = vmor %vm1279, %vm1280
        %v1282 = vsel %vm1281, %v1274, %v1278
        %v1283 = vand.u32 2147483647, %v1228
        %vm1284 = vcmp.eq.f32.partialorder %v1283, 8.507059e+37
        %v1285 = vand.u32 %v1228, 2147483648
        %v1286 = vor.u32 1.1754944e-38, %v1285
        %v1287 = vsel %vm1284, %v1286, %v1282
        %v1288 = vmul.f32 1.0, %v1287
        %v1289 = vrcp.pop %v1229
        %v1290 = vmul.f32 %v1229, %v1289
        %v1291 = vsub.f32 1.0, %v1290
        %v1292 = vmul.f32 %v1289, %v1291
        %v1293 = vadd.f32 %v1289, %v1292
        %vm1294 = vweird.f32 %v1229
        %vm1295 = vweird.f32 %v1289
        %vm1296 = vmor %vm1294, %vm1295
        %v1297 = vsel %vm1296, %v1289, %v1293
        %v1298 = vand.u32 2147483647, %v1229
        %vm1299 = vcmp.eq.f32.partialorder %v1298, 8.507059e+37
        %v1300 = vand.u32 %v1229, 2147483648
        %v1301 = vor.u32 1.1754944e-38, %v1300
        %v1302 = vsel %vm1299, %v1301, %v1297
        %v1303 = vmul.f32 1.0, %v1302
        %v1304 = vrcp.pop %v1230
        %v1305 = vmul.f32 %v1230, %v1304
        %v1306 = vsub.f32 1.0, %v1305
        %v1307 = vmul.f32 %v1304, %v1306
        %v1308 = vadd.f32 %v1304, %v1307
        %vm1309 = vweird.f32 %v1230
        %vm1310 = vweird.f32 %v1304
        %vm1311 = vmor %vm1309, %vm1310
        %v1312 = vsel %vm1311, %v1304, %v1308
        %v1313 = vand.u32 2147483647, %v1230
        %vm1314 = vcmp.eq.f32.partialorder %v1313, 8.507059e+37
        %v1315 = vand.u32 %v1230, 2147483648
        %v1316 = vor.u32 1.1754944e-38, %v1315
        %v1317 = vsel %vm1314, %v1316, %v1312
        %v1318 = vmul.f32 1.0, %v1317
        %v1319 = vrcp.pop %v1231
        %v1320 = vmul.f32 %v1231, %v1319
        %v1321 = vsub.f32 1.0, %v1320
        %v1322 = vmul.f32 %v1319, %v1321
        %v1323 = vadd.f32 %v1319, %v1322
        %vm1324 = vweird.f32 %v1231
        %vm1325 = vweird.f32 %v1319
        %vm1326 = vmor %vm1324, %vm1325
        %v1327 = vsel %vm1326, %v1319, %v1323
        %v1328 = vand.u32 2147483647, %v1231
        %vm1329 = vcmp.eq.f32.partialorder %v1328, 8.507059e+37
        %v1330 = vand.u32 %v1231, 2147483648
        %v1331 = vor.u32 1.1754944e-38, %v1330
        %v1332 = vsel %vm1329, %v1331, %v1327
        %v1333 = vmul.f32 1.0, %v1332
        %v1334 = vrcp.pop %v1232
        %v1335 = vmul.f32 %v1232, %v1334
        %v1336 = vsub.f32 1.0, %v1335
        %v1337 = vmul.f32 %v1334, %v1336
        %v1338 = vadd.f32 %v1334, %v1337
        %vm1339 = vweird.f32 %v1232
        %vm1340 = vweird.f32 %v1334
        %vm1341 = vmor %vm1339, %vm1340
        %v1342 = vsel %vm1341, %v1334, %v1338
        %v1343 = vand.u32 2147483647, %v1232
        %vm1344 = vcmp.eq.f32.partialorder %v1343, 8.507059e+37
        %v1345 = vand.u32 %v1232, 2147483648
        %v1346 = vor.u32 1.1754944e-38, %v1345
        %v1347 = vsel %vm1344, %v1346, %v1342
        %v1348 = vmul.f32 1.0, %v1347
        %v1349 = vrcp.pop %v1233
        %v1350 = vmul.f32 %v1233, %v1349
        %v1351 = vsub.f32 1.0, %v1350
        %v1352 = vmul.f32 %v1349, %v1351
        %v1353 = vadd.f32 %v1349, %v1352
        %vm1354 = vweird.f32 %v1233
        %vm1355 = vweird.f32 %v1349
        %vm1356 = vmor %vm1354, %vm1355
        %v1357 = vsel %vm1356, %v1349, %v1353
        %v1358 = vand.u32 2147483647, %v1233
        %vm1359 = vcmp.eq.f32.partialorder %v1358, 8.507059e+37
        %v1360 = vand.u32 %v1233, 2147483648
        %v1361 = vor.u32 1.1754944e-38, %v1360
        %v1362 = vsel %vm1359, %v1361, %v1357
        %v1363 = vmul.f32 1.0, %v1362
        %v1364 = vrcp.pop %v1234
        %v1365 = vmul.f32 %v1234, %v1364
        %v1366 = vsub.f32 1.0, %v1365
        %v1367 = vmul.f32 %v1364, %v1366
        %v1368 = vadd.f32 %v1364, %v1367
        %vm1369 = vweird.f32 %v1234
        %vm1370 = vweird.f32 %v1364
        %vm1371 = vmor %vm1369, %vm1370
        %v1372 = vsel %vm1371, %v1364, %v1368
        %v1373 = vand.u32 2147483647, %v1234
        %vm1374 = vcmp.eq.f32.partialorder %v1373, 8.507059e+37
        %v1375 = vand.u32 %v1234, 2147483648
        %v1376 = vor.u32 1.1754944e-38, %v1375
        %v1377 = vsel %vm1374, %v1376, %v1372
        %v1378 = vmul.f32 1.0, %v1377
        %v1379 = vrcp.pop %v1235
        %v1380 = vmul.f32 %v1235, %v1379
        %v1381 = vsub.f32 1.0, %v1380
        %v1382 = vmul.f32 %v1379, %v1381
        %v1383 = vadd.f32 %v1379, %v1382
        %vm1384 = vweird.f32 %v1235
        %vm1385 = vweird.f32 %v1379
        %vm1386 = vmor %vm1384, %vm1385
        %v1387 = vsel %vm1386, %v1379, %v1383
        %v1388 = vand.u32 2147483647, %v1235
        %vm1389 = vcmp.eq.f32.partialorder %v1388, 8.507059e+37
        %v1390 = vand.u32 %v1235, 2147483648
        %v1391 = vor.u32 1.1754944e-38, %v1390
        %v1392 = vsel %vm1389, %v1391, %v1387
        %v1393 = vmul.f32 1.0, %v1392
        %v1394 = vrcp.pop %v1236
        %v1395 = vmul.f32 %v1236, %v1394
        %v1396 = vsub.f32 1.0, %v1395
        %v1397 = vmul.f32 %v1394, %v1396
        %v1398 = vadd.f32 %v1394, %v1397
        %vm1399 = vweird.f32 %v1236
        %vm1400 = vweird.f32 %v1394
        %vm1401 = vmor %vm1399, %vm1400
        %v1402 = vsel %vm1401, %v1394, %v1398
        %v1403 = vand.u32 2147483647, %v1236
        %vm1404 = vcmp.eq.f32.partialorder %v1403, 8.507059e+37
        %v1405 = vand.u32 %v1236, 2147483648
        %v1406 = vor.u32 1.1754944e-38, %v1405
        %v1407 = vsel %vm1404, %v1406, %v1402
        %v1408 = vmul.f32 1.0, %v1407
        %v1409 = vrcp.pop %v1237
        %v1410 = vmul.f32 %v1237, %v1409
        %v1411 = vsub.f32 1.0, %v1410
        %v1412 = vmul.f32 %v1409, %v1411
        %v1413 = vadd.f32 %v1409, %v1412
        %vm1414 = vweird.f32 %v1237
        %vm1415 = vweird.f32 %v1409
        %vm1416 = vmor %vm1414, %vm1415
        %v1417 = vsel %vm1416, %v1409, %v1413
        %v1418 = vand.u32 2147483647, %v1237
        %vm1419 = vcmp.eq.f32.partialorder %v1418, 8.507059e+37
        %v1420 = vand.u32 %v1237, 2147483648
        %v1421 = vor.u32 1.1754944e-38, %v1420
        %v1422 = vsel %vm1419, %v1421, %v1417
        %v1423 = vmul.f32 1.0, %v1422
        %v1424 = vrcp.pop %v1238
        %v1425 = vmul.f32 %v1238, %v1424
        %v1426 = vsub.f32 1.0, %v1425
        %v1427 = vmul.f32 %v1424, %v1426
        %v1428 = vadd.f32 %v1424, %v1427
        %vm1429 = vweird.f32 %v1238
        %vm1430 = vweird.f32 %v1424
        %vm1431 = vmor %vm1429, %vm1430
        %v1432 = vsel %vm1431, %v1424, %v1428
        %v1433 = vand.u32 2147483647, %v1238
        %vm1434 = vcmp.eq.f32.partialorder %v1433, 8.507059e+37
        %v1435 = vand.u32 %v1238, 2147483648
        %v1436 = vor.u32 1.1754944e-38, %v1435
        %v1437 = vsel %vm1434, %v1436, %v1432
        %v1438 = vmul.f32 1.0, %v1437
        %v1439 = vrcp.pop %v1239
        %v1440 = vmul.f32 %v1239, %v1439
        %v1441 = vsub.f32 1.0, %v1440
        %v1442 = vmul.f32 %v1439, %v1441
        %v1443 = vadd.f32 %v1439, %v1442
        %vm1444 = vweird.f32 %v1239
        %vm1445 = vweird.f32 %v1439
        %vm1446 = vmor %vm1444, %vm1445
        %v1447 = vsel %vm1446, %v1439, %v1443
        %v1448 = vand.u32 2147483647, %v1239
        %vm1449 = vcmp.eq.f32.partialorder %v1448, 8.507059e+37
        %v1450 = vand.u32 %v1239, 2147483648
        %v1451 = vor.u32 1.1754944e-38, %v1450
        %v1452 = vsel %vm1449, %v1451, %v1447
        %v1453 = vmul.f32 1.0, %v1452
        %v1454 = vrcp.pop %v1240
        %v1455 = vmul.f32 %v1240, %v1454
        %v1456 = vsub.f32 1.0, %v1455
        %v1457 = vmul.f32 %v1454, %v1456
        %v1458 = vadd.f32 %v1454, %v1457
        %vm1459 = vweird.f32 %v1240
        %vm1460 = vweird.f32 %v1454
        %vm1461 = vmor %vm1459, %vm1460
        %v1462 = vsel %vm1461, %v1454, %v1458
        %v1463 = vand.u32 2147483647, %v1240
        %vm1464 = vcmp.eq.f32.partialorder %v1463, 8.507059e+37
        %v1465 = vand.u32 %v1240, 2147483648
        %v1466 = vor.u32 1.1754944e-38, %v1465
        %v1467 = vsel %vm1464, %v1466, %v1462
        %v1468 = vmul.f32 1.0, %v1467
        %v1469 = vrcp.pop %v1241
        %v1470 = vmul.f32 %v1241, %v1469
        %v1471 = vsub.f32 1.0, %v1470
        %v1472 = vmul.f32 %v1469, %v1471
        %v1473 = vadd.f32 %v1469, %v1472
        %vm1474 = vweird.f32 %v1241
        %vm1475 = vweird.f32 %v1469
        %vm1476 = vmor %vm1474, %vm1475
        %v1477 = vsel %vm1476, %v1469, %v1473
        %v1478 = vand.u32 2147483647, %v1241
        %vm1479 = vcmp.eq.f32.partialorder %v1478, 8.507059e+37
        %v1480 = vand.u32 %v1241, 2147483648
        %v1481 = vor.u32 1.1754944e-38, %v1480
        %v1482 = vsel %vm1479, %v1481, %v1477
        %v1483 = vmul.f32 1.0, %v1482
        %v1484 = vrcp.pop %v1242
        %v1485 = vmul.f32 %v1242, %v1484
        %v1486 = vsub.f32 1.0, %v1485
        %v1487 = vmul.f32 %v1484, %v1486
        %v1488 = vadd.f32 %v1484, %v1487
        %vm1489 = vweird.f32 %v1242
        %vm1490 = vweird.f32 %v1484
        %vm1491 = vmor %vm1489, %vm1490
        %v1492 = vsel %vm1491, %v1484, %v1488
        %v1493 = vand.u32 2147483647, %v1242
        %vm1494 = vcmp.eq.f32.partialorder %v1493, 8.507059e+37
        %v1495 = vand.u32 %v1242, 2147483648
        %v1496 = vor.u32 1.1754944e-38, %v1495
        %v1497 = vsel %vm1494, %v1496, %v1492
        %v1498 = vmul.f32 1.0, %v1497
        %v1499 = vrcp.pop %v1243
        %v1500 = vmul.f32 %v1243, %v1499
        %v1501 = vsub.f32 1.0, %v1500
        %v1502 = vmul.f32 %v1499, %v1501
        %v1503 = vadd.f32 %v1499, %v1502
        %vm1504 = vweird.f32 %v1243
        %vm1505 = vweird.f32 %v1499
        %vm1506 = vmor %vm1504, %vm1505
        %v1507 = vsel %vm1506, %v1499, %v1503
        %v1508 = vand.u32 2147483647, %v1243
        %vm1509 = vcmp.eq.f32.partialorder %v1508, 8.507059e+37
        %v1510 = vand.u32 %v1243, 2147483648
        %v1511 = vor.u32 1.1754944e-38, %v1510
        %v1512 = vsel %vm1509, %v1511, %v1507
        %v1513 = vmul.f32 1.0, %v1512
        %v1514 = vrcp.pop %v1244
        %v1515 = vmul.f32 %v1244, %v1514
        %v1516 = vsub.f32 1.0, %v1515
        %v1517 = vmul.f32 %v1514, %v1516
        %v1518 = vadd.f32 %v1514, %v1517
        %vm1519 = vweird.f32 %v1244
        %vm1520 = vweird.f32 %v1514
        %vm1521 = vmor %vm1519, %vm1520
        %v1522 = vsel %vm1521, %v1514, %v1518
        %v1523 = vand.u32 2147483647, %v1244
        %vm1524 = vcmp.eq.f32.partialorder %v1523, 8.507059e+37
        %v1525 = vand.u32 %v1244, 2147483648
        %v1526 = vor.u32 1.1754944e-38, %v1525
        %v1527 = vsel %vm1524, %v1526, %v1522
        %v1528 = vmul.f32 1.0, %v1527
        %v1529 = vrcp.pop %v1245
        %v1530 = vmul.f32 %v1245, %v1529
        %v1531 = vsub.f32 1.0, %v1530
        %v1532 = vmul.f32 %v1529, %v1531
        %v1533 = vadd.f32 %v1529, %v1532
        %vm1534 = vweird.f32 %v1245
        %vm1535 = vweird.f32 %v1529
        %vm1536 = vmor %vm1534, %vm1535
        %v1537 = vsel %vm1536, %v1529, %v1533
        %v1538 = vand.u32 2147483647, %v1245
        %vm1539 = vcmp.eq.f32.partialorder %v1538, 8.507059e+37
        %v1540 = vand.u32 %v1245, 2147483648
        %v1541 = vor.u32 1.1754944e-38, %v1540
        %v1542 = vsel %vm1539, %v1541, %v1537
        %v1543 = vmul.f32 1.0, %v1542
        %v1544 = vrcp.pop %v1246
        %v1545 = vmul.f32 %v1246, %v1544
        %v1546 = vsub.f32 1.0, %v1545
        %v1547 = vmul.f32 %v1544, %v1546
        %v1548 = vadd.f32 %v1544, %v1547
        %vm1549 = vweird.f32 %v1246
        %vm1550 = vweird.f32 %v1544
        %vm1551 = vmor %vm1549, %vm1550
        %v1552 = vsel %vm1551, %v1544, %v1548
        %v1553 = vand.u32 2147483647, %v1246
        %vm1554 = vcmp.eq.f32.partialorder %v1553, 8.507059e+37
        %v1555 = vand.u32 %v1246, 2147483648
        %v1556 = vor.u32 1.1754944e-38, %v1555
        %v1557 = vsel %vm1554, %v1556, %v1552
        %v1558 = vmul.f32 1.0, %v1557
        %v1559 = vrcp.pop %v1247
        %v1560 = vmul.f32 %v1247, %v1559
        %v1561 = vsub.f32 1.0, %v1560
        %v1562 = vmul.f32 %v1559, %v1561
        %v1563 = vadd.f32 %v1559, %v1562
        %vm1564 = vweird.f32 %v1247
        %vm1565 = vweird.f32 %v1559
        %vm1566 = vmor %vm1564, %vm1565
        %v1567 = vsel %vm1566, %v1559, %v1563
        %v1568 = vand.u32 2147483647, %v1247
        %vm1569 = vcmp.eq.f32.partialorder %v1568, 8.507059e+37
        %v1570 = vand.u32 %v1247, 2147483648
        %v1571 = vor.u32 1.1754944e-38, %v1570
        %v1572 = vsel %vm1569, %v1571, %v1567
        %v1573 = vmul.f32 1.0, %v1572
        %v1574 = vrcp.pop %v1248
        %v1575 = vmul.f32 %v1248, %v1574
        %v1576 = vsub.f32 1.0, %v1575
        %v1577 = vmul.f32 %v1574, %v1576
        %v1578 = vadd.f32 %v1574, %v1577
        %vm1579 = vweird.f32 %v1248
        %vm1580 = vweird.f32 %v1574
        %vm1581 = vmor %vm1579, %vm1580
        %v1582 = vsel %vm1581, %v1574, %v1578
        %v1583 = vand.u32 2147483647, %v1248
        %vm1584 = vcmp.eq.f32.partialorder %v1583, 8.507059e+37
        %v1585 = vand.u32 %v1248, 2147483648
        %v1586 = vor.u32 1.1754944e-38, %v1585
        %v1587 = vsel %vm1584, %v1586, %v1582
        %v1588 = vmul.f32 1.0, %v1587
        %v1589 = vrcp.pop %v1249
        %v1590 = vmul.f32 %v1249, %v1589
        %v1591 = vsub.f32 1.0, %v1590
        %v1592 = vmul.f32 %v1589, %v1591
        %v1593 = vadd.f32 %v1589, %v1592
        %vm1594 = vweird.f32 %v1249
        %vm1595 = vweird.f32 %v1589
        %vm1596 = vmor %vm1594, %vm1595
        %v1597 = vsel %vm1596, %v1589, %v1593
        %v1598 = vand.u32 2147483647, %v1249
        %vm1599 = vcmp.eq.f32.partialorder %v1598, 8.507059e+37
        %v1600 = vand.u32 %v1249, 2147483648
        %v1601 = vor.u32 1.1754944e-38, %v1600
        %v1602 = vsel %vm1599, %v1601, %v1597
        %v1603 = vmul.f32 1.0, %v1602
        %v1604 = vrcp.pop %v1250
        %v1605 = vmul.f32 %v1250, %v1604
        %v1606 = vsub.f32 1.0, %v1605
        %v1607 = vmul.f32 %v1604, %v1606
        %v1608 = vadd.f32 %v1604, %v1607
        %vm1609 = vweird.f32 %v1250
        %vm1610 = vweird.f32 %v1604
        %vm1611 = vmor %vm1609, %vm1610
        %v1612 = vsel %vm1611, %v1604, %v1608
        %v1613 = vand.u32 2147483647, %v1250
        %vm1614 = vcmp.eq.f32.partialorder %v1613, 8.507059e+37
        %v1615 = vand.u32 %v1250, 2147483648
        %v1616 = vor.u32 1.1754944e-38, %v1615
        %v1617 = vsel %vm1614, %v1616, %v1612
        %v1618 = vmul.f32 1.0, %v1617
        %v1619 = vrcp.pop %v1251
        %v1620 = vmul.f32 %v1251, %v1619
        %v1621 = vsub.f32 1.0, %v1620
        %v1622 = vmul.f32 %v1619, %v1621
        %v1623 = vadd.f32 %v1619, %v1622
        %vm1624 = vweird.f32 %v1251
        %vm1625 = vweird.f32 %v1619
        %vm1626 = vmor %vm1624, %vm1625
        %v1627 = vsel %vm1626, %v1619, %v1623
        %v1628 = vand.u32 2147483647, %v1251
        %vm1629 = vcmp.eq.f32.partialorder %v1628, 8.507059e+37
        %v1630 = vand.u32 %v1251, 2147483648
        %v1631 = vor.u32 1.1754944e-38, %v1630
        %v1632 = vsel %vm1629, %v1631, %v1627
        %v1633 = vmul.f32 1.0, %v1632
        %v1634 = vrcp.pop %v1252
        %v1635 = vmul.f32 %v1252, %v1634
        %v1636 = vsub.f32 1.0, %v1635
        %v1637 = vmul.f32 %v1634, %v1636
        %v1638 = vadd.f32 %v1634, %v1637
        %vm1639 = vweird.f32 %v1252
        %vm1640 = vweird.f32 %v1634
        %vm1641 = vmor %vm1639, %vm1640
        %v1642 = vsel %vm1641, %v1634, %v1638
        %v1643 = vand.u32 2147483647, %v1252
        %vm1644 = vcmp.eq.f32.partialorder %v1643, 8.507059e+37
        %v1645 = vand.u32 %v1252, 2147483648
        %v1646 = vor.u32 1.1754944e-38, %v1645
        %v1647 = vsel %vm1644, %v1646, %v1642
        %v1648 = vmul.f32 1.0, %v1647
        %v1649 = vrcp.pop %v1253
        %v1650 = vmul.f32 %v1253, %v1649
        %v1651 = vsub.f32 1.0, %v1650
        %v1652 = vmul.f32 %v1649, %v1651
        %v1653 = vadd.f32 %v1649, %v1652
        %vm1654 = vweird.f32 %v1253
        %vm1655 = vweird.f32 %v1649
        %vm1656 = vmor %vm1654, %vm1655
        %v1657 = vsel %vm1656, %v1649, %v1653
        %v1658 = vand.u32 2147483647, %v1253
        %vm1659 = vcmp.eq.f32.partialorder %v1658, 8.507059e+37
        %v1660 = vand.u32 %v1253, 2147483648
        %v1661 = vor.u32 1.1754944e-38, %v1660
        %v1662 = vsel %vm1659, %v1661, %v1657
        %v1663 = vmul.f32 1.0, %v1662
        %v1664 = vrcp.pop %v1254
        %v1665 = vmul.f32 %v1254, %v1664
        %v1666 = vsub.f32 1.0, %v1665
        %v1667 = vmul.f32 %v1664, %v1666
        %v1668 = vadd.f32 %v1664, %v1667
        %vm1669 = vweird.f32 %v1254
        %vm1670 = vweird.f32 %v1664
        %vm1671 = vmor %vm1669, %vm1670
        %v1672 = vsel %vm1671, %v1664, %v1668
        %v1673 = vand.u32 2147483647, %v1254
        %vm1674 = vcmp.eq.f32.partialorder %v1673, 8.507059e+37
        %v1675 = vand.u32 %v1254, 2147483648
        %v1676 = vor.u32 1.1754944e-38, %v1675
        %v1677 = vsel %vm1674, %v1676, %v1672
        %v1678 = vmul.f32 1.0, %v1677
        %v1679 = vrcp.pop %v1255
        %v1680 = vmul.f32 %v1255, %v1679
        %v1681 = vsub.f32 1.0, %v1680
        %v1682 = vmul.f32 %v1679, %v1681
        %v1683 = vadd.f32 %v1679, %v1682
        %vm1684 = vweird.f32 %v1255
        %vm1685 = vweird.f32 %v1679
        %vm1686 = vmor %vm1684, %vm1685
        %v1687 = vsel %vm1686, %v1679, %v1683
        %v1688 = vand.u32 2147483647, %v1255
        %vm1689 = vcmp.eq.f32.partialorder %v1688, 8.507059e+37
        %v1690 = vand.u32 %v1255, 2147483648
        %v1691 = vor.u32 1.1754944e-38, %v1690
        %v1692 = vsel %vm1689, %v1691, %v1687
        %v1693 = vmul.f32 1.0, %v1692
        %v1694 = vrcp.pop %v1256
        %v1695 = vmul.f32 %v1256, %v1694
        %v1696 = vsub.f32 1.0, %v1695
        %v1697 = vmul.f32 %v1694, %v1696
        %v1698 = vadd.f32 %v1694, %v1697
        %vm1699 = vweird.f32 %v1256
        %vm1700 = vweird.f32 %v1694
        %vm1701 = vmor %vm1699, %vm1700
        %v1702 = vsel %vm1701, %v1694, %v1698
        %v1703 = vand.u32 2147483647, %v1256
        %vm1704 = vcmp.eq.f32.partialorder %v1703, 8.507059e+37
        %v1705 = vand.u32 %v1256, 2147483648
        %v1706 = vor.u32 1.1754944e-38, %v1705
        %v1707 = vsel %vm1704, %v1706, %v1702
        %v1708 = vmul.f32 1.0, %v1707
        %v1709 = vrcp.pop %v1257
        %v1710 = vmul.f32 %v1257, %v1709
        %v1711 = vsub.f32 1.0, %v1710
        %v1712 = vmul.f32 %v1709, %v1711
        %v1713 = vadd.f32 %v1709, %v1712
        %vm1714 = vweird.f32 %v1257
        %vm1715 = vweird.f32 %v1709
        %vm1716 = vmor %vm1714, %vm1715
        %v1717 = vsel %vm1716, %v1709, %v1713
        %v1718 = vand.u32 2147483647, %v1257
        %vm1719 = vcmp.eq.f32.partialorder %v1718, 8.507059e+37
        %v1720 = vand.u32 %v1257, 2147483648
        %v1721 = vor.u32 1.1754944e-38, %v1720
        %v1722 = vsel %vm1719, %v1721, %v1717
        %v1723 = vmul.f32 1.0, %v1722
        %v1724 = vrcp.pop %v1258
        %v1725 = vmul.f32 %v1258, %v1724
        %v1726 = vsub.f32 1.0, %v1725
        %v1727 = vmul.f32 %v1724, %v1726
        %v1728 = vadd.f32 %v1724, %v1727
        %vm1729 = vweird.f32 %v1258
        %vm1730 = vweird.f32 %v1724
        %vm1731 = vmor %vm1729, %vm1730
        %v1732 = vsel %vm1731, %v1724, %v1728
        %v1733 = vand.u32 2147483647, %v1258
        %vm1734 = vcmp.eq.f32.partialorder %v1733, 8.507059e+37
        %v1735 = vand.u32 %v1258, 2147483648
        %v1736 = vor.u32 1.1754944e-38, %v1735
        %v1737 = vsel %vm1734, %v1736, %v1732
        %v1738 = vmul.f32 1.0, %v1737
        %v1739 = vpack.c.bf16 %v1288, %v1273
        %v1740 = vpack.c.bf16 %v1318, %v1303
        %v1741 = vpack.c.bf16 %v1348, %v1333
        %v1742 = vpack.c.bf16 %v1378, %v1363
        %v1743 = vpack.c.bf16 %v1408, %v1393
        %v1744 = vpack.c.bf16 %v1438, %v1423
        %v1745 = vpack.c.bf16 %v1468, %v1453
        %v1746 = vpack.c.bf16 %v1498, %v1483
        %v1747 = vpack.c.bf16 %v1528, %v1513
        %v1748 = vpack.c.bf16 %v1558, %v1543
        %v1749 = vpack.c.bf16 %v1588, %v1573
        %v1750 = vpack.c.bf16 %v1618, %v1603
        %v1751 = vpack.c.bf16 %v1648, %v1633
        %v1752 = vpack.c.bf16 %v1678, %v1663
        %v1753 = vpack.c.bf16 %v1708, %v1693
        %v1754 = vpack.c.bf16 %v1738, %v1723
        %v1771 = vrot.slane %v1739, 2
        %v1772 = vrot.slane %v1740, 4
        %v1773 = vrot.slane %v1740, 6
        %v1774 = vrot.slane %v1741, 2
        %v1775 = vrot.slane %v1742, 4
        %v1776 = vrot.slane %v1742, 6
        %v1777 = vrot.slane %v1743, 2
        %v1778 = vrot.slane %v1744, 4
        %v1779 = vrot.slane %v1744, 6
        %v1780 = vrot.slane %v1745, 2
        %v1781 = vrot.slane %v1746, 4
        %v1782 = vrot.slane %v1746, 6
        %v1783 = vrot.slane %v1747, 2
        %v1784 = vrot.slane %v1748, 4
        %v1785 = vrot.slane %v1748, 6
        %v1786 = vrot.slane %v1749, 2
        %v1787 = vrot.slane %v1750, 4
        %v1788 = vrot.slane %v1750, 6
        %v1789 = vrot.slane %v1751, 2
        %v1790 = vrot.slane %v1752, 4
        %v1791 = vrot.slane %v1752, 6
        %v1792 = vrot.slane %v1753, 2
        %v1793 = vrot.slane %v1754, 4
        %v1794 = vrot.slane %v1754, 6
        %vm1795 = vcmask 1041408
        %v1798 = vsel %vm1795, %v1739, %v1771
        %vm1799 = vcmask 1045508
        %v1802 = vsel %vm1799, %v1772, %v1773
        %vm1803 = vcmask 1043456
        %v1804 = vsel %vm1803, %v1798, %v1802
        %v1807 = vsel %vm1795, %v1741, %v1774
        %v1810 = vsel %vm1799, %v1775, %v1776
        %v1811 = vsel %vm1803, %v1807, %v1810
        %v1814 = vsel %vm1795, %v1743, %v1777
        %v1817 = vsel %vm1799, %v1778, %v1779
        %v1818 = vsel %vm1803, %v1814, %v1817
        %v1821 = vsel %vm1795, %v1745, %v1780
        %v1824 = vsel %vm1799, %v1781, %v1782
        %v1825 = vsel %vm1803, %v1821, %v1824
        %v1828 = vsel %vm1795, %v1747, %v1783
        %v1831 = vsel %vm1799, %v1784, %v1785
        %v1832 = vsel %vm1803, %v1828, %v1831
        %v1835 = vsel %vm1795, %v1749, %v1786
        %v1838 = vsel %vm1799, %v1787, %v1788
        %v1839 = vsel %vm1803, %v1835, %v1838
        %v1842 = vsel %vm1795, %v1751, %v1789
        %v1845 = vsel %vm1799, %v1790, %v1791
        %v1846 = vsel %vm1803, %v1842, %v1845
        %v1849 = vsel %vm1795, %v1753, %v1792
        %v1852 = vsel %vm1799, %v1793, %v1794
        %v1853 = vsel %vm1803, %v1849, %v1852
        %1862 = vst [vmem:[%s317] sm:$0xff] %v1804
        %1863 = vst [vmem:[%s317 + $0x8] sm:$0xff] %v1811
        %1864 = vst [vmem:[%s317 + $0x10] sm:$0xff] %v1818
        %1865 = vst [vmem:[%s317 + $0x18] sm:$0xff] %v1825
        %1866 = vst [vmem:[%s317 + $0x20] sm:$0xff] %v1832
        %1867 = vst [vmem:[%s317 + $0x28] sm:$0xff] %v1839
        %1868 = vst [vmem:[%s317 + $0x30] sm:$0xff] %v1846
        %1869 = vst [vmem:[%s317 + $0x38] sm:$0xff] %v1853
        %s1870 = smul.u32 32, %s14
        %p1871 = scmp.lt.s32.totalorder %s1870, 63
        %s1872 = scalar_select %p1871, %s1870, 63
        %s1873 = smul.addr %s1872, 2
        %s1874 = scalar_lea.vmem %s3, %s1873
        // Predicated region
        $region56: #{decoder_forward.9} parent=50 // pred_check
          %p1875 = pneg %p100
        $region57: #{decoder_forward.9} parent=50 // pred_check_branch
          %1877 = sbr.rel (%p1875) target = $region59
        $region58: #{decoder_forward.9} parent=50 // pred_region
          %s1878 = smul.u32 32, %s14
        $region59: #{decoder_forward.9} parent=50 // pred_fallthru
          _
      $region51: #{decoder_forward.9} parent=5 // pred_fallthru
        _
      %p1879 = scmp.le.s32.totalorder 2, %s9
      // Predicated region
      $region60: #{decoder_forward.9} parent=5 // pred_check
        %p1880 = pneg %p1879
      $region61: #{decoder_forward.9} parent=5 // pred_check_branch
        %1882 = sbr.rel (%p1880) target = $region63
      $region62: #{decoder_forward.9} parent=5 // pred_region
        %s1883 = ssub.s32 %s9, 2
        // Predicated region
        $region64: #{decoder_forward.9} parent=62 // pred_check
          %p1884 = pneg %p106
        $region65: #{decoder_forward.9} parent=62 // pred_check_branch
          %1886 = sbr.rel (%p1884) target = $region67
        $region66: #{decoder_forward.9} parent=62 // pred_region
          %s1887 = smul.u32 32, %s15
          %p1888 = scmp.lt.s32.totalorder %s1887, 63
          %s1889 = scalar_select %p1888, %s1887, 63
          %s1890 = smul.addr %s1889, 2
          %s1891 = scalar_lea.vmem %s3, %s1890
        $region67: #{decoder_forward.9} parent=62 // pred_fallthru
          _
      $region63: #{decoder_forward.9} parent=5 // pred_fallthru
        _
    $region6: #{decoder_forward.9} parent=1 // loop_footer
      %s13 = sadd.s32 1, %s9
    $region7: #{decoder_forward.9} parent=1 // loop_footer_branch
      %8 = sbr.rel target = $region3
    $region8: #{decoder_forward.9} parent=1 // loop_exit
      _

</llo_original>
